<compile_context>
chip_gen: v5e
topology: v5e:2x2
jax: 0.10.0
libtpu: 0.0.40
codegen_flags: <defaults>
</compile_context>

<pallas_src>
import functools

import numpy as np

import jax
import jax.numpy as jnp
from jax.experimental import pallas as pl
from jax.experimental.pallas import tpu as pltpu


# --------------------------------------------------------------------------
# constant-matrix builders (trace-time numpy; become tiny kernel inputs)
# --------------------------------------------------------------------------

def _pool_consts(Hi, Wi, stride):
    """2x2 max-pool helpers for a logical (Hi, Wi) plane stored with row `stride`.

    sel  : (Ls, Hp*Wp) 0/1 matrix; column p picks flat input 2*pi*stride + 2*pj
           (relative to the per-window-offset slice start).
    cidx : (4, 1, Hp*Wp) int32; PyTorch flat argmax index candidate for offset k.
    """
    Hp, Wp = Hi // 2, Wi // 2
    P = Hp * Wp
    Ls = 2 * (Hp - 1) * stride + 2 * (Wp - 1) + 1
    sel = np.zeros((Ls, P), np.float32)
    cidx = np.zeros((4, 1, P), np.int32)
    for p in range(P):
        pi, pj = divmod(p, Wp)
        sel[2 * pi * stride + 2 * pj, p] = 1.0
        for k in range(4):
            di, dj = divmod(k, 2)
            cidx[k, 0, p] = (2 * pi + di) * Wi + (2 * pj + dj)
    return sel, cidx


def _unpool_scatter(Hp, Wp, pad, stride, Lout):
    """(4, Hp*Wp, Lout) 0/1 scatter matrices: pooled value p goes (for window offset k)
    to flat position (2*pi+di+pad)*stride + (2*pj+dj+pad) of a zero-padded buffer."""
    P = Hp * Wp
    scat = np.zeros((4, P, Lout), np.float32)
    for p in range(P):
        pi, pj = divmod(p, Wp)
        for k in range(4):
            di, dj = divmod(k, 2)
            scat[k, p, (2 * pi + di + pad) * stride + (2 * pj + dj + pad)] = 1.0
    return scat


def _compact_mat(Hi, Wi, stride):
    """((Hi-1)*stride+Wi, Hi*Wi) 0/1 matrix dropping the wrap/pad columns of a
    stride-`stride` flat buffer, yielding a compact row-major (Hi, Wi) flat layout."""
    Lin = (Hi - 1) * stride + Wi
    comp = np.zeros((Lin, Hi * Wi), np.float32)
    for i in range(Hi):
        for j in range(Wi):
            comp[i * stride + j, i * Wi + j] = 1.0
    return comp


def _conv_weight(w):
    """torch Conv2d weight (Cout, Cin, K, K) -> (K*K, Cout, Cin)."""
    Cout, Cin, K, _ = w.shape
    return jnp.transpose(w, (2, 3, 0, 1)).reshape(K * K, Cout, Cin).astype(jnp.float32)


def _deconv_weight(w):
    """torch ConvTranspose2d weight (Cin, Cout, K, K) -> spatially flipped (K*K, Cout, Cin)."""
    Cin, Cout, K, _ = w.shape
    wf = jnp.flip(w, axis=(2, 3))
    return jnp.transpose(wf, (2, 3, 1, 0)).reshape(K * K, Cout, Cin).astype(jnp.float32)


def _zero_map(rank, n):
    return (0,) * rank


# --------------------------------------------------------------------------
# fused forward kernel (one image per grid step)
# --------------------------------------------------------------------------

def _fused_forward_kernel(
    x_ref,
    wc1_ref, bc1_ref, wc2_ref, bc2_ref,
    wd1_ref, bd1_ref, wd2_ref, bd2_ref,
    selp1_ref, cidx1_ref, selp2_ref, cidx2_ref,
    scat1_ref, comp1_ref, scat2_ref, comp2_ref,
    enc_ref, dec_ref,
    e1_s, e2_s, e3_s, d1_s, d3_s,
    *, cfg):
    (K1, K2, s_x, l_e1, s_e2, l_e3, s_d1, l_d2, s_d3, l_d4) = cfg

    f32 = jnp.float32

    def conv(load, w_ref, b_ref, K, stride, out_len, relu):
        # shift-and-matmul: K*K dots of (Cout, Cin) @ (Cin, out_len) contiguous slices
        acc = None
        for k in range(K * K):
            ki, kj = divmod(k, K)
            t = jnp.dot(w_ref[k], load(ki * stride + kj, out_len),
                        preferred_element_type=f32)
            acc = t if acc is None else acc + t
        acc = acc + b_ref[...]                      # (Cout, 1) lane-broadcast bias
        return jnp.maximum(acc, 0.0) if relu else acc

    def maxpool(load, stride, sel_ref, cidx_ref):
        # 4 window offsets -> selection matmul + running max / argmax (PyTorch flat idx)
        Ls = sel_ref.shape[0]
        best_v = best_i = None
        for k in range(4):
            di, dj = divmod(k, 2)
            cand = jnp.dot(load(di * stride + dj, Ls), sel_ref[...],
                           preferred_element_type=f32)
            cidx = jnp.broadcast_to(cidx_ref[k], cand.shape)
            if best_v is None:
                best_v, best_i = cand, cidx
            else:
                take = cand > best_v                # strict '>' keeps first max (tie rule)
                best_v = jnp.where(take, cand, best_v)
                best_i = jnp.where(take, cidx, best_i)
        return best_v, best_i

    def maxunpool(v, idx, cidx_ref, scat_ref):
        # scatter values to the recorded window position inside a zero, padded buffer
        out = None
        for k in range(4):
            m = jnp.where(idx == cidx_ref[k], v, 0.0)
            t = jnp.dot(m, scat_ref[k], preferred_element_type=f32)
            out = t if out is None else out + t
        return out

    ld_x = lambda off, ln: x_ref[0, :, pl.ds(off, ln)]
    ld_e1 = lambda off, ln: e1_s[:, pl.ds(off, ln)]
    ld_e2 = lambda off, ln: e2_s[:, pl.ds(off, ln)]
    ld_e3 = lambda off, ln: e3_s[:, pl.ds(off, ln)]
    ld_d1 = lambda off, ln: d1_s[:, pl.ds(off, ln)]
    ld_d3 = lambda off, ln: d3_s[:, pl.ds(off, ln)]

    # ---------------- encoder ----------------
    # relu1(conv1(x))                                    (C1, l_e1), row stride s_x
    e1_s[...] = conv(ld_x, wc1_ref, bc1_ref, K1, s_x, l_e1, relu=True)
    # encode2, indices1 = maxpool1(.)                    (C1, Hp1*Wp1)
    e2, idx1 = maxpool(ld_e1, s_x, selp1_ref, cidx1_ref)
    e2_s[...] = e2
    # relu2(conv2(encode2))                              (C2, l_e3), row stride s_e2
    e3_s[...] = conv(ld_e2, wc2_ref, bc2_ref, K2, s_e2, l_e3, relu=True)
    # encode4, indices2 = maxpool2(.)                    (C2, Hp2*Wp2)
    e4, idx2 = maxpool(ld_e3, s_e2, selp2_ref, cidx2_ref)
    enc_ref[0] = e4

    # ---------------- decoder ----------------
    # relu3(maxunpool1(encode4, indices2))  -- relu commutes with the zero-scatter
    d1_s[...] = maxunpool(jnp.maximum(e4, 0.0), idx2, cidx2_ref, scat1_ref)
    # deconv1 == conv over the implicitly padded buffer with flipped/swapped weights
    d2 = conv(ld_d1, wd1_ref, bd1_ref, K2, s_d1, l_d2, relu=False)
    d2c = jnp.dot(d2, comp1_ref[...], preferred_element_type=f32)   # drop wrap columns
    # relu4(maxunpool2(decode2, indices1))
    d3_s[...] = maxunpool(jnp.maximum(d2c, 0.0), idx1, cidx1_ref, scat2_ref)
    # deconv2
    d4 = conv(ld_d3, wd2_ref, bd2_ref, K1, s_d3, l_d4, relu=False)
    dec_ref[0] = jnp.dot(d4, comp2_ref[...], preferred_element_type=f32)  # lane-dense store


# --------------------------------------------------------------------------
# host wrapper: builds constants, calls the single fused pallas_call
# --------------------------------------------------------------------------

def conv_autoencoder_forward(params, x):
    N, Cin, H, W = x.shape
    K1, K2 = 3, 2
    C1 = params["conv1_w"].shape[0]          # 16
    C2 = params["conv2_w"].shape[0]          # 32

    H1, W1 = H - K1 + 1, W - K1 + 1          # conv1 out
    assert H1 % 2 == 0 and W1 % 2 == 0
    Hp1, Wp1 = H1 // 2, W1 // 2              # pool1 out
    H3, W3 = Hp1 - K2 + 1, Wp1 - K2 + 1      # conv2 out
    assert H3 % 2 == 0 and W3 % 2 == 0
    Hp2, Wp2 = H3 // 2, W3 // 2              # pool2 out

    # flat-layout bookkeeping: storage row strides and flat buffer lengths
    s_x = W
    l_e1 = (H1 - 1) * W + W1
    s_e2 = Wp1
    l_e3 = (H3 - 1) * Wp1 + W3
    s_d1 = W3 + 2 * (K2 - 1)                 # unpool1 target stride (incl. deconv1 pad)
    l_d1 = (H3 + 2 * (K2 - 1)) * s_d1
    l_d2 = (Hp1 - 1) * s_d1 + Wp1
    s_d3 = W1 + 2 * (K1 - 1)                 # unpool2 target stride (incl. deconv2 pad)
    l_d3 = (H1 + 2 * (K1 - 1)) * s_d3
    l_d4 = (H - 1) * s_d3 + W
    cfg = (K1, K2, s_x, l_e1, s_e2, l_e3, s_d1, l_d2, s_d3, l_d4)

    # constant 0/1 selection / scatter / compaction matrices (trace-time numpy)
    selp1, cidx1 = _pool_consts(H1, W1, s_x)
    selp2, cidx2 = _pool_consts(H3, W3, s_e2)
    scat1 = _unpool_scatter(Hp2, Wp2, K2 - 1, s_d1, l_d1)
    comp1 = _compact_mat(Hp1, Wp1, s_d1)
    scat2 = _unpool_scatter(Hp1, Wp1, K1 - 1, s_d3, l_d3)
    comp2 = _compact_mat(H, W, s_d3)

    # pre-arranged weights / biases (tiny, one-time, outside the kernel)
    wc1 = _conv_weight(params["conv1_w"])
    wc2 = _conv_weight(params["conv2_w"])
    wd1 = _deconv_weight(params["deconv1_w"])
    wd2 = _deconv_weight(params["deconv2_w"])
    bc1 = params["conv1_b"].reshape(C1, 1).astype(jnp.float32)
    bc2 = params["conv2_b"].reshape(C2, 1).astype(jnp.float32)
    bd1 = params["deconv1_b"].reshape(C1, 1).astype(jnp.float32)
    bd2 = params["deconv2_b"].reshape(Cin, 1).astype(jnp.float32)

    x_flat = x.reshape(N, Cin, H * W).astype(jnp.float32)   # metadata-only reshape

    inputs = (x_flat, wc1, bc1, wc2, bc2, wd1, bd1, wd2, bd2,
              jnp.asarray(selp1), jnp.asarray(cidx1),
              jnp.asarray(selp2), jnp.asarray(cidx2),
              jnp.asarray(scat1), jnp.asarray(comp1),
              jnp.asarray(scat2), jnp.asarray(comp2))

    in_specs = [pl.BlockSpec((1, Cin, H * W), lambda n: (n, 0, 0))]
    for a in inputs[1:]:
        # constants: same block every grid step -> DMA'd once, kept resident in VMEM
        in_specs.append(pl.BlockSpec(a.shape, functools.partial(_zero_map, a.ndim)))

    out_shape = (jax.ShapeDtypeStruct((N, C2, Hp2 * Wp2), jnp.float32),
                 jax.ShapeDtypeStruct((N, Cin, H * W), jnp.float32))
    out_specs = (pl.BlockSpec((1, C2, Hp2 * Wp2), lambda n: (n, 0, 0)),
                 pl.BlockSpec((1, Cin, H * W), lambda n: (n, 0, 0)))

    scratch_shapes = [
        pltpu.VMEM((C1, l_e1), jnp.float32),       # relu1(conv1) flat
        pltpu.VMEM((C1, Hp1 * Wp1), jnp.float32),  # encode2 flat (compact)
        pltpu.VMEM((C2, l_e3), jnp.float32),       # relu2(conv2) flat
        pltpu.VMEM((C2, l_d1), jnp.float32),       # unpool1 (zero-padded for deconv1)
        pltpu.VMEM((C1, l_d3), jnp.float32),       # unpool2 (zero-padded for deconv2)
    ]

    kernel = functools.partial(_fused_forward_kernel, cfg=cfg)
    enc, dec = pl.pallas_call(
        kernel,
        out_shape=out_shape,
        grid=(N,),
        in_specs=in_specs,
        out_specs=out_specs,
        scratch_shapes=scratch_shapes,
        compiler_params=pltpu.CompilerParams(
            dimension_semantics=("parallel",)),   # batch across cores (2x on v7x)
    )(*inputs)

    return enc.reshape(N, C2, Hp2, Wp2), dec.reshape(N, Cin, H, W)


# --------------------------------------------------------------------------
# parameter init (PyTorch-style uniform) and pure-JAX reference for checking
# --------------------------------------------------------------------------

def init_params(key, cin):
    ks = jax.random.split(key, 8)

    def u(k, shape, fan_in):
        bound = 1.0 / float(fan_in) ** 0.5
        return jax.random.uniform(k, shape, jnp.float32, -bound, bound)

    return {
        "conv1_w": u(ks[0], (16, cin, 3, 3), cin * 9),
        "conv1_b": u(ks[1], (16,), cin * 9),
        "conv2_w": u(ks[2], (32, 16, 2, 2), 16 * 4),
        "conv2_b": u(ks[3], (32,), 16 * 4),
        "deconv1_w": u(ks[4], (32, 16, 2, 2), 32 * 4),   # ConvTranspose: (Cin, Cout, K, K)
        "deconv1_b": u(ks[5], (16,), 32 * 4),
        "deconv2_w": u(ks[6], (16, cin, 3, 3), 16 * 9),
        "deconv2_b": u(ks[7], (cin,), 16 * 9),
    }


def _reference_forward(params, x):
    """Pure-JAX (non-Pallas) reference mirroring the PyTorch module."""
    def conv(x, w, b, pad=0):
        y = jax.lax.conv_general_dilated(
            x, w, window_strides=(1, 1), padding=[(pad, pad), (pad, pad)],
            dimension_numbers=("NCHW", "OIHW", "NCHW"))
        return y + b[None, :, None, None]

    def deconv(x, w, b):
        K = w.shape[-1]
        wf = jnp.flip(w, (2, 3)).transpose(1, 0, 2, 3)
        return conv(x, wf, b, pad=K - 1)

    def pool(x):
        N, C, H, W = x.shape
        xr = (x.reshape(N, C, H // 2, 2, W // 2, 2)
               .transpose(0, 1, 2, 4, 3, 5)
               .reshape(N, C, H // 2, W // 2, 4))
        vals = xr.max(axis=-1)
        arg = jnp.argmax(xr, axis=-1)
        di, dj = arg // 2, arg % 2
        pi = jnp.arange(H // 2)[None, None, :, None]
        pj = jnp.arange(W // 2)[None, None, None, :]
        idx = (2 * pi + di) * W + (2 * pj + dj)
        return vals, idx

    def unpool(v, idx, out_hw):
        N, C, P, Q = v.shape
        Ho, Wo = out_hw
        flat = jnp.zeros((N, C, Ho * Wo), v.dtype)
        ni = jnp.arange(N)[:, None, None, None]
        ci = jnp.arange(C)[None, :, None, None]
        flat = flat.at[ni, ci, idx].set(v)
        return flat.reshape(N, C, Ho, Wo)

    relu = lambda t: jnp.maximum(t, 0.0)
    e1 = conv(x, params["conv1_w"], params["conv1_b"])
    e2, i1 = pool(relu(e1))
    e3 = conv(e2, params["conv2_w"], params["conv2_b"])
    e4, i2 = pool(relu(e3))
    d1 = unpool(e4, i2, e3.shape[2:])
    d2 = deconv(relu(d1), params["deconv1_w"], params["deconv1_b"])
    d3 = unpool(d2, i1, e1.shape[2:])
    d4 = deconv(relu(d3), params["deconv2_w"], params["deconv2_b"])
    return e4, d4


if __name__ == "__main__":
    key = jax.random.PRNGKey(0)
    k_par, k_x = jax.random.split(key)

    Cin, N, H, W = 4, 2, 16, 16
    params = init_params(k_par, Cin)
    x = jax.random.normal(k_x, (N, Cin, H, W), dtype=jnp.float32)

    fwd = jax.jit(conv_autoencoder_forward)
    encode4, decode4 = fwd(params, x)
    jax.block_until_ready((encode4, decode4))

    assert encode4.shape == (N, 32, 3, 3), encode4.shape
    assert decode4.shape == (N, Cin, H, W), decode4.shape

    # correctness gate against the pure-JAX reference
    ref_enc, ref_dec = jax.jit(_reference_forward)(params, x)
    np.testing.assert_allclose(np.asarray(encode4), np.asarray(ref_enc),
                               rtol=1e-3, atol=1e-3)
    np.testing.assert_allclose(np.asarray(decode4), np.asarray(ref_dec),
                               rtol=1e-3, atol=1e-3)

    print("KERNEL_OK")
</pallas_src>

<mosaic_0001>
module attributes {stable_mosaic.version = 11 : i64} {
  func.func @_fused_forward_kernel(%arg0: i32, %arg1: memref<1x4x256xf32, #tpu.memory_space<vmem>>, %arg2: memref<9x16x4xf32, #tpu.memory_space<vmem>>, %arg3: memref<16x1xf32, #tpu.memory_space<vmem>>, %arg4: memref<4x32x16xf32, #tpu.memory_space<vmem>>, %arg5: memref<32x1xf32, #tpu.memory_space<vmem>>, %arg6: memref<4x16x32xf32, #tpu.memory_space<vmem>>, %arg7: memref<16x1xf32, #tpu.memory_space<vmem>>, %arg8: memref<9x4x16xf32, #tpu.memory_space<vmem>>, %arg9: memref<4x1xf32, #tpu.memory_space<vmem>>, %arg10: memref<205x49xf32, #tpu.memory_space<vmem>>, %arg11: memref<4x1x49xi32, #tpu.memory_space<vmem>>, %arg12: memref<33x9xf32, #tpu.memory_space<vmem>>, %arg13: memref<4x1x9xi32, #tpu.memory_space<vmem>>, %arg14: memref<4x9x64xf32, #tpu.memory_space<vmem>>, %arg15: memref<55x49xf32, #tpu.memory_space<vmem>>, %arg16: memref<4x49x324xf32, #tpu.memory_space<vmem>>, %arg17: memref<286x256xf32, #tpu.memory_space<vmem>>, %arg18: memref<1x32x9xf32, #tpu.memory_space<vmem>>, %arg19: memref<1x4x256xf32, #tpu.memory_space<vmem>>, %arg20: memref<16x222xf32, #tpu.memory_space<vmem>>, %arg21: memref<16x49xf32, #tpu.memory_space<vmem>>, %arg22: memref<32x41xf32, #tpu.memory_space<vmem>>, %arg23: memref<32x64xf32, #tpu.memory_space<vmem>>, %arg24: memref<16x324xf32, #tpu.memory_space<vmem>>) attributes {dimension_semantics = [#tpu.dimension_semantics<parallel>], iteration_bounds = array<i64: 2>, scalar_prefetch = 0 : i64, scratch_operands = 5 : i64, tpu.core_type = #tpu.core_type<tc>, window_params = [{transform_indices = @transform_0, window_bounds = array<i64: 1, 4, 256>}, {pipeline_mode = #tpu.pipeline_mode<synchronous>, transform_indices = @transform_1, window_bounds = array<i64: 9, 16, 4>}, {pipeline_mode = #tpu.pipeline_mode<synchronous>, transform_indices = @transform_2, window_bounds = array<i64: 16, 1>}, {pipeline_mode = #tpu.pipeline_mode<synchronous>, transform_indices = @transform_3, window_bounds = array<i64: 4, 32, 16>}, {pipeline_mode = #tpu.pipeline_mode<synchronous>, transform_indices = @transform_4, window_bounds = array<i64: 32, 1>}, {pipeline_mode = #tpu.pipeline_mode<synchronous>, transform_indices = @transform_5, window_bounds = array<i64: 4, 16, 32>}, {pipeline_mode = #tpu.pipeline_mode<synchronous>, transform_indices = @transform_6, window_bounds = array<i64: 16, 1>}, {pipeline_mode = #tpu.pipeline_mode<synchronous>, transform_indices = @transform_7, window_bounds = array<i64: 9, 4, 16>}, {pipeline_mode = #tpu.pipeline_mode<synchronous>, transform_indices = @transform_8, window_bounds = array<i64: 4, 1>}, {pipeline_mode = #tpu.pipeline_mode<synchronous>, transform_indices = @transform_9, window_bounds = array<i64: 205, 49>}, {pipeline_mode = #tpu.pipeline_mode<synchronous>, transform_indices = @transform_10, window_bounds = array<i64: 4, 1, 49>}, {pipeline_mode = #tpu.pipeline_mode<synchronous>, transform_indices = @transform_11, window_bounds = array<i64: 33, 9>}, {pipeline_mode = #tpu.pipeline_mode<synchronous>, transform_indices = @transform_12, window_bounds = array<i64: 4, 1, 9>}, {pipeline_mode = #tpu.pipeline_mode<synchronous>, transform_indices = @transform_13, window_bounds = array<i64: 4, 9, 64>}, {pipeline_mode = #tpu.pipeline_mode<synchronous>, transform_indices = @transform_14, window_bounds = array<i64: 55, 49>}, {pipeline_mode = #tpu.pipeline_mode<synchronous>, transform_indices = @transform_15, window_bounds = array<i64: 4, 49, 324>}, {pipeline_mode = #tpu.pipeline_mode<synchronous>, transform_indices = @transform_16, window_bounds = array<i64: 286, 256>}, {transform_indices = @transform_17, window_bounds = array<i64: 1, 32, 9>}, {transform_indices = @transform_18, window_bounds = array<i64: 1, 4, 256>}]} {
    %c0 = arith.constant 0 : index
    %c0_0 = arith.constant 0 : index
    %c0_1 = arith.constant 0 : index
    %0 = vector.load %arg2[%c0, %c0_0, %c0_1] : memref<9x16x4xf32, #tpu.memory_space<vmem>>, vector<1x16x4xf32>
    %1 = vector.shape_cast %0 : vector<1x16x4xf32> to vector<16x4xf32>
    %c0_2 = arith.constant 0 : index
    %c0_3 = arith.constant 0 : index
    %c0_4 = arith.constant 0 : index
    %2 = vector.load %arg1[%c0_2, %c0_3, %c0_4] : memref<1x4x256xf32, #tpu.memory_space<vmem>>, vector<1x4x222xf32>
    %3 = vector.shape_cast %2 : vector<1x4x222xf32> to vector<4x222xf32>
    %cst = arith.constant dense<0.000000e+00> : vector<16x222xf32>
    %4 = tpu.matmul %1, %3, %cst {dimension_numbers = #tpu.dot_dimension_numbers<[1], [0], [0], [1], [0, 0, 1, 1], [], []>} : vector<16x4xf32>, vector<4x222xf32>, vector<16x222xf32> -> vector<16x222xf32>
    %c1 = arith.constant 1 : index
    %c0_5 = arith.constant 0 : index
    %c0_6 = arith.constant 0 : index
    %5 = vector.load %arg2[%c1, %c0_5, %c0_6] : memref<9x16x4xf32, #tpu.memory_space<vmem>>, vector<1x16x4xf32>
    %6 = vector.shape_cast %5 : vector<1x16x4xf32> to vector<16x4xf32>
    %c0_7 = arith.constant 0 : index
    %c0_8 = arith.constant 0 : index
    %c1_9 = arith.constant 1 : index
    %7 = vector.load %arg1[%c0_7, %c0_8, %c1_9] : memref<1x4x256xf32, #tpu.memory_space<vmem>>, vector<1x4x222xf32>
    %8 = vector.shape_cast %7 : vector<1x4x222xf32> to vector<4x222xf32>
    %cst_10 = arith.constant dense<0.000000e+00> : vector<16x222xf32>
    %9 = tpu.matmul %6, %8, %cst_10 {dimension_numbers = #tpu.dot_dimension_numbers<[1], [0], [0], [1], [0, 0, 1, 1], [], []>} : vector<16x4xf32>, vector<4x222xf32>, vector<16x222xf32> -> vector<16x222xf32>
    %10 = arith.addf %4, %9 : vector<16x222xf32>
    %c2 = arith.constant 2 : index
    %c0_11 = arith.constant 0 : index
    %c0_12 = arith.constant 0 : index
    %11 = vector.load %arg2[%c2, %c0_11, %c0_12] : memref<9x16x4xf32, #tpu.memory_space<vmem>>, vector<1x16x4xf32>
    %12 = vector.shape_cast %11 : vector<1x16x4xf32> to vector<16x4xf32>
    %c0_13 = arith.constant 0 : index
    %c0_14 = arith.constant 0 : index
    %c2_15 = arith.constant 2 : index
    %13 = vector.load %arg1[%c0_13, %c0_14, %c2_15] : memref<1x4x256xf32, #tpu.memory_space<vmem>>, vector<1x4x222xf32>
    %14 = vector.shape_cast %13 : vector<1x4x222xf32> to vector<4x222xf32>
    %cst_16 = arith.constant dense<0.000000e+00> : vector<16x222xf32>
    %15 = tpu.matmul %12, %14, %cst_16 {dimension_numbers = #tpu.dot_dimension_numbers<[1], [0], [0], [1], [0, 0, 1, 1], [], []>} : vector<16x4xf32>, vector<4x222xf32>, vector<16x222xf32> -> vector<16x222xf32>
    %16 = arith.addf %10, %15 : vector<16x222xf32>
    %c3 = arith.constant 3 : index
    %c0_17 = arith.constant 0 : index
    %c0_18 = arith.constant 0 : index
    %17 = vector.load %arg2[%c3, %c0_17, %c0_18] : memref<9x16x4xf32, #tpu.memory_space<vmem>>, vector<1x16x4xf32>
    %18 = vector.shape_cast %17 : vector<1x16x4xf32> to vector<16x4xf32>
    %c0_19 = arith.constant 0 : index
    %c0_20 = arith.constant 0 : index
    %c16 = arith.constant 16 : index
    %19 = vector.load %arg1[%c0_19, %c0_20, %c16] : memref<1x4x256xf32, #tpu.memory_space<vmem>>, vector<1x4x222xf32>
    %20 = vector.shape_cast %19 : vector<1x4x222xf32> to vector<4x222xf32>
    %cst_21 = arith.constant dense<0.000000e+00> : vector<16x222xf32>
    %21 = tpu.matmul %18, %20, %cst_21 {dimension_numbers = #tpu.dot_dimension_numbers<[1], [0], [0], [1], [0, 0, 1, 1], [], []>} : vector<16x4xf32>, vector<4x222xf32>, vector<16x222xf32> -> vector<16x222xf32>
    %22 = arith.addf %16, %21 : vector<16x222xf32>
    %c4 = arith.constant 4 : index
    %c0_22 = arith.constant 0 : index
    %c0_23 = arith.constant 0 : index
    %23 = vector.load %arg2[%c4, %c0_22, %c0_23] : memref<9x16x4xf32, #tpu.memory_space<vmem>>, vector<1x16x4xf32>
    %24 = vector.shape_cast %23 : vector<1x16x4xf32> to vector<16x4xf32>
    %c0_24 = arith.constant 0 : index
    %c0_25 = arith.constant 0 : index
    %c17 = arith.constant 17 : index
    %25 = vector.load %arg1[%c0_24, %c0_25, %c17] : memref<1x4x256xf32, #tpu.memory_space<vmem>>, vector<1x4x222xf32>
    %26 = vector.shape_cast %25 : vector<1x4x222xf32> to vector<4x222xf32>
    %cst_26 = arith.constant dense<0.000000e+00> : vector<16x222xf32>
    %27 = tpu.matmul %24, %26, %cst_26 {dimension_numbers = #tpu.dot_dimension_numbers<[1], [0], [0], [1], [0, 0, 1, 1], [], []>} : vector<16x4xf32>, vector<4x222xf32>, vector<16x222xf32> -> vector<16x222xf32>
    %28 = arith.addf %22, %27 : vector<16x222xf32>
    %c5 = arith.constant 5 : index
    %c0_27 = arith.constant 0 : index
    %c0_28 = arith.constant 0 : index
    %29 = vector.load %arg2[%c5, %c0_27, %c0_28] : memref<9x16x4xf32, #tpu.memory_space<vmem>>, vector<1x16x4xf32>
    %30 = vector.shape_cast %29 : vector<1x16x4xf32> to vector<16x4xf32>
    %c0_29 = arith.constant 0 : index
    %c0_30 = arith.constant 0 : index
    %c18 = arith.constant 18 : index
    %31 = vector.load %arg1[%c0_29, %c0_30, %c18] : memref<1x4x256xf32, #tpu.memory_space<vmem>>, vector<1x4x222xf32>
    %32 = vector.shape_cast %31 : vector<1x4x222xf32> to vector<4x222xf32>
    %cst_31 = arith.constant dense<0.000000e+00> : vector<16x222xf32>
    %33 = tpu.matmul %30, %32, %cst_31 {dimension_numbers = #tpu.dot_dimension_numbers<[1], [0], [0], [1], [0, 0, 1, 1], [], []>} : vector<16x4xf32>, vector<4x222xf32>, vector<16x222xf32> -> vector<16x222xf32>
    %34 = arith.addf %28, %33 : vector<16x222xf32>
    %c6 = arith.constant 6 : index
    %c0_32 = arith.constant 0 : index
    %c0_33 = arith.constant 0 : index
    %35 = vector.load %arg2[%c6, %c0_32, %c0_33] : memref<9x16x4xf32, #tpu.memory_space<vmem>>, vector<1x16x4xf32>
    %36 = vector.shape_cast %35 : vector<1x16x4xf32> to vector<16x4xf32>
    %c0_34 = arith.constant 0 : index
    %c0_35 = arith.constant 0 : index
    %c32 = arith.constant 32 : index
    %37 = vector.load %arg1[%c0_34, %c0_35, %c32] : memref<1x4x256xf32, #tpu.memory_space<vmem>>, vector<1x4x222xf32>
    %38 = vector.shape_cast %37 : vector<1x4x222xf32> to vector<4x222xf32>
    %cst_36 = arith.constant dense<0.000000e+00> : vector<16x222xf32>
    %39 = tpu.matmul %36, %38, %cst_36 {dimension_numbers = #tpu.dot_dimension_numbers<[1], [0], [0], [1], [0, 0, 1, 1], [], []>} : vector<16x4xf32>, vector<4x222xf32>, vector<16x222xf32> -> vector<16x222xf32>
    %40 = arith.addf %34, %39 : vector<16x222xf32>
    %c7 = arith.constant 7 : index
    %c0_37 = arith.constant 0 : index
    %c0_38 = arith.constant 0 : index
    %41 = vector.load %arg2[%c7, %c0_37, %c0_38] : memref<9x16x4xf32, #tpu.memory_space<vmem>>, vector<1x16x4xf32>
    %42 = vector.shape_cast %41 : vector<1x16x4xf32> to vector<16x4xf32>
    %c0_39 = arith.constant 0 : index
    %c0_40 = arith.constant 0 : index
    %c33 = arith.constant 33 : index
    %43 = vector.load %arg1[%c0_39, %c0_40, %c33] : memref<1x4x256xf32, #tpu.memory_space<vmem>>, vector<1x4x222xf32>
    %44 = vector.shape_cast %43 : vector<1x4x222xf32> to vector<4x222xf32>
    %cst_41 = arith.constant dense<0.000000e+00> : vector<16x222xf32>
    %45 = tpu.matmul %42, %44, %cst_41 {dimension_numbers = #tpu.dot_dimension_numbers<[1], [0], [0], [1], [0, 0, 1, 1], [], []>} : vector<16x4xf32>, vector<4x222xf32>, vector<16x222xf32> -> vector<16x222xf32>
    %46 = arith.addf %40, %45 : vector<16x222xf32>
    %c8 = arith.constant 8 : index
    %c0_42 = arith.constant 0 : index
    %c0_43 = arith.constant 0 : index
    %47 = vector.load %arg2[%c8, %c0_42, %c0_43] : memref<9x16x4xf32, #tpu.memory_space<vmem>>, vector<1x16x4xf32>
    %48 = vector.shape_cast %47 : vector<1x16x4xf32> to vector<16x4xf32>
    %c0_44 = arith.constant 0 : index
    %c0_45 = arith.constant 0 : index
    %c34 = arith.constant 34 : index
    %49 = vector.load %arg1[%c0_44, %c0_45, %c34] : memref<1x4x256xf32, #tpu.memory_space<vmem>>, vector<1x4x222xf32>
    %50 = vector.shape_cast %49 : vector<1x4x222xf32> to vector<4x222xf32>
    %cst_46 = arith.constant dense<0.000000e+00> : vector<16x222xf32>
    %51 = tpu.matmul %48, %50, %cst_46 {dimension_numbers = #tpu.dot_dimension_numbers<[1], [0], [0], [1], [0, 0, 1, 1], [], []>} : vector<16x4xf32>, vector<4x222xf32>, vector<16x222xf32> -> vector<16x222xf32>
    %52 = arith.addf %46, %51 : vector<16x222xf32>
    %c0_47 = arith.constant 0 : index
    %c0_48 = arith.constant 0 : index
    %53 = vector.load %arg3[%c0_47, %c0_48] : memref<16x1xf32, #tpu.memory_space<vmem>>, vector<16x1xf32>
    %54 = vector.broadcast %53 : vector<16x1xf32> to vector<16x222xf32>
    %55 = arith.addf %52, %54 : vector<16x222xf32>
    %cst_49 = arith.constant 0.000000e+00 : f32
    %56 = vector.broadcast %cst_49 : f32 to vector<16x222xf32>
    %57 = arith.maximumf %55, %56 : vector<16x222xf32>
    %c0_50 = arith.constant 0 : index
    %c0_51 = arith.constant 0 : index
    %58 = vector.load %arg20[%c0_50, %c0_51] : memref<16x222xf32, #tpu.memory_space<vmem>>, vector<16x222xf32>
    tpu.vector_store %arg20[%c0_50, %c0_51], %57 {strides = array<i32>} : memref<16x222xf32, #tpu.memory_space<vmem>>, vector<16x222xf32>,
    %c0_52 = arith.constant 0 : index
    %c0_53 = arith.constant 0 : index
    %59 = vector.load %arg20[%c0_52, %c0_53] : memref<16x222xf32, #tpu.memory_space<vmem>>, vector<16x205xf32>
    %c0_54 = arith.constant 0 : index
    %c0_55 = arith.constant 0 : index
    %60 = vector.load %arg10[%c0_54, %c0_55] : memref<205x49xf32, #tpu.memory_space<vmem>>, vector<205x49xf32>
    %cst_56 = arith.constant dense<0.000000e+00> : vector<16x49xf32>
    %61 = tpu.matmul %59, %60, %cst_56 {dimension_numbers = #tpu.dot_dimension_numbers<[1], [0], [0], [1], [0, 0, 1, 1], [], []>} : vector<16x205xf32>, vector<205x49xf32>, vector<16x49xf32> -> vector<16x49xf32>
    %c0_57 = arith.constant 0 : index
    %c0_58 = arith.constant 0 : index
    %c0_59 = arith.constant 0 : index
    %62 = vector.load %arg11[%c0_57, %c0_58, %c0_59] : memref<4x1x49xi32, #tpu.memory_space<vmem>>, vector<1x1x49xi32>
    %63 = vector.shape_cast %62 : vector<1x1x49xi32> to vector<1x49xi32>
    %64 = vector.shape_cast %63 : vector<1x49xi32> to vector<1x49xi32>
    %65 = vector.broadcast %64 : vector<1x49xi32> to vector<16x49xi32>
    %c0_60 = arith.constant 0 : index
    %c1_61 = arith.constant 1 : index
    %66 = vector.load %arg20[%c0_60, %c1_61] : memref<16x222xf32, #tpu.memory_space<vmem>>, vector<16x205xf32>
    %c0_62 = arith.constant 0 : index
    %c0_63 = arith.constant 0 : index
    %67 = vector.load %arg10[%c0_62, %c0_63] : memref<205x49xf32, #tpu.memory_space<vmem>>, vector<205x49xf32>
    %cst_64 = arith.constant dense<0.000000e+00> : vector<16x49xf32>
    %68 = tpu.matmul %66, %67, %cst_64 {dimension_numbers = #tpu.dot_dimension_numbers<[1], [0], [0], [1], [0, 0, 1, 1], [], []>} : vector<16x205xf32>, vector<205x49xf32>, vector<16x49xf32> -> vector<16x49xf32>
    %c1_65 = arith.constant 1 : index
    %c0_66 = arith.constant 0 : index
    %c0_67 = arith.constant 0 : index
    %69 = vector.load %arg11[%c1_65, %c0_66, %c0_67] : memref<4x1x49xi32, #tpu.memory_space<vmem>>, vector<1x1x49xi32>
    %70 = vector.shape_cast %69 : vector<1x1x49xi32> to vector<1x49xi32>
    %71 = vector.shape_cast %70 : vector<1x49xi32> to vector<1x49xi32>
    %72 = vector.broadcast %71 : vector<1x49xi32> to vector<16x49xi32>
    %73 = arith.cmpf ogt, %68, %61 : vector<16x49xf32>
    %74 = arith.select %73, %68, %61 : vector<16x49xi1>, vector<16x49xf32>
    %75 = arith.select %73, %72, %65 : vector<16x49xi1>, vector<16x49xi32>
    %c0_68 = arith.constant 0 : index
    %c16_69 = arith.constant 16 : index
    %76 = vector.load %arg20[%c0_68, %c16_69] : memref<16x222xf32, #tpu.memory_space<vmem>>, vector<16x205xf32>
    %c0_70 = arith.constant 0 : index
    %c0_71 = arith.constant 0 : index
    %77 = vector.load %arg10[%c0_70, %c0_71] : memref<205x49xf32, #tpu.memory_space<vmem>>, vector<205x49xf32>
    %cst_72 = arith.constant dense<0.000000e+00> : vector<16x49xf32>
    %78 = tpu.matmul %76, %77, %cst_72 {dimension_numbers = #tpu.dot_dimension_numbers<[1], [0], [0], [1], [0, 0, 1, 1], [], []>} : vector<16x205xf32>, vector<205x49xf32>, vector<16x49xf32> -> vector<16x49xf32>
    %c2_73 = arith.constant 2 : index
    %c0_74 = arith.constant 0 : index
    %c0_75 = arith.constant 0 : index
    %79 = vector.load %arg11[%c2_73, %c0_74, %c0_75] : memref<4x1x49xi32, #tpu.memory_space<vmem>>, vector<1x1x49xi32>
    %80 = vector.shape_cast %79 : vector<1x1x49xi32> to vector<1x49xi32>
    %81 = vector.shape_cast %80 : vector<1x49xi32> to vector<1x49xi32>
    %82 = vector.broadcast %81 : vector<1x49xi32> to vector<16x49xi32>
    %83 = arith.cmpf ogt, %78, %74 : vector<16x49xf32>
    %84 = arith.select %83, %78, %74 : vector<16x49xi1>, vector<16x49xf32>
    %85 = arith.select %83, %82, %75 : vector<16x49xi1>, vector<16x49xi32>
    %c0_76 = arith.constant 0 : index
    %c17_77 = arith.constant 17 : index
    %86 = vector.load %arg20[%c0_76, %c17_77] : memref<16x222xf32, #tpu.memory_space<vmem>>, vector<16x205xf32>
    %c0_78 = arith.constant 0 : index
    %c0_79 = arith.constant 0 : index
    %87 = vector.load %arg10[%c0_78, %c0_79] : memref<205x49xf32, #tpu.memory_space<vmem>>, vector<205x49xf32>
    %cst_80 = arith.constant dense<0.000000e+00> : vector<16x49xf32>
    %88 = tpu.matmul %86, %87, %cst_80 {dimension_numbers = #tpu.dot_dimension_numbers<[1], [0], [0], [1], [0, 0, 1, 1], [], []>} : vector<16x205xf32>, vector<205x49xf32>, vector<16x49xf32> -> vector<16x49xf32>
    %c3_81 = arith.constant 3 : index
    %c0_82 = arith.constant 0 : index
    %c0_83 = arith.constant 0 : index
    %89 = vector.load %arg11[%c3_81, %c0_82, %c0_83] : memref<4x1x49xi32, #tpu.memory_space<vmem>>, vector<1x1x49xi32>
    %90 = vector.shape_cast %89 : vector<1x1x49xi32> to vector<1x49xi32>
    %91 = vector.shape_cast %90 : vector<1x49xi32> to vector<1x49xi32>
    %92 = vector.broadcast %91 : vector<1x49xi32> to vector<16x49xi32>
    %93 = arith.cmpf ogt, %88, %84 : vector<16x49xf32>
    %94 = arith.select %93, %88, %84 : vector<16x49xi1>, vector<16x49xf32>
    %95 = arith.select %93, %92, %85 : vector<16x49xi1>, vector<16x49xi32>
    %c0_84 = arith.constant 0 : index
    %c0_85 = arith.constant 0 : index
    %96 = vector.load %arg21[%c0_84, %c0_85] : memref<16x49xf32, #tpu.memory_space<vmem>>, vector<16x49xf32>
    tpu.vector_store %arg21[%c0_84, %c0_85], %94 {strides = array<i32>} : memref<16x49xf32, #tpu.memory_space<vmem>>, vector<16x49xf32>,
    %c0_86 = arith.constant 0 : index
    %c0_87 = arith.constant 0 : index
    %c0_88 = arith.constant 0 : index
    %97 = vector.load %arg4[%c0_86, %c0_87, %c0_88] : memref<4x32x16xf32, #tpu.memory_space<vmem>>, vector<1x32x16xf32>
    %98 = vector.shape_cast %97 : vector<1x32x16xf32> to vector<32x16xf32>
    %c0_89 = arith.constant 0 : index
    %c0_90 = arith.constant 0 : index
    %99 = vector.load %arg21[%c0_89, %c0_90] : memref<16x49xf32, #tpu.memory_space<vmem>>, vector<16x41xf32>
    %cst_91 = arith.constant dense<0.000000e+00> : vector<32x41xf32>
    %100 = tpu.matmul %98, %99, %cst_91 {dimension_numbers = #tpu.dot_dimension_numbers<[1], [0], [0], [1], [0, 0, 1, 1], [], []>} : vector<32x16xf32>, vector<16x41xf32>, vector<32x41xf32> -> vector<32x41xf32>
    %c1_92 = arith.constant 1 : index
    %c0_93 = arith.constant 0 : index
    %c0_94 = arith.constant 0 : index
    %101 = vector.load %arg4[%c1_92, %c0_93, %c0_94] : memref<4x32x16xf32, #tpu.memory_space<vmem>>, vector<1x32x16xf32>
    %102 = vector.shape_cast %101 : vector<1x32x16xf32> to vector<32x16xf32>
    %c0_95 = arith.constant 0 : index
    %c1_96 = arith.constant 1 : index
    %103 = vector.load %arg21[%c0_95, %c1_96] : memref<16x49xf32, #tpu.memory_space<vmem>>, vector<16x41xf32>
    %cst_97 = arith.constant dense<0.000000e+00> : vector<32x41xf32>
    %104 = tpu.matmul %102, %103, %cst_97 {dimension_numbers = #tpu.dot_dimension_numbers<[1], [0], [0], [1], [0, 0, 1, 1], [], []>} : vector<32x16xf32>, vector<16x41xf32>, vector<32x41xf32> -> vector<32x41xf32>
    %105 = arith.addf %100, %104 : vector<32x41xf32>
    %c2_98 = arith.constant 2 : index
    %c0_99 = arith.constant 0 : index
    %c0_100 = arith.constant 0 : index
    %106 = vector.load %arg4[%c2_98, %c0_99, %c0_100] : memref<4x32x16xf32, #tpu.memory_space<vmem>>, vector<1x32x16xf32>
    %107 = vector.shape_cast %106 : vector<1x32x16xf32> to vector<32x16xf32>
    %c0_101 = arith.constant 0 : index
    %c7_102 = arith.constant 7 : index
    %108 = vector.load %arg21[%c0_101, %c7_102] : memref<16x49xf32, #tpu.memory_space<vmem>>, vector<16x41xf32>
    %cst_103 = arith.constant dense<0.000000e+00> : vector<32x41xf32>
    %109 = tpu.matmul %107, %108, %cst_103 {dimension_numbers = #tpu.dot_dimension_numbers<[1], [0], [0], [1], [0, 0, 1, 1], [], []>} : vector<32x16xf32>, vector<16x41xf32>, vector<32x41xf32> -> vector<32x41xf32>
    %110 = arith.addf %105, %109 : vector<32x41xf32>
    %c3_104 = arith.constant 3 : index
    %c0_105 = arith.constant 0 : index
    %c0_106 = arith.constant 0 : index
    %111 = vector.load %arg4[%c3_104, %c0_105, %c0_106] : memref<4x32x16xf32, #tpu.memory_space<vmem>>, vector<1x32x16xf32>
    %112 = vector.shape_cast %111 : vector<1x32x16xf32> to vector<32x16xf32>
    %c0_107 = arith.constant 0 : index
    %c8_108 = arith.constant 8 : index
    %113 = vector.load %arg21[%c0_107, %c8_108] : memref<16x49xf32, #tpu.memory_space<vmem>>, vector<16x41xf32>
    %cst_109 = arith.constant dense<0.000000e+00> : vector<32x41xf32>
    %114 = tpu.matmul %112, %113, %cst_109 {dimension_numbers = #tpu.dot_dimension_numbers<[1], [0], [0], [1], [0, 0, 1, 1], [], []>} : vector<32x16xf32>, vector<16x41xf32>, vector<32x41xf32> -> vector<32x41xf32>
    %115 = arith.addf %110, %114 : vector<32x41xf32>
    %c0_110 = arith.constant 0 : index
    %c0_111 = arith.constant 0 : index
    %116 = vector.load %arg5[%c0_110, %c0_111] : memref<32x1xf32, #tpu.memory_space<vmem>>, vector<32x1xf32>
    %117 = vector.broadcast %116 : vector<32x1xf32> to vector<32x41xf32>
    %118 = arith.addf %115, %117 : vector<32x41xf32>
    %cst_112 = arith.constant 0.000000e+00 : f32
    %119 = vector.broadcast %cst_112 : f32 to vector<32x41xf32>
    %120 = arith.maximumf %118, %119 : vector<32x41xf32>
    %c0_113 = arith.constant 0 : index
    %c0_114 = arith.constant 0 : index
    %121 = vector.load %arg22[%c0_113, %c0_114] : memref<32x41xf32, #tpu.memory_space<vmem>>, vector<32x41xf32>
    tpu.vector_store %arg22[%c0_113, %c0_114], %120 {strides = array<i32>} : memref<32x41xf32, #tpu.memory_space<vmem>>, vector<32x41xf32>,
    %c0_115 = arith.constant 0 : index
    %c0_116 = arith.constant 0 : index
    %122 = vector.load %arg22[%c0_115, %c0_116] : memref<32x41xf32, #tpu.memory_space<vmem>>, vector<32x33xf32>
    %c0_117 = arith.constant 0 : index
    %c0_118 = arith.constant 0 : index
    %123 = vector.load %arg12[%c0_117, %c0_118] : memref<33x9xf32, #tpu.memory_space<vmem>>, vector<33x9xf32>
    %cst_119 = arith.constant dense<0.000000e+00> : vector<32x9xf32>
    %124 = tpu.matmul %122, %123, %cst_119 {dimension_numbers = #tpu.dot_dimension_numbers<[1], [0], [0], [1], [0, 0, 1, 1], [], []>} : vector<32x33xf32>, vector<33x9xf32>, vector<32x9xf32> -> vector<32x9xf32>
    %c0_120 = arith.constant 0 : index
    %c0_121 = arith.constant 0 : index
    %c0_122 = arith.constant 0 : index
    %125 = vector.load %arg13[%c0_120, %c0_121, %c0_122] : memref<4x1x9xi32, #tpu.memory_space<vmem>>, vector<1x1x9xi32>
    %126 = vector.shape_cast %125 : vector<1x1x9xi32> to vector<1x9xi32>
    %127 = vector.shape_cast %126 : vector<1x9xi32> to vector<1x9xi32>
    %128 = vector.broadcast %127 : vector<1x9xi32> to vector<32x9xi32>
    %c0_123 = arith.constant 0 : index
    %c1_124 = arith.constant 1 : index
    %129 = vector.load %arg22[%c0_123, %c1_124] : memref<32x41xf32, #tpu.memory_space<vmem>>, vector<32x33xf32>
    %c0_125 = arith.constant 0 : index
    %c0_126 = arith.constant 0 : index
    %130 = vector.load %arg12[%c0_125, %c0_126] : memref<33x9xf32, #tpu.memory_space<vmem>>, vector<33x9xf32>
    %cst_127 = arith.constant dense<0.000000e+00> : vector<32x9xf32>
    %131 = tpu.matmul %129, %130, %cst_127 {dimension_numbers = #tpu.dot_dimension_numbers<[1], [0], [0], [1], [0, 0, 1, 1], [], []>} : vector<32x33xf32>, vector<33x9xf32>, vector<32x9xf32> -> vector<32x9xf32>
    %c1_128 = arith.constant 1 : index
    %c0_129 = arith.constant 0 : index
    %c0_130 = arith.constant 0 : index
    %132 = vector.load %arg13[%c1_128, %c0_129, %c0_130] : memref<4x1x9xi32, #tpu.memory_space<vmem>>, vector<1x1x9xi32>
    %133 = vector.shape_cast %132 : vector<1x1x9xi32> to vector<1x9xi32>
    %134 = vector.shape_cast %133 : vector<1x9xi32> to vector<1x9xi32>
    %135 = vector.broadcast %134 : vector<1x9xi32> to vector<32x9xi32>
    %136 = arith.cmpf ogt, %131, %124 : vector<32x9xf32>
    %137 = arith.select %136, %131, %124 : vector<32x9xi1>, vector<32x9xf32>
    %138 = arith.select %136, %135, %128 : vector<32x9xi1>, vector<32x9xi32>
    %c0_131 = arith.constant 0 : index
    %c7_132 = arith.constant 7 : index
    %139 = vector.load %arg22[%c0_131, %c7_132] : memref<32x41xf32, #tpu.memory_space<vmem>>, vector<32x33xf32>
    %c0_133 = arith.constant 0 : index
    %c0_134 = arith.constant 0 : index
    %140 = vector.load %arg12[%c0_133, %c0_134] : memref<33x9xf32, #tpu.memory_space<vmem>>, vector<33x9xf32>
    %cst_135 = arith.constant dense<0.000000e+00> : vector<32x9xf32>
    %141 = tpu.matmul %139, %140, %cst_135 {dimension_numbers = #tpu.dot_dimension_numbers<[1], [0], [0], [1], [0, 0, 1, 1], [], []>} : vector<32x33xf32>, vector<33x9xf32>, vector<32x9xf32> -> vector<32x9xf32>
    %c2_136 = arith.constant 2 : index
    %c0_137 = arith.constant 0 : index
    %c0_138 = arith.constant 0 : index
    %142 = vector.load %arg13[%c2_136, %c0_137, %c0_138] : memref<4x1x9xi32, #tpu.memory_space<vmem>>, vector<1x1x9xi32>
    %143 = vector.shape_cast %142 : vector<1x1x9xi32> to vector<1x9xi32>
    %144 = vector.shape_cast %143 : vector<1x9xi32> to vector<1x9xi32>
    %145 = vector.broadcast %144 : vector<1x9xi32> to vector<32x9xi32>
    %146 = arith.cmpf ogt, %141, %137 : vector<32x9xf32>
    %147 = arith.select %146, %141, %137 : vector<32x9xi1>, vector<32x9xf32>
    %148 = arith.select %146, %145, %138 : vector<32x9xi1>, vector<32x9xi32>
    %c0_139 = arith.constant 0 : index
    %c8_140 = arith.constant 8 : index
    %149 = vector.load %arg22[%c0_139, %c8_140] : memref<32x41xf32, #tpu.memory_space<vmem>>, vector<32x33xf32>
    %c0_141 = arith.constant 0 : index
    %c0_142 = arith.constant 0 : index
    %150 = vector.load %arg12[%c0_141, %c0_142] : memref<33x9xf32, #tpu.memory_space<vmem>>, vector<33x9xf32>
    %cst_143 = arith.constant dense<0.000000e+00> : vector<32x9xf32>
    %151 = tpu.matmul %149, %150, %cst_143 {dimension_numbers = #tpu.dot_dimension_numbers<[1], [0], [0], [1], [0, 0, 1, 1], [], []>} : vector<32x33xf32>, vector<33x9xf32>, vector<32x9xf32> -> vector<32x9xf32>
    %c3_144 = arith.constant 3 : index
    %c0_145 = arith.constant 0 : index
    %c0_146 = arith.constant 0 : index
    %152 = vector.load %arg13[%c3_144, %c0_145, %c0_146] : memref<4x1x9xi32, #tpu.memory_space<vmem>>, vector<1x1x9xi32>
    %153 = vector.shape_cast %152 : vector<1x1x9xi32> to vector<1x9xi32>
    %154 = vector.shape_cast %153 : vector<1x9xi32> to vector<1x9xi32>
    %155 = vector.broadcast %154 : vector<1x9xi32> to vector<32x9xi32>
    %156 = arith.cmpf ogt, %151, %147 : vector<32x9xf32>
    %157 = arith.select %156, %151, %147 : vector<32x9xi1>, vector<32x9xf32>
    %158 = arith.select %156, %155, %148 : vector<32x9xi1>, vector<32x9xi32>
    %c0_147 = arith.constant 0 : index
    %c0_148 = arith.constant 0 : index
    %c0_149 = arith.constant 0 : index
    %159 = vector.load %arg18[%c0_147, %c0_148, %c0_149] : memref<1x32x9xf32, #tpu.memory_space<vmem>>, vector<1x32x9xf32>
    %160 = vector.shape_cast %159 : vector<1x32x9xf32> to vector<32x9xf32>
    %161 = vector.shape_cast %157 : vector<32x9xf32> to vector<1x32x9xf32>
    tpu.vector_store %arg18[%c0_147, %c0_148, %c0_149], %161 {strides = array<i32>} : memref<1x32x9xf32, #tpu.memory_space<vmem>>, vector<1x32x9xf32>,
    %cst_150 = arith.constant 0.000000e+00 : f32
    %162 = vector.broadcast %cst_150 : f32 to vector<32x9xf32>
    %163 = arith.maximumf %157, %162 : vector<32x9xf32>
    %c0_151 = arith.constant 0 : index
    %c0_152 = arith.constant 0 : index
    %c0_153 = arith.constant 0 : index
    %164 = vector.load %arg13[%c0_151, %c0_152, %c0_153] : memref<4x1x9xi32, #tpu.memory_space<vmem>>, vector<1x1x9xi32>
    %165 = vector.shape_cast %164 : vector<1x1x9xi32> to vector<1x9xi32>
    %166 = vector.broadcast %165 : vector<1x9xi32> to vector<32x9xi32>
    %167 = arith.cmpi eq, %158, %166 : vector<32x9xi32>
    %cst_154 = arith.constant 0.000000e+00 : f32
    %168 = vector.broadcast %cst_154 : f32 to vector<32x9xf32>
    %169 = arith.select %167, %163, %168 : vector<32x9xi1>, vector<32x9xf32>
    %c0_155 = arith.constant 0 : index
    %c0_156 = arith.constant 0 : index
    %c0_157 = arith.constant 0 : index
    %170 = vector.load %arg14[%c0_155, %c0_156, %c0_157] : memref<4x9x64xf32, #tpu.memory_space<vmem>>, vector<1x9x64xf32>
    %171 = vector.shape_cast %170 : vector<1x9x64xf32> to vector<9x64xf32>
    %cst_158 = arith.constant dense<0.000000e+00> : vector<32x64xf32>
    %172 = tpu.matmul %169, %171, %cst_158 {dimension_numbers = #tpu.dot_dimension_numbers<[1], [0], [0], [1], [0, 0, 1, 1], [], []>} : vector<32x9xf32>, vector<9x64xf32>, vector<32x64xf32> -> vector<32x64xf32>
    %c1_159 = arith.constant 1 : index
    %c0_160 = arith.constant 0 : index
    %c0_161 = arith.constant 0 : index
    %173 = vector.load %arg13[%c1_159, %c0_160, %c0_161] : memref<4x1x9xi32, #tpu.memory_space<vmem>>, vector<1x1x9xi32>
    %174 = vector.shape_cast %173 : vector<1x1x9xi32> to vector<1x9xi32>
    %175 = vector.broadcast %174 : vector<1x9xi32> to vector<32x9xi32>
    %176 = arith.cmpi eq, %158, %175 : vector<32x9xi32>
    %cst_162 = arith.constant 0.000000e+00 : f32
    %177 = vector.broadcast %cst_162 : f32 to vector<32x9xf32>
    %178 = arith.select %176, %163, %177 : vector<32x9xi1>, vector<32x9xf32>
    %c1_163 = arith.constant 1 : index
    %c0_164 = arith.constant 0 : index
    %c0_165 = arith.constant 0 : index
    %179 = vector.load %arg14[%c1_163, %c0_164, %c0_165] : memref<4x9x64xf32, #tpu.memory_space<vmem>>, vector<1x9x64xf32>
    %180 = vector.shape_cast %179 : vector<1x9x64xf32> to vector<9x64xf32>
    %cst_166 = arith.constant dense<0.000000e+00> : vector<32x64xf32>
    %181 = tpu.matmul %178, %180, %cst_166 {dimension_numbers = #tpu.dot_dimension_numbers<[1], [0], [0], [1], [0, 0, 1, 1], [], []>} : vector<32x9xf32>, vector<9x64xf32>, vector<32x64xf32> -> vector<32x64xf32>
    %182 = arith.addf %172, %181 : vector<32x64xf32>
    %c2_167 = arith.constant 2 : index
    %c0_168 = arith.constant 0 : index
    %c0_169 = arith.constant 0 : index
    %183 = vector.load %arg13[%c2_167, %c0_168, %c0_169] : memref<4x1x9xi32, #tpu.memory_space<vmem>>, vector<1x1x9xi32>
    %184 = vector.shape_cast %183 : vector<1x1x9xi32> to vector<1x9xi32>
    %185 = vector.broadcast %184 : vector<1x9xi32> to vector<32x9xi32>
    %186 = arith.cmpi eq, %158, %185 : vector<32x9xi32>
    %cst_170 = arith.constant 0.000000e+00 : f32
    %187 = vector.broadcast %cst_170 : f32 to vector<32x9xf32>
    %188 = arith.select %186, %163, %187 : vector<32x9xi1>, vector<32x9xf32>
    %c2_171 = arith.constant 2 : index
    %c0_172 = arith.constant 0 : index
    %c0_173 = arith.constant 0 : index
    %189 = vector.load %arg14[%c2_171, %c0_172, %c0_173] : memref<4x9x64xf32, #tpu.memory_space<vmem>>, vector<1x9x64xf32>
    %190 = vector.shape_cast %189 : vector<1x9x64xf32> to vector<9x64xf32>
    %cst_174 = arith.constant dense<0.000000e+00> : vector<32x64xf32>
    %191 = tpu.matmul %188, %190, %cst_174 {dimension_numbers = #tpu.dot_dimension_numbers<[1], [0], [0], [1], [0, 0, 1, 1], [], []>} : vector<32x9xf32>, vector<9x64xf32>, vector<32x64xf32> -> vector<32x64xf32>
    %192 = arith.addf %182, %191 : vector<32x64xf32>
    %c3_175 = arith.constant 3 : index
    %c0_176 = arith.constant 0 : index
    %c0_177 = arith.constant 0 : index
    %193 = vector.load %arg13[%c3_175, %c0_176, %c0_177] : memref<4x1x9xi32, #tpu.memory_space<vmem>>, vector<1x1x9xi32>
    %194 = vector.shape_cast %193 : vector<1x1x9xi32> to vector<1x9xi32>
    %195 = vector.broadcast %194 : vector<1x9xi32> to vector<32x9xi32>
    %196 = arith.cmpi eq, %158, %195 : vector<32x9xi32>
    %cst_178 = arith.constant 0.000000e+00 : f32
    %197 = vector.broadcast %cst_178 : f32 to vector<32x9xf32>
    %198 = arith.select %196, %163, %197 : vector<32x9xi1>, vector<32x9xf32>
    %c3_179 = arith.constant 3 : index
    %c0_180 = arith.constant 0 : index
    %c0_181 = arith.constant 0 : index
    %199 = vector.load %arg14[%c3_179, %c0_180, %c0_181] : memref<4x9x64xf32, #tpu.memory_space<vmem>>, vector<1x9x64xf32>
    %200 = vector.shape_cast %199 : vector<1x9x64xf32> to vector<9x64xf32>
    %cst_182 = arith.constant dense<0.000000e+00> : vector<32x64xf32>
    %201 = tpu.matmul %198, %200, %cst_182 {dimension_numbers = #tpu.dot_dimension_numbers<[1], [0], [0], [1], [0, 0, 1, 1], [], []>} : vector<32x9xf32>, vector<9x64xf32>, vector<32x64xf32> -> vector<32x64xf32>
    %202 = arith.addf %192, %201 : vector<32x64xf32>
    %c0_183 = arith.constant 0 : index
    %c0_184 = arith.constant 0 : index
    %203 = vector.load %arg23[%c0_183, %c0_184] : memref<32x64xf32, #tpu.memory_space<vmem>>, vector<32x64xf32>
    tpu.vector_store %arg23[%c0_183, %c0_184], %202 {strides = array<i32>} : memref<32x64xf32, #tpu.memory_space<vmem>>, vector<32x64xf32>,
    %c0_185 = arith.constant 0 : index
    %c0_186 = arith.constant 0 : index
    %c0_187 = arith.constant 0 : index
    %204 = vector.load %arg6[%c0_185, %c0_186, %c0_187] : memref<4x16x32xf32, #tpu.memory_space<vmem>>, vector<1x16x32xf32>
    %205 = vector.shape_cast %204 : vector<1x16x32xf32> to vector<16x32xf32>
    %c0_188 = arith.constant 0 : index
    %c0_189 = arith.constant 0 : index
    %206 = vector.load %arg23[%c0_188, %c0_189] : memref<32x64xf32, #tpu.memory_space<vmem>>, vector<32x55xf32>
    %cst_190 = arith.constant dense<0.000000e+00> : vector<16x55xf32>
    %207 = tpu.matmul %205, %206, %cst_190 {dimension_numbers = #tpu.dot_dimension_numbers<[1], [0], [0], [1], [0, 0, 1, 1], [], []>} : vector<16x32xf32>, vector<32x55xf32>, vector<16x55xf32> -> vector<16x55xf32>
    %c1_191 = arith.constant 1 : index
    %c0_192 = arith.constant 0 : index
    %c0_193 = arith.constant 0 : index
    %208 = vector.load %arg6[%c1_191, %c0_192, %c0_193] : memref<4x16x32xf32, #tpu.memory_space<vmem>>, vector<1x16x32xf32>
    %209 = vector.shape_cast %208 : vector<1x16x32xf32> to vector<16x32xf32>
    %c0_194 = arith.constant 0 : index
    %c1_195 = arith.constant 1 : index
    %210 = vector.load %arg23[%c0_194, %c1_195] : memref<32x64xf32, #tpu.memory_space<vmem>>, vector<32x55xf32>
    %cst_196 = arith.constant dense<0.000000e+00> : vector<16x55xf32>
    %211 = tpu.matmul %209, %210, %cst_196 {dimension_numbers = #tpu.dot_dimension_numbers<[1], [0], [0], [1], [0, 0, 1, 1], [], []>} : vector<16x32xf32>, vector<32x55xf32>, vector<16x55xf32> -> vector<16x55xf32>
    %212 = arith.addf %207, %211 : vector<16x55xf32>
    %c2_197 = arith.constant 2 : index
    %c0_198 = arith.constant 0 : index
    %c0_199 = arith.constant 0 : index
    %213 = vector.load %arg6[%c2_197, %c0_198, %c0_199] : memref<4x16x32xf32, #tpu.memory_space<vmem>>, vector<1x16x32xf32>
    %214 = vector.shape_cast %213 : vector<1x16x32xf32> to vector<16x32xf32>
    %c0_200 = arith.constant 0 : index
    %c8_201 = arith.constant 8 : index
    %215 = vector.load %arg23[%c0_200, %c8_201] : memref<32x64xf32, #tpu.memory_space<vmem>>, vector<32x55xf32>
    %cst_202 = arith.constant dense<0.000000e+00> : vector<16x55xf32>
    %216 = tpu.matmul %214, %215, %cst_202 {dimension_numbers = #tpu.dot_dimension_numbers<[1], [0], [0], [1], [0, 0, 1, 1], [], []>} : vector<16x32xf32>, vector<32x55xf32>, vector<16x55xf32> -> vector<16x55xf32>
    %217 = arith.addf %212, %216 : vector<16x55xf32>
    %c3_203 = arith.constant 3 : index
    %c0_204 = arith.constant 0 : index
    %c0_205 = arith.constant 0 : index
    %218 = vector.load %arg6[%c3_203, %c0_204, %c0_205] : memref<4x16x32xf32, #tpu.memory_space<vmem>>, vector<1x16x32xf32>
    %219 = vector.shape_cast %218 : vector<1x16x32xf32> to vector<16x32xf32>
    %c0_206 = arith.constant 0 : index
    %c9 = arith.constant 9 : index
    %220 = vector.load %arg23[%c0_206, %c9] : memref<32x64xf32, #tpu.memory_space<vmem>>, vector<32x55xf32>
    %cst_207 = arith.constant dense<0.000000e+00> : vector<16x55xf32>
    %221 = tpu.matmul %219, %220, %cst_207 {dimension_numbers = #tpu.dot_dimension_numbers<[1], [0], [0], [1], [0, 0, 1, 1], [], []>} : vector<16x32xf32>, vector<32x55xf32>, vector<16x55xf32> -> vector<16x55xf32>
    %222 = arith.addf %217, %221 : vector<16x55xf32>
    %c0_208 = arith.constant 0 : index
    %c0_209 = arith.constant 0 : index
    %223 = vector.load %arg7[%c0_208, %c0_209] : memref<16x1xf32, #tpu.memory_space<vmem>>, vector<16x1xf32>
    %224 = vector.broadcast %223 : vector<16x1xf32> to vector<16x55xf32>
    %225 = arith.addf %222, %224 : vector<16x55xf32>
    %c0_210 = arith.constant 0 : index
    %c0_211 = arith.constant 0 : index
    %226 = vector.load %arg15[%c0_210, %c0_211] : memref<55x49xf32, #tpu.memory_space<vmem>>, vector<55x49xf32>
    %cst_212 = arith.constant dense<0.000000e+00> : vector<16x49xf32>
    %227 = tpu.matmul %225, %226, %cst_212 {dimension_numbers = #tpu.dot_dimension_numbers<[1], [0], [0], [1], [0, 0, 1, 1], [], []>} : vector<16x55xf32>, vector<55x49xf32>, vector<16x49xf32> -> vector<16x49xf32>
    %cst_213 = arith.constant 0.000000e+00 : f32
    %228 = vector.broadcast %cst_213 : f32 to vector<16x49xf32>
    %229 = arith.maximumf %227, %228 : vector<16x49xf32>
    %c0_214 = arith.constant 0 : index
    %c0_215 = arith.constant 0 : index
    %c0_216 = arith.constant 0 : index
    %230 = vector.load %arg11[%c0_214, %c0_215, %c0_216] : memref<4x1x49xi32, #tpu.memory_space<vmem>>, vector<1x1x49xi32>
    %231 = vector.shape_cast %230 : vector<1x1x49xi32> to vector<1x49xi32>
    %232 = vector.broadcast %231 : vector<1x49xi32> to vector<16x49xi32>
    %233 = arith.cmpi eq, %95, %232 : vector<16x49xi32>
    %cst_217 = arith.constant 0.000000e+00 : f32
    %234 = vector.broadcast %cst_217 : f32 to vector<16x49xf32>
    %235 = arith.select %233, %229, %234 : vector<16x49xi1>, vector<16x49xf32>
    %c0_218 = arith.constant 0 : index
    %c0_219 = arith.constant 0 : index
    %c0_220 = arith.constant 0 : index
    %236 = vector.load %arg16[%c0_218, %c0_219, %c0_220] : memref<4x49x324xf32, #tpu.memory_space<vmem>>, vector<1x49x324xf32>
    %237 = vector.shape_cast %236 : vector<1x49x324xf32> to vector<49x324xf32>
    %cst_221 = arith.constant dense<0.000000e+00> : vector<16x324xf32>
    %238 = tpu.matmul %235, %237, %cst_221 {dimension_numbers = #tpu.dot_dimension_numbers<[1], [0], [0], [1], [0, 0, 1, 1], [], []>} : vector<16x49xf32>, vector<49x324xf32>, vector<16x324xf32> -> vector<16x324xf32>
    %c1_222 = arith.constant 1 : index
    %c0_223 = arith.constant 0 : index
    %c0_224 = arith.constant 0 : index
    %239 = vector.load %arg11[%c1_222, %c0_223, %c0_224] : memref<4x1x49xi32, #tpu.memory_space<vmem>>, vector<1x1x49xi32>
    %240 = vector.shape_cast %239 : vector<1x1x49xi32> to vector<1x49xi32>
    %241 = vector.broadcast %240 : vector<1x49xi32> to vector<16x49xi32>
    %242 = arith.cmpi eq, %95, %241 : vector<16x49xi32>
    %cst_225 = arith.constant 0.000000e+00 : f32
    %243 = vector.broadcast %cst_225 : f32 to vector<16x49xf32>
    %244 = arith.select %242, %229, %243 : vector<16x49xi1>, vector<16x49xf32>
    %c1_226 = arith.constant 1 : index
    %c0_227 = arith.constant 0 : index
    %c0_228 = arith.constant 0 : index
    %245 = vector.load %arg16[%c1_226, %c0_227, %c0_228] : memref<4x49x324xf32, #tpu.memory_space<vmem>>, vector<1x49x324xf32>
    %246 = vector.shape_cast %245 : vector<1x49x324xf32> to vector<49x324xf32>
    %cst_229 = arith.constant dense<0.000000e+00> : vector<16x324xf32>
    %247 = tpu.matmul %244, %246, %cst_229 {dimension_numbers = #tpu.dot_dimension_numbers<[1], [0], [0], [1], [0, 0, 1, 1], [], []>} : vector<16x49xf32>, vector<49x324xf32>, vector<16x324xf32> -> vector<16x324xf32>
    %248 = arith.addf %238, %247 : vector<16x324xf32>
    %c2_230 = arith.constant 2 : index
    %c0_231 = arith.constant 0 : index
    %c0_232 = arith.constant 0 : index
    %249 = vector.load %arg11[%c2_230, %c0_231, %c0_232] : memref<4x1x49xi32, #tpu.memory_space<vmem>>, vector<1x1x49xi32>
    %250 = vector.shape_cast %249 : vector<1x1x49xi32> to vector<1x49xi32>
    %251 = vector.broadcast %250 : vector<1x49xi32> to vector<16x49xi32>
    %252 = arith.cmpi eq, %95, %251 : vector<16x49xi32>
    %cst_233 = arith.constant 0.000000e+00 : f32
    %253 = vector.broadcast %cst_233 : f32 to vector<16x49xf32>
    %254 = arith.select %252, %229, %253 : vector<16x49xi1>, vector<16x49xf32>
    %c2_234 = arith.constant 2 : index
    %c0_235 = arith.constant 0 : index
    %c0_236 = arith.constant 0 : index
    %255 = vector.load %arg16[%c2_234, %c0_235, %c0_236] : memref<4x49x324xf32, #tpu.memory_space<vmem>>, vector<1x49x324xf32>
    %256 = vector.shape_cast %255 : vector<1x49x324xf32> to vector<49x324xf32>
    %cst_237 = arith.constant dense<0.000000e+00> : vector<16x324xf32>
    %257 = tpu.matmul %254, %256, %cst_237 {dimension_numbers = #tpu.dot_dimension_numbers<[1], [0], [0], [1], [0, 0, 1, 1], [], []>} : vector<16x49xf32>, vector<49x324xf32>, vector<16x324xf32> -> vector<16x324xf32>
    %258 = arith.addf %248, %257 : vector<16x324xf32>
    %c3_238 = arith.constant 3 : index
    %c0_239 = arith.constant 0 : index
    %c0_240 = arith.constant 0 : index
    %259 = vector.load %arg11[%c3_238, %c0_239, %c0_240] : memref<4x1x49xi32, #tpu.memory_space<vmem>>, vector<1x1x49xi32>
    %260 = vector.shape_cast %259 : vector<1x1x49xi32> to vector<1x49xi32>
    %261 = vector.broadcast %260 : vector<1x49xi32> to vector<16x49xi32>
    %262 = arith.cmpi eq, %95, %261 : vector<16x49xi32>
    %cst_241 = arith.constant 0.000000e+00 : f32
    %263 = vector.broadcast %cst_241 : f32 to vector<16x49xf32>
    %264 = arith.select %262, %229, %263 : vector<16x49xi1>, vector<16x49xf32>
    %c3_242 = arith.constant 3 : index
    %c0_243 = arith.constant 0 : index
    %c0_244 = arith.constant 0 : index
    %265 = vector.load %arg16[%c3_242, %c0_243, %c0_244] : memref<4x49x324xf32, #tpu.memory_space<vmem>>, vector<1x49x324xf32>
    %266 = vector.shape_cast %265 : vector<1x49x324xf32> to vector<49x324xf32>
    %cst_245 = arith.constant dense<0.000000e+00> : vector<16x324xf32>
    %267 = tpu.matmul %264, %266, %cst_245 {dimension_numbers = #tpu.dot_dimension_numbers<[1], [0], [0], [1], [0, 0, 1, 1], [], []>} : vector<16x49xf32>, vector<49x324xf32>, vector<16x324xf32> -> vector<16x324xf32>
    %268 = arith.addf %258, %267 : vector<16x324xf32>
    %c0_246 = arith.constant 0 : index
    %c0_247 = arith.constant 0 : index
    %269 = vector.load %arg24[%c0_246, %c0_247] : memref<16x324xf32, #tpu.memory_space<vmem>>, vector<16x324xf32>
    tpu.vector_store %arg24[%c0_246, %c0_247], %268 {strides = array<i32>} : memref<16x324xf32, #tpu.memory_space<vmem>>, vector<16x324xf32>,
    %c0_248 = arith.constant 0 : index
    %c0_249 = arith.constant 0 : index
    %c0_250 = arith.constant 0 : index
    %270 = vector.load %arg8[%c0_248, %c0_249, %c0_250] : memref<9x4x16xf32, #tpu.memory_space<vmem>>, vector<1x4x16xf32>
    %271 = vector.shape_cast %270 : vector<1x4x16xf32> to vector<4x16xf32>
    %c0_251 = arith.constant 0 : index
    %c0_252 = arith.constant 0 : index
    %272 = vector.load %arg24[%c0_251, %c0_252] : memref<16x324xf32, #tpu.memory_space<vmem>>, vector<16x286xf32>
    %cst_253 = arith.constant dense<0.000000e+00> : vector<4x286xf32>
    %273 = tpu.matmul %271, %272, %cst_253 {dimension_numbers = #tpu.dot_dimension_numbers<[1], [0], [0], [1], [0, 0, 1, 1], [], []>} : vector<4x16xf32>, vector<16x286xf32>, vector<4x286xf32> -> vector<4x286xf32>
    %c1_254 = arith.constant 1 : index
    %c0_255 = arith.constant 0 : index
    %c0_256 = arith.constant 0 : index
    %274 = vector.load %arg8[%c1_254, %c0_255, %c0_256] : memref<9x4x16xf32, #tpu.memory_space<vmem>>, vector<1x4x16xf32>
    %275 = vector.shape_cast %274 : vector<1x4x16xf32> to vector<4x16xf32>
    %c0_257 = arith.constant 0 : index
    %c1_258 = arith.constant 1 : index
    %276 = vector.load %arg24[%c0_257, %c1_258] : memref<16x324xf32, #tpu.memory_space<vmem>>, vector<16x286xf32>
    %cst_259 = arith.constant dense<0.000000e+00> : vector<4x286xf32>
    %277 = tpu.matmul %275, %276, %cst_259 {dimension_numbers = #tpu.dot_dimension_numbers<[1], [0], [0], [1], [0, 0, 1, 1], [], []>} : vector<4x16xf32>, vector<16x286xf32>, vector<4x286xf32> -> vector<4x286xf32>
    %278 = arith.addf %273, %277 : vector<4x286xf32>
    %c2_260 = arith.constant 2 : index
    %c0_261 = arith.constant 0 : index
    %c0_262 = arith.constant 0 : index
    %279 = vector.load %arg8[%c2_260, %c0_261, %c0_262] : memref<9x4x16xf32, #tpu.memory_space<vmem>>, vector<1x4x16xf32>
    %280 = vector.shape_cast %279 : vector<1x4x16xf32> to vector<4x16xf32>
    %c0_263 = arith.constant 0 : index
    %c2_264 = arith.constant 2 : index
    %281 = vector.load %arg24[%c0_263, %c2_264] : memref<16x324xf32, #tpu.memory_space<vmem>>, vector<16x286xf32>
    %cst_265 = arith.constant dense<0.000000e+00> : vector<4x286xf32>
    %282 = tpu.matmul %280, %281, %cst_265 {dimension_numbers = #tpu.dot_dimension_numbers<[1], [0], [0], [1], [0, 0, 1, 1], [], []>} : vector<4x16xf32>, vector<16x286xf32>, vector<4x286xf32> -> vector<4x286xf32>
    %283 = arith.addf %278, %282 : vector<4x286xf32>
    %c3_266 = arith.constant 3 : index
    %c0_267 = arith.constant 0 : index
    %c0_268 = arith.constant 0 : index
    %284 = vector.load %arg8[%c3_266, %c0_267, %c0_268] : memref<9x4x16xf32, #tpu.memory_space<vmem>>, vector<1x4x16xf32>
    %285 = vector.shape_cast %284 : vector<1x4x16xf32> to vector<4x16xf32>
    %c0_269 = arith.constant 0 : index
    %c18_270 = arith.constant 18 : index
    %286 = vector.load %arg24[%c0_269, %c18_270] : memref<16x324xf32, #tpu.memory_space<vmem>>, vector<16x286xf32>
    %cst_271 = arith.constant dense<0.000000e+00> : vector<4x286xf32>
    %287 = tpu.matmul %285, %286, %cst_271 {dimension_numbers = #tpu.dot_dimension_numbers<[1], [0], [0], [1], [0, 0, 1, 1], [], []>} : vector<4x16xf32>, vector<16x286xf32>, vector<4x286xf32> -> vector<4x286xf32>
    %288 = arith.addf %283, %287 : vector<4x286xf32>
    %c4_272 = arith.constant 4 : index
    %c0_273 = arith.constant 0 : index
    %c0_274 = arith.constant 0 : index
    %289 = vector.load %arg8[%c4_272, %c0_273, %c0_274] : memref<9x4x16xf32, #tpu.memory_space<vmem>>, vector<1x4x16xf32>
    %290 = vector.shape_cast %289 : vector<1x4x16xf32> to vector<4x16xf32>
    %c0_275 = arith.constant 0 : index
    %c19 = arith.constant 19 : index
    %291 = vector.load %arg24[%c0_275, %c19] : memref<16x324xf32, #tpu.memory_space<vmem>>, vector<16x286xf32>
    %cst_276 = arith.constant dense<0.000000e+00> : vector<4x286xf32>
    %292 = tpu.matmul %290, %291, %cst_276 {dimension_numbers = #tpu.dot_dimension_numbers<[1], [0], [0], [1], [0, 0, 1, 1], [], []>} : vector<4x16xf32>, vector<16x286xf32>, vector<4x286xf32> -> vector<4x286xf32>
    %293 = arith.addf %288, %292 : vector<4x286xf32>
    %c5_277 = arith.constant 5 : index
    %c0_278 = arith.constant 0 : index
    %c0_279 = arith.constant 0 : index
    %294 = vector.load %arg8[%c5_277, %c0_278, %c0_279] : memref<9x4x16xf32, #tpu.memory_space<vmem>>, vector<1x4x16xf32>
    %295 = vector.shape_cast %294 : vector<1x4x16xf32> to vector<4x16xf32>
    %c0_280 = arith.constant 0 : index
    %c20 = arith.constant 20 : index
    %296 = vector.load %arg24[%c0_280, %c20] : memref<16x324xf32, #tpu.memory_space<vmem>>, vector<16x286xf32>
    %cst_281 = arith.constant dense<0.000000e+00> : vector<4x286xf32>
    %297 = tpu.matmul %295, %296, %cst_281 {dimension_numbers = #tpu.dot_dimension_numbers<[1], [0], [0], [1], [0, 0, 1, 1], [], []>} : vector<4x16xf32>, vector<16x286xf32>, vector<4x286xf32> -> vector<4x286xf32>
    %298 = arith.addf %293, %297 : vector<4x286xf32>
    %c6_282 = arith.constant 6 : index
    %c0_283 = arith.constant 0 : index
    %c0_284 = arith.constant 0 : index
    %299 = vector.load %arg8[%c6_282, %c0_283, %c0_284] : memref<9x4x16xf32, #tpu.memory_space<vmem>>, vector<1x4x16xf32>
    %300 = vector.shape_cast %299 : vector<1x4x16xf32> to vector<4x16xf32>
    %c0_285 = arith.constant 0 : index
    %c36 = arith.constant 36 : index
    %301 = vector.load %arg24[%c0_285, %c36] : memref<16x324xf32, #tpu.memory_space<vmem>>, vector<16x286xf32>
    %cst_286 = arith.constant dense<0.000000e+00> : vector<4x286xf32>
    %302 = tpu.matmul %300, %301, %cst_286 {dimension_numbers = #tpu.dot_dimension_numbers<[1], [0], [0], [1], [0, 0, 1, 1], [], []>} : vector<4x16xf32>, vector<16x286xf32>, vector<4x286xf32> -> vector<4x286xf32>
    %303 = arith.addf %298, %302 : vector<4x286xf32>
    %c7_287 = arith.constant 7 : index
    %c0_288 = arith.constant 0 : index
    %c0_289 = arith.constant 0 : index
    %304 = vector.load %arg8[%c7_287, %c0_288, %c0_289] : memref<9x4x16xf32, #tpu.memory_space<vmem>>, vector<1x4x16xf32>
    %305 = vector.shape_cast %304 : vector<1x4x16xf32> to vector<4x16xf32>
    %c0_290 = arith.constant 0 : index
    %c37 = arith.constant 37 : index
    %306 = vector.load %arg24[%c0_290, %c37] : memref<16x324xf32, #tpu.memory_space<vmem>>, vector<16x286xf32>
    %cst_291 = arith.constant dense<0.000000e+00> : vector<4x286xf32>
    %307 = tpu.matmul %305, %306, %cst_291 {dimension_numbers = #tpu.dot_dimension_numbers<[1], [0], [0], [1], [0, 0, 1, 1], [], []>} : vector<4x16xf32>, vector<16x286xf32>, vector<4x286xf32> -> vector<4x286xf32>
    %308 = arith.addf %303, %307 : vector<4x286xf32>
    %c8_292 = arith.constant 8 : index
    %c0_293 = arith.constant 0 : index
    %c0_294 = arith.constant 0 : index
    %309 = vector.load %arg8[%c8_292, %c0_293, %c0_294] : memref<9x4x16xf32, #tpu.memory_space<vmem>>, vector<1x4x16xf32>
    %310 = vector.shape_cast %309 : vector<1x4x16xf32> to vector<4x16xf32>
    %c0_295 = arith.constant 0 : index
    %c38 = arith.constant 38 : index
    %311 = vector.load %arg24[%c0_295, %c38] : memref<16x324xf32, #tpu.memory_space<vmem>>, vector<16x286xf32>
    %cst_296 = arith.constant dense<0.000000e+00> : vector<4x286xf32>
    %312 = tpu.matmul %310, %311, %cst_296 {dimension_numbers = #tpu.dot_dimension_numbers<[1], [0], [0], [1], [0, 0, 1, 1], [], []>} : vector<4x16xf32>, vector<16x286xf32>, vector<4x286xf32> -> vector<4x286xf32>
    %313 = arith.addf %308, %312 : vector<4x286xf32>
    %c0_297 = arith.constant 0 : index
    %c0_298 = arith.constant 0 : index
    %314 = vector.load %arg9[%c0_297, %c0_298] : memref<4x1xf32, #tpu.memory_space<vmem>>, vector<4x1xf32>
    %315 = vector.broadcast %314 : vector<4x1xf32> to vector<4x286xf32>
    %316 = arith.addf %313, %315 : vector<4x286xf32>
    %c0_299 = arith.constant 0 : index
    %c0_300 = arith.constant 0 : index
    %317 = vector.load %arg17[%c0_299, %c0_300] : memref<286x256xf32, #tpu.memory_space<vmem>>, vector<286x256xf32>
    %cst_301 = arith.constant dense<0.000000e+00> : vector<4x256xf32>
    %318 = tpu.matmul %316, %317, %cst_301 {dimension_numbers = #tpu.dot_dimension_numbers<[1], [0], [0], [1], [0, 0, 1, 1], [], []>} : vector<4x286xf32>, vector<286x256xf32>, vector<4x256xf32> -> vector<4x256xf32>
    %c0_302 = arith.constant 0 : index
    %c0_303 = arith.constant 0 : index
    %c0_304 = arith.constant 0 : index
    %319 = vector.load %arg19[%c0_302, %c0_303, %c0_304] : memref<1x4x256xf32, #tpu.memory_space<vmem>>, vector<1x4x256xf32>
    %320 = vector.shape_cast %319 : vector<1x4x256xf32> to vector<4x256xf32>
    %321 = vector.shape_cast %318 : vector<4x256xf32> to vector<1x4x256xf32>
    tpu.vector_store %arg19[%c0_302, %c0_303, %c0_304], %321 {strides = array<i32>} : memref<1x4x256xf32, #tpu.memory_space<vmem>>, vector<1x4x256xf32>,
    return
  }
  func.func @transform_0(%arg0: i32) -> (i32, i32, i32) {
    %c0_i32 = arith.constant 0 : i32
    %c0_i32_0 = arith.constant 0 : i32
    %c0_i32_1 = arith.constant 0 : i32
    return %arg0, %c0_i32, %c0_i32_0 : i32, i32, i32
  }
  func.func @transform_1(%arg0: i32) -> (i32, i32, i32) {
    %c0_i32 = arith.constant 0 : i32
    %c0_i32_0 = arith.constant 0 : i32
    %c0_i32_1 = arith.constant 0 : i32
    %c0_i32_2 = arith.constant 0 : i32
    return %c0_i32, %c0_i32_0, %c0_i32_1 : i32, i32, i32
  }
  func.func @transform_2(%arg0: i32) -> (i32, i32) {
    %c0_i32 = arith.constant 0 : i32
    %c0_i32_0 = arith.constant 0 : i32
    %c0_i32_1 = arith.constant 0 : i32
    return %c0_i32, %c0_i32_0 : i32, i32
  }
  func.func @transform_3(%arg0: i32) -> (i32, i32, i32) {
    %c0_i32 = arith.constant 0 : i32
    %c0_i32_0 = arith.constant 0 : i32
    %c0_i32_1 = arith.constant 0 : i32
    %c0_i32_2 = arith.constant 0 : i32
    return %c0_i32, %c0_i32_0, %c0_i32_1 : i32, i32, i32
  }
  func.func @transform_4(%arg0: i32) -> (i32, i32) {
    %c0_i32 = arith.constant 0 : i32
    %c0_i32_0 = arith.constant 0 : i32
    %c0_i32_1 = arith.constant 0 : i32
    return %c0_i32, %c0_i32_0 : i32, i32
  }
  func.func @transform_5(%arg0: i32) -> (i32, i32, i32) {
    %c0_i32 = arith.constant 0 : i32
    %c0_i32_0 = arith.constant 0 : i32
    %c0_i32_1 = arith.constant 0 : i32
    %c0_i32_2 = arith.constant 0 : i32
    return %c0_i32, %c0_i32_0, %c0_i32_1 : i32, i32, i32
  }
  func.func @transform_6(%arg0: i32) -> (i32, i32) {
    %c0_i32 = arith.constant 0 : i32
    %c0_i32_0 = arith.constant 0 : i32
    %c0_i32_1 = arith.constant 0 : i32
    return %c0_i32, %c0_i32_0 : i32, i32
  }
  func.func @transform_7(%arg0: i32) -> (i32, i32, i32) {
    %c0_i32 = arith.constant 0 : i32
    %c0_i32_0 = arith.constant 0 : i32
    %c0_i32_1 = arith.constant 0 : i32
    %c0_i32_2 = arith.constant 0 : i32
    return %c0_i32, %c0_i32_0, %c0_i32_1 : i32, i32, i32
  }
  func.func @transform_8(%arg0: i32) -> (i32, i32) {
    %c0_i32 = arith.constant 0 : i32
    %c0_i32_0 = arith.constant 0 : i32
    %c0_i32_1 = arith.constant 0 : i32
    return %c0_i32, %c0_i32_0 : i32, i32
  }
  func.func @transform_9(%arg0: i32) -> (i32, i32) {
    %c0_i32 = arith.constant 0 : i32
    %c0_i32_0 = arith.constant 0 : i32
    %c0_i32_1 = arith.constant 0 : i32
    return %c0_i32, %c0_i32_0 : i32, i32
  }
  func.func @transform_10(%arg0: i32) -> (i32, i32, i32) {
    %c0_i32 = arith.constant 0 : i32
    %c0_i32_0 = arith.constant 0 : i32
    %c0_i32_1 = arith.constant 0 : i32
    %c0_i32_2 = arith.constant 0 : i32
    return %c0_i32, %c0_i32_0, %c0_i32_1 : i32, i32, i32
  }
  func.func @transform_11(%arg0: i32) -> (i32, i32) {
    %c0_i32 = arith.constant 0 : i32
    %c0_i32_0 = arith.constant 0 : i32
    %c0_i32_1 = arith.constant 0 : i32
    return %c0_i32, %c0_i32_0 : i32, i32
  }
  func.func @transform_12(%arg0: i32) -> (i32, i32, i32) {
    %c0_i32 = arith.constant 0 : i32
    %c0_i32_0 = arith.constant 0 : i32
    %c0_i32_1 = arith.constant 0 : i32
    %c0_i32_2 = arith.constant 0 : i32
    return %c0_i32, %c0_i32_0, %c0_i32_1 : i32, i32, i32
  }
  func.func @transform_13(%arg0: i32) -> (i32, i32, i32) {
    %c0_i32 = arith.constant 0 : i32
    %c0_i32_0 = arith.constant 0 : i32
    %c0_i32_1 = arith.constant 0 : i32
    %c0_i32_2 = arith.constant 0 : i32
    return %c0_i32, %c0_i32_0, %c0_i32_1 : i32, i32, i32
  }
  func.func @transform_14(%arg0: i32) -> (i32, i32) {
    %c0_i32 = arith.constant 0 : i32
    %c0_i32_0 = arith.constant 0 : i32
    %c0_i32_1 = arith.constant 0 : i32
    return %c0_i32, %c0_i32_0 : i32, i32
  }
  func.func @transform_15(%arg0: i32) -> (i32, i32, i32) {
    %c0_i32 = arith.constant 0 : i32
    %c0_i32_0 = arith.constant 0 : i32
    %c0_i32_1 = arith.constant 0 : i32
    %c0_i32_2 = arith.constant 0 : i32
    return %c0_i32, %c0_i32_0, %c0_i32_1 : i32, i32, i32
  }
  func.func @transform_16(%arg0: i32) -> (i32, i32) {
    %c0_i32 = arith.constant 0 : i32
    %c0_i32_0 = arith.constant 0 : i32
    %c0_i32_1 = arith.constant 0 : i32
    return %c0_i32, %c0_i32_0 : i32, i32
  }
  func.func @transform_17(%arg0: i32) -> (i32, i32, i32) {
    %c0_i32 = arith.constant 0 : i32
    %c0_i32_0 = arith.constant 0 : i32
    %c0_i32_1 = arith.constant 0 : i32
    return %arg0, %c0_i32, %c0_i32_0 : i32, i32, i32
  }
  func.func @transform_18(%arg0: i32) -> (i32, i32, i32) {
    %c0_i32 = arith.constant 0 : i32
    %c0_i32_0 = arith.constant 0 : i32
    %c0_i32_1 = arith.constant 0 : i32
    return %arg0, %c0_i32, %c0_i32_0 : i32, i32, i32
  }
}

</mosaic_0001>

<llo_original>
// kernel: conv_autoencoder_forward.1
$region0: #{conv_autoencoder_forward.1}
  #allocation0 [shape = 'u32[]', space=smem, size = 0x4, offset = 0x4, fixed_abs, tag = 'smem constant byte address 0x4 - core index']
  #allocation1 [shape = 'u32[72,128]{1,0:T(1,128)}', space=vmem, size = 0x9000, scoped, tag = 'internal scratch']
  #allocation2 [shape = 'f32[16,222]{1,0:T(8,128)}', space=vmem, size = 0x4000, scoped, tag = 'scratch operand']
  #allocation3 [shape = 'f32[16,49]{1,0:T(8,128)}', space=vmem, size = 0x2000, scoped, tag = 'scratch operand']
  #allocation4 [shape = 'f32[32,41]{1,0:T(8,128)}', space=vmem, size = 0x4000, scoped, tag = 'scratch operand']
  #allocation5 [shape = 'f32[32,64]{1,0:T(8,128)}', space=vmem, size = 0x4000, scoped, tag = 'scratch operand']
  #allocation6 [shape = 'f32[16,324]{1,0:T(8,128)}', space=vmem, size = 0x6000, scoped, tag = 'scratch operand']
  %s0 = inlined_call_operand.vmem [shape: f32[2,4,256], index: 0, kind: input, shape index: {}]
  %s1 = inlined_call_operand.vmem [shape: f32[9,16,4], index: 1, kind: input, shape index: {}]
  %s2 = inlined_call_operand.vmem [shape: f32[16,1], index: 2, kind: input, shape index: {}]
  %s3 = inlined_call_operand.vmem [shape: f32[4,32,16], index: 3, kind: input, shape index: {}]
  %s4 = inlined_call_operand.vmem [shape: f32[32,1], index: 4, kind: input, shape index: {}]
  %s5 = inlined_call_operand.vmem [shape: f32[4,16,32], index: 5, kind: input, shape index: {}]
  %s6 = inlined_call_operand.vmem [shape: f32[16,1], index: 6, kind: input, shape index: {}]
  %s7 = inlined_call_operand.vmem [shape: f32[9,4,16], index: 7, kind: input, shape index: {}]
  %s8 = inlined_call_operand.vmem [shape: f32[4,1], index: 8, kind: input, shape index: {}]
  %s9 = inlined_call_operand.vmem [shape: f32[205,49], index: 9, kind: input, shape index: {}]
  %s10 = inlined_call_operand.vmem [shape: s32[4,1,49], index: 10, kind: input, shape index: {}]
  %s11 = inlined_call_operand.vmem [shape: f32[33,9], index: 11, kind: input, shape index: {}]
  %s12 = inlined_call_operand.vmem [shape: s32[4,1,9], index: 12, kind: input, shape index: {}]
  %s13 = inlined_call_operand.vmem [shape: f32[4,9,64], index: 13, kind: input, shape index: {}]
  %s14 = inlined_call_operand.vmem [shape: f32[55,49], index: 14, kind: input, shape index: {}]
  %s15 = inlined_call_operand.hbm [shape: f32[4,49,324], index: 15, kind: input, shape index: {}]
  %s16 = inlined_call_operand.hbm [shape: f32[286,256], index: 16, kind: input, shape index: {}]
  %s17 = inlined_call_operand.vmem [shape: f32[2,32,9], index: 17, kind: output, shape index: {0}]
  %s18 = inlined_call_operand.vmem [shape: f32[2,4,256], index: 18, kind: output, shape index: {1}]
  %19 = xla_tuple %s17, %s18
  %s20 = sld [smem:[#allocation0]]
  $region117: #{conv_autoencoder_forward.1} parent=0
    _
  %s22 = ssub.s32 1, %s20
  %s23 = scalar_select 0, %s22, %s20
  $region1: #{conv_autoencoder_forward.1} parent=0
    #allocation7 [shape = 'u8[344064]{0}', space=vmem, size = 0x54000, scoped, tag = 'input window, operand 15, single buffered']
    #allocation8 [shape = 's32[2]{0}', space=sflag, size = 0x8, scoped, tag = 'scoped memory for conv_autoencoder_forward.1']
    #allocation9 [shape = 'u8[294912]{0}', space=vmem, size = 0x48000, scoped, tag = 'input window, operand 16, single buffered']
    #allocation10 [shape = 's32[1]{0}', space=sflag, size = 0x4, scoped, tag = 'scoped memory for conv_autoencoder_forward.1']
    %24 = vsyncpa [#allocation8], 0
    %25 = vsyncpa [#allocation10], 0
    loop: start=0, step=1, limit=4
    $region2: #{conv_autoencoder_forward.1} parent=1 // loop_pre_header
      _
    $region3: #{conv_autoencoder_forward.1} parent=1 // loop_header
      %s27 = sphi 0, %s31
      %p28 = scmp.ge.s32.totalorder %s27, 4
      %s37 = sphi 0, %s39
      %s40 = sphi 0, %s37
      %s41 = sphi 0, %s40
      %s57 = sphi 0, %s41
      %s61 = sphi 0, %s61
      %s63 = sphi 0, %s61
      %s64 = sphi 0, %s63
      %s78 = sphi 0, %s64
      %s82 = sphi 0, %s82
      %s84 = sphi 0, %s82
      %s85 = sphi 0, %s84
      %s99 = sphi 0, %s85
      %s103 = sphi 0, %s103
      %s105 = sphi 0, %s103
      %s106 = sphi 0, %s105
      %s120 = sphi 0, %s106
      %s124 = sphi 0, %s124
      %s126 = sphi 0, %s124
      %s127 = sphi 0, %s126
      %s141 = sphi 0, %s127
      %s145 = sphi 0, %s145
      %s147 = sphi 0, %s145
      %s148 = sphi 0, %s147
      %s162 = sphi 0, %s148
      %s166 = sphi 0, %s166
      %s168 = sphi 0, %s166
      %s169 = sphi 0, %s168
      %s183 = sphi 0, %s169
      %s187 = sphi 0, %s187
      %s189 = sphi 0, %s187
      %s190 = sphi 0, %s189
      %s204 = sphi 0, %s190
      %s208 = sphi 0, %s208
      %s210 = sphi 0, %s208
      %s211 = sphi 0, %s210
      %s225 = sphi 0, %s211
      %s229 = sphi 0, %s229
      %s231 = sphi 0, %s229
      %s232 = sphi 0, %s231
      %s246 = sphi 0, %s232
      %s250 = sphi 0, %s250
      %s252 = sphi 0, %s250
      %s253 = sphi 0, %s252
      %s267 = sphi 0, %s253
      %s271 = sphi 0, %s271
      %s273 = sphi 0, %s271
      %s274 = sphi 0, %s273
      %s288 = sphi 0, %s274
      %s292 = sphi 0, %s292
      %s294 = sphi 0, %s292
      %s295 = sphi 0, %s294
      %s309 = sphi 0, %s295
      %s313 = sphi 0, %s313
      %s315 = sphi 0, %s313
      %s316 = sphi 0, %s315
      %s330 = sphi 0, %s316
      %s334 = sphi 0, %s334
      %s336 = sphi 0, %s334
      %s337 = sphi 0, %s336
      %s351 = sphi 0, %s337
      %s355 = sphi 0, %s355
      %s357 = sphi 0, %s355
      %s358 = sphi 0, %s357
      %s372 = sphi 0, %s358
      %s376 = sphi 0, %s376
      %s378 = sphi 0, %s376
      %s379 = sphi 0, %s378
      %s393 = sphi 0, %s379
      %s399 = sphi 0, %s401
      %s402 = sphi 0, %s399
      %s403 = sphi 0, %s402
      %s419 = sphi 0, %s403
      %s425 = sphi 0, %s427
      %s428 = sphi 0, %s425
      %s429 = sphi 0, %s428
      %s445 = sphi 0, %s429
    $region4: #{conv_autoencoder_forward.1} parent=1 // loop_header_branch
      %30 = sbr.rel (%p28) target = $region8
    $region5: #{conv_autoencoder_forward.1} parent=1 // loop_body
      %s32 = ssub.s32 %s27, 1
      %s33 = ssub.s32 %s27, 2
      %s34 = sadd.s32 %s27, 1
      %s35 = ssub.s32 %s27, %s34
      %p36 = scmp.eq.s32.totalorder %s35, 0
      %s38 = sadd.s32 %s37, 1
      %s39 = scalar_select %p36, %s37, %s38
      %p42 = pneg %p36
      %p43 = scmp.eq.s32.totalorder %s27, 1
      %p44 = por %p42, %p43
      %p45 = scmp.ne.s32.totalorder %s37, %s40
      %p46 = scmp.eq.s32.totalorder %s27, 0
      %p47 = por %p45, %p46
      %p48 = scmp.ne.s32.totalorder %s37, %s40
      %p49 = scmp.eq.s32.totalorder %s32, 1
      %p50 = por %p48, %p49
      %p51 = scmp.ne.s32.totalorder %s40, %s41
      %p52 = scmp.eq.s32.totalorder %s32, 0
      %p53 = por %p51, %p52
      %p54 = scmp.ne.s32.totalorder %s40, %s41
      %p55 = scmp.eq.s32.totalorder %s33, 1
      %p56 = por %p54, %p55
      %p58 = scmp.ne.s32.totalorder %s41, %s57
      %p59 = scmp.eq.s32.totalorder %s33, 0
      %p60 = por %p58, %p59
      %s62 = sadd.s32 %s61, 1
      %p65 = scmp.eq.s32.totalorder %s27, 1
      %p66 = scmp.ne.s32.totalorder %s61, %s63
      %p67 = scmp.eq.s32.totalorder %s27, 0
      %p68 = por %p66, %p67
      %p69 = scmp.ne.s32.totalorder %s61, %s63
      %p70 = scmp.eq.s32.totalorder %s32, 1
      %p71 = por %p69, %p70
      %p72 = scmp.ne.s32.totalorder %s63, %s64
      %p73 = scmp.eq.s32.totalorder %s32, 0
      %p74 = por %p72, %p73
      %p75 = scmp.ne.s32.totalorder %s63, %s64
      %p76 = scmp.eq.s32.totalorder %s33, 1
      %p77 = por %p75, %p76
      %p79 = scmp.ne.s32.totalorder %s64, %s78
      %p80 = scmp.eq.s32.totalorder %s33, 0
      %p81 = por %p79, %p80
      %s83 = sadd.s32 %s82, 1
      %p86 = scmp.eq.s32.totalorder %s27, 1
      %p87 = scmp.ne.s32.totalorder %s82, %s84
      %p88 = scmp.eq.s32.totalorder %s27, 0
      %p89 = por %p87, %p88
      %p90 = scmp.ne.s32.totalorder %s82, %s84
      %p91 = scmp.eq.s32.totalorder %s32, 1
      %p92 = por %p90, %p91
      %p93 = scmp.ne.s32.totalorder %s84, %s85
      %p94 = scmp.eq.s32.totalorder %s32, 0
      %p95 = por %p93, %p94
      %p96 = scmp.ne.s32.totalorder %s84, %s85
      %p97 = scmp.eq.s32.totalorder %s33, 1
      %p98 = por %p96, %p97
      %p100 = scmp.ne.s32.totalorder %s85, %s99
      %p101 = scmp.eq.s32.totalorder %s33, 0
      %p102 = por %p100, %p101
      %s104 = sadd.s32 %s103, 1
      %p107 = scmp.eq.s32.totalorder %s27, 1
      %p108 = scmp.ne.s32.totalorder %s103, %s105
      %p109 = scmp.eq.s32.totalorder %s27, 0
      %p110 = por %p108, %p109
      %p111 = scmp.ne.s32.totalorder %s103, %s105
      %p112 = scmp.eq.s32.totalorder %s32, 1
      %p113 = por %p111, %p112
      %p114 = scmp.ne.s32.totalorder %s105, %s106
      %p115 = scmp.eq.s32.totalorder %s32, 0
      %p116 = por %p114, %p115
      %p117 = scmp.ne.s32.totalorder %s105, %s106
      %p118 = scmp.eq.s32.totalorder %s33, 1
      %p119 = por %p117, %p118
      %p121 = scmp.ne.s32.totalorder %s106, %s120
      %p122 = scmp.eq.s32.totalorder %s33, 0
      %p123 = por %p121, %p122
      %s125 = sadd.s32 %s124, 1
      %p128 = scmp.eq.s32.totalorder %s27, 1
      %p129 = scmp.ne.s32.totalorder %s124, %s126
      %p130 = scmp.eq.s32.totalorder %s27, 0
      %p131 = por %p129, %p130
      %p132 = scmp.ne.s32.totalorder %s124, %s126
      %p133 = scmp.eq.s32.totalorder %s32, 1
      %p134 = por %p132, %p133
      %p135 = scmp.ne.s32.totalorder %s126, %s127
      %p136 = scmp.eq.s32.totalorder %s32, 0
      %p137 = por %p135, %p136
      %p138 = scmp.ne.s32.totalorder %s126, %s127
      %p139 = scmp.eq.s32.totalorder %s33, 1
      %p140 = por %p138, %p139
      %p142 = scmp.ne.s32.totalorder %s127, %s141
      %p143 = scmp.eq.s32.totalorder %s33, 0
      %p144 = por %p142, %p143
      %s146 = sadd.s32 %s145, 1
      %p149 = scmp.eq.s32.totalorder %s27, 1
      %p150 = scmp.ne.s32.totalorder %s145, %s147
      %p151 = scmp.eq.s32.totalorder %s27, 0
      %p152 = por %p150, %p151
      %p153 = scmp.ne.s32.totalorder %s145, %s147
      %p154 = scmp.eq.s32.totalorder %s32, 1
      %p155 = por %p153, %p154
      %p156 = scmp.ne.s32.totalorder %s147, %s148
      %p157 = scmp.eq.s32.totalorder %s32, 0
      %p158 = por %p156, %p157
      %p159 = scmp.ne.s32.totalorder %s147, %s148
      %p160 = scmp.eq.s32.totalorder %s33, 1
      %p161 = por %p159, %p160
      %p163 = scmp.ne.s32.totalorder %s148, %s162
      %p164 = scmp.eq.s32.totalorder %s33, 0
      %p165 = por %p163, %p164
      %s167 = sadd.s32 %s166, 1
      %p170 = scmp.eq.s32.totalorder %s27, 1
      %p171 = scmp.ne.s32.totalorder %s166, %s168
      %p172 = scmp.eq.s32.totalorder %s27, 0
      %p173 = por %p171, %p172
      %p174 = scmp.ne.s32.totalorder %s166, %s168
      %p175 = scmp.eq.s32.totalorder %s32, 1
      %p176 = por %p174, %p175
      %p177 = scmp.ne.s32.totalorder %s168, %s169
      %p178 = scmp.eq.s32.totalorder %s32, 0
      %p179 = por %p177, %p178
      %p180 = scmp.ne.s32.totalorder %s168, %s169
      %p181 = scmp.eq.s32.totalorder %s33, 1
      %p182 = por %p180, %p181
      %p184 = scmp.ne.s32.totalorder %s169, %s183
      %p185 = scmp.eq.s32.totalorder %s33, 0
      %p186 = por %p184, %p185
      %s188 = sadd.s32 %s187, 1
      %p191 = scmp.eq.s32.totalorder %s27, 1
      %p192 = scmp.ne.s32.totalorder %s187, %s189
      %p193 = scmp.eq.s32.totalorder %s27, 0
      %p194 = por %p192, %p193
      %p195 = scmp.ne.s32.totalorder %s187, %s189
      %p196 = scmp.eq.s32.totalorder %s32, 1
      %p197 = por %p195, %p196
      %p198 = scmp.ne.s32.totalorder %s189, %s190
      %p199 = scmp.eq.s32.totalorder %s32, 0
      %p200 = por %p198, %p199
      %p201 = scmp.ne.s32.totalorder %s189, %s190
      %p202 = scmp.eq.s32.totalorder %s33, 1
      %p203 = por %p201, %p202
      %p205 = scmp.ne.s32.totalorder %s190, %s204
      %p206 = scmp.eq.s32.totalorder %s33, 0
      %p207 = por %p205, %p206
      %s209 = sadd.s32 %s208, 1
      %p212 = scmp.eq.s32.totalorder %s27, 1
      %p213 = scmp.ne.s32.totalorder %s208, %s210
      %p214 = scmp.eq.s32.totalorder %s27, 0
      %p215 = por %p213, %p214
      %p216 = scmp.ne.s32.totalorder %s208, %s210
      %p217 = scmp.eq.s32.totalorder %s32, 1
      %p218 = por %p216, %p217
      %p219 = scmp.ne.s32.totalorder %s210, %s211
      %p220 = scmp.eq.s32.totalorder %s32, 0
      %p221 = por %p219, %p220
      %p222 = scmp.ne.s32.totalorder %s210, %s211
      %p223 = scmp.eq.s32.totalorder %s33, 1
      %p224 = por %p222, %p223
      %p226 = scmp.ne.s32.totalorder %s211, %s225
      %p227 = scmp.eq.s32.totalorder %s33, 0
      %p228 = por %p226, %p227
      %s230 = sadd.s32 %s229, 1
      %p233 = scmp.eq.s32.totalorder %s27, 1
      %p234 = scmp.ne.s32.totalorder %s229, %s231
      %p235 = scmp.eq.s32.totalorder %s27, 0
      %p236 = por %p234, %p235
      %p237 = scmp.ne.s32.totalorder %s229, %s231
      %p238 = scmp.eq.s32.totalorder %s32, 1
      %p239 = por %p237, %p238
      %p240 = scmp.ne.s32.totalorder %s231, %s232
      %p241 = scmp.eq.s32.totalorder %s32, 0
      %p242 = por %p240, %p241
      %p243 = scmp.ne.s32.totalorder %s231, %s232
      %p244 = scmp.eq.s32.totalorder %s33, 1
      %p245 = por %p243, %p244
      %p247 = scmp.ne.s32.totalorder %s232, %s246
      %p248 = scmp.eq.s32.totalorder %s33, 0
      %p249 = por %p247, %p248
      %s251 = sadd.s32 %s250, 1
      %p254 = scmp.eq.s32.totalorder %s27, 1
      %p255 = scmp.ne.s32.totalorder %s250, %s252
      %p256 = scmp.eq.s32.totalorder %s27, 0
      %p257 = por %p255, %p256
      %p258 = scmp.ne.s32.totalorder %s250, %s252
      %p259 = scmp.eq.s32.totalorder %s32, 1
      %p260 = por %p258, %p259
      %p261 = scmp.ne.s32.totalorder %s252, %s253
      %p262 = scmp.eq.s32.totalorder %s32, 0
      %p263 = por %p261, %p262
      %p264 = scmp.ne.s32.totalorder %s252, %s253
      %p265 = scmp.eq.s32.totalorder %s33, 1
      %p266 = por %p264, %p265
      %p268 = scmp.ne.s32.totalorder %s253, %s267
      %p269 = scmp.eq.s32.totalorder %s33, 0
      %p270 = por %p268, %p269
      %s272 = sadd.s32 %s271, 1
      %p275 = scmp.eq.s32.totalorder %s27, 1
      %p276 = scmp.ne.s32.totalorder %s271, %s273
      %p277 = scmp.eq.s32.totalorder %s27, 0
      %p278 = por %p276, %p277
      %p279 = scmp.ne.s32.totalorder %s271, %s273
      %p280 = scmp.eq.s32.totalorder %s32, 1
      %p281 = por %p279, %p280
      %p282 = scmp.ne.s32.totalorder %s273, %s274
      %p283 = scmp.eq.s32.totalorder %s32, 0
      %p284 = por %p282, %p283
      %p285 = scmp.ne.s32.totalorder %s273, %s274
      %p286 = scmp.eq.s32.totalorder %s33, 1
      %p287 = por %p285, %p286
      %p289 = scmp.ne.s32.totalorder %s274, %s288
      %p290 = scmp.eq.s32.totalorder %s33, 0
      %p291 = por %p289, %p290
      %s293 = sadd.s32 %s292, 1
      %p296 = scmp.eq.s32.totalorder %s27, 1
      %p297 = scmp.ne.s32.totalorder %s292, %s294
      %p298 = scmp.eq.s32.totalorder %s27, 0
      %p299 = por %p297, %p298
      %p300 = scmp.ne.s32.totalorder %s292, %s294
      %p301 = scmp.eq.s32.totalorder %s32, 1
      %p302 = por %p300, %p301
      %p303 = scmp.ne.s32.totalorder %s294, %s295
      %p304 = scmp.eq.s32.totalorder %s32, 0
      %p305 = por %p303, %p304
      %p306 = scmp.ne.s32.totalorder %s294, %s295
      %p307 = scmp.eq.s32.totalorder %s33, 1
      %p308 = por %p306, %p307
      %p310 = scmp.ne.s32.totalorder %s295, %s309
      %p311 = scmp.eq.s32.totalorder %s33, 0
      %p312 = por %p310, %p311
      %s314 = sadd.s32 %s313, 1
      %p317 = scmp.eq.s32.totalorder %s27, 1
      %p318 = scmp.ne.s32.totalorder %s313, %s315
      %p319 = scmp.eq.s32.totalorder %s27, 0
      %p320 = por %p318, %p319
      %p321 = scmp.ne.s32.totalorder %s313, %s315
      %p322 = scmp.eq.s32.totalorder %s32, 1
      %p323 = por %p321, %p322
      %p324 = scmp.ne.s32.totalorder %s315, %s316
      %p325 = scmp.eq.s32.totalorder %s32, 0
      %p326 = por %p324, %p325
      %p327 = scmp.ne.s32.totalorder %s315, %s316
      %p328 = scmp.eq.s32.totalorder %s33, 1
      %p329 = por %p327, %p328
      %p331 = scmp.ne.s32.totalorder %s316, %s330
      %p332 = scmp.eq.s32.totalorder %s33, 0
      %p333 = por %p331, %p332
      %s335 = sadd.s32 %s334, 1
      %p338 = scmp.eq.s32.totalorder %s27, 1
      %p339 = scmp.ne.s32.totalorder %s334, %s336
      %p340 = scmp.eq.s32.totalorder %s27, 0
      %p341 = por %p339, %p340
      %p342 = scmp.ne.s32.totalorder %s334, %s336
      %p343 = scmp.eq.s32.totalorder %s32, 1
      %p344 = por %p342, %p343
      %p345 = scmp.ne.s32.totalorder %s336, %s337
      %p346 = scmp.eq.s32.totalorder %s32, 0
      %p347 = por %p345, %p346
      %p348 = scmp.ne.s32.totalorder %s336, %s337
      %p349 = scmp.eq.s32.totalorder %s33, 1
      %p350 = por %p348, %p349
      %p352 = scmp.ne.s32.totalorder %s337, %s351
      %p353 = scmp.eq.s32.totalorder %s33, 0
      %p354 = por %p352, %p353
      %s356 = sadd.s32 %s355, 1
      %p359 = scmp.eq.s32.totalorder %s27, 1
      %p360 = scmp.ne.s32.totalorder %s355, %s357
      %p361 = scmp.eq.s32.totalorder %s27, 0
      %p362 = por %p360, %p361
      %p363 = scmp.ne.s32.totalorder %s355, %s357
      %p364 = scmp.eq.s32.totalorder %s32, 1
      %p365 = por %p363, %p364
      %p366 = scmp.ne.s32.totalorder %s357, %s358
      %p367 = scmp.eq.s32.totalorder %s32, 0
      %p368 = por %p366, %p367
      %p369 = scmp.ne.s32.totalorder %s357, %s358
      %p370 = scmp.eq.s32.totalorder %s33, 1
      %p371 = por %p369, %p370
      %p373 = scmp.ne.s32.totalorder %s358, %s372
      %p374 = scmp.eq.s32.totalorder %s33, 0
      %p375 = por %p373, %p374
      %s377 = sadd.s32 %s376, 1
      %p380 = scmp.eq.s32.totalorder %s27, 1
      %p381 = scmp.ne.s32.totalorder %s376, %s378
      %p382 = scmp.eq.s32.totalorder %s27, 0
      %p383 = por %p381, %p382
      %p384 = scmp.ne.s32.totalorder %s376, %s378
      %p385 = scmp.eq.s32.totalorder %s32, 1
      %p386 = por %p384, %p385
      %p387 = scmp.ne.s32.totalorder %s378, %s379
      %p388 = scmp.eq.s32.totalorder %s32, 0
      %p389 = por %p387, %p388
      %p390 = scmp.ne.s32.totalorder %s378, %s379
      %p391 = scmp.eq.s32.totalorder %s33, 1
      %p392 = por %p390, %p391
      %p394 = scmp.ne.s32.totalorder %s379, %s393
      %p395 = scmp.eq.s32.totalorder %s33, 0
      %p396 = por %p394, %p395
      %s397 = ssub.s32 %s27, %s34
      %p398 = scmp.eq.s32.totalorder %s397, 0
      %s400 = sadd.s32 %s399, 1
      %s401 = scalar_select %p398, %s399, %s400
      %p404 = pneg %p398
      %p405 = scmp.eq.s32.totalorder %s27, 1
      %p406 = por %p404, %p405
      %p407 = scmp.ne.s32.totalorder %s399, %s402
      %p408 = scmp.eq.s32.totalorder %s27, 0
      %p409 = por %p407, %p408
      %p410 = scmp.ne.s32.totalorder %s399, %s402
      %p411 = scmp.eq.s32.totalorder %s32, 1
      %p412 = por %p410, %p411
      %p413 = scmp.ne.s32.totalorder %s402, %s403
      %p414 = scmp.eq.s32.totalorder %s32, 0
      %p415 = por %p413, %p414
      %p416 = scmp.ne.s32.totalorder %s402, %s403
      %p417 = scmp.eq.s32.totalorder %s33, 1
      %p418 = por %p416, %p417
      %p420 = scmp.ne.s32.totalorder %s403, %s419
      %p421 = scmp.eq.s32.totalorder %s33, 0
      %p422 = por %p420, %p421
      %s423 = ssub.s32 %s27, %s34
      %p424 = scmp.eq.s32.totalorder %s423, 0
      %s426 = sadd.s32 %s425, 1
      %s427 = scalar_select %p424, %s425, %s426
      %p430 = pneg %p424
      %p431 = scmp.eq.s32.totalorder %s27, 1
      %p432 = por %p430, %p431
      %p433 = scmp.ne.s32.totalorder %s425, %s428
      %p434 = scmp.eq.s32.totalorder %s27, 0
      %p435 = por %p433, %p434
      %p436 = scmp.ne.s32.totalorder %s425, %s428
      %p437 = scmp.eq.s32.totalorder %s32, 1
      %p438 = por %p436, %p437
      %p439 = scmp.ne.s32.totalorder %s428, %s429
      %p440 = scmp.eq.s32.totalorder %s32, 0
      %p441 = por %p439, %p440
      %p442 = scmp.ne.s32.totalorder %s428, %s429
      %p443 = scmp.eq.s32.totalorder %s33, 1
      %p444 = por %p442, %p443
      %p446 = scmp.ne.s32.totalorder %s429, %s445
      %p447 = scmp.eq.s32.totalorder %s33, 0
      %p448 = por %p446, %p447
      %p449 = scmp.le.s32.totalorder 1, %s27
      %p450 = scmp.lt.s32.totalorder %s27, 3
      %p451 = pnand %p449, %p450
      %p452 = pneg %p451
      // Predicated region
      $region9: #{conv_autoencoder_forward.1} parent=5 // pred_check
        _
      $region10: #{conv_autoencoder_forward.1} parent=5 // pred_check_branch
        %454 = sbr.rel (%p451) target = $region12
      $region11: #{conv_autoencoder_forward.1} parent=5 // pred_region
        %s455 = ssub.s32 %s27, 1
        // Predicated region
        $region13: #{conv_autoencoder_forward.1} parent=11 // pred_check
          %p456 = pneg %p74
        $region14: #{conv_autoencoder_forward.1} parent=11 // pred_check_branch
          %458 = sbr.rel (%p456) target = $region16
        $region15: #{conv_autoencoder_forward.1} parent=11 // pred_region
          _
        $region16: #{conv_autoencoder_forward.1} parent=11 // pred_fallthru
          _
        // Predicated region
        $region17: #{conv_autoencoder_forward.1} parent=11 // pred_check
          %p459 = pneg %p95
        $region18: #{conv_autoencoder_forward.1} parent=11 // pred_check_branch
          %461 = sbr.rel (%p459) target = $region20
        $region19: #{conv_autoencoder_forward.1} parent=11 // pred_region
          _
        $region20: #{conv_autoencoder_forward.1} parent=11 // pred_fallthru
          _
        // Predicated region
        $region21: #{conv_autoencoder_forward.1} parent=11 // pred_check
          %p462 = pneg %p116
        $region22: #{conv_autoencoder_forward.1} parent=11 // pred_check_branch
          %464 = sbr.rel (%p462) target = $region24
        $region23: #{conv_autoencoder_forward.1} parent=11 // pred_region
          _
        $region24: #{conv_autoencoder_forward.1} parent=11 // pred_fallthru
          _
        // Predicated region
        $region25: #{conv_autoencoder_forward.1} parent=11 // pred_check
          %p465 = pneg %p137
        $region26: #{conv_autoencoder_forward.1} parent=11 // pred_check_branch
          %467 = sbr.rel (%p465) target = $region28
        $region27: #{conv_autoencoder_forward.1} parent=11 // pred_region
          _
        $region28: #{conv_autoencoder_forward.1} parent=11 // pred_fallthru
          _
        // Predicated region
        $region29: #{conv_autoencoder_forward.1} parent=11 // pred_check
          %p468 = pneg %p158
        $region30: #{conv_autoencoder_forward.1} parent=11 // pred_check_branch
          %470 = sbr.rel (%p468) target = $region32
        $region31: #{conv_autoencoder_forward.1} parent=11 // pred_region
          _
        $region32: #{conv_autoencoder_forward.1} parent=11 // pred_fallthru
          _
        // Predicated region
        $region33: #{conv_autoencoder_forward.1} parent=11 // pred_check
          %p471 = pneg %p179
        $region34: #{conv_autoencoder_forward.1} parent=11 // pred_check_branch
          %473 = sbr.rel (%p471) target = $region36
        $region35: #{conv_autoencoder_forward.1} parent=11 // pred_region
          _
        $region36: #{conv_autoencoder_forward.1} parent=11 // pred_fallthru
          _
        // Predicated region
        $region37: #{conv_autoencoder_forward.1} parent=11 // pred_check
          %p474 = pneg %p200
        $region38: #{conv_autoencoder_forward.1} parent=11 // pred_check_branch
          %476 = sbr.rel (%p474) target = $region40
        $region39: #{conv_autoencoder_forward.1} parent=11 // pred_region
          _
        $region40: #{conv_autoencoder_forward.1} parent=11 // pred_fallthru
          _
        // Predicated region
        $region41: #{conv_autoencoder_forward.1} parent=11 // pred_check
          %p477 = pneg %p221
        $region42: #{conv_autoencoder_forward.1} parent=11 // pred_check_branch
          %479 = sbr.rel (%p477) target = $region44
        $region43: #{conv_autoencoder_forward.1} parent=11 // pred_region
          _
        $region44: #{conv_autoencoder_forward.1} parent=11 // pred_fallthru
          _
        // Predicated region
        $region45: #{conv_autoencoder_forward.1} parent=11 // pred_check
          %p480 = pneg %p242
        $region46: #{conv_autoencoder_forward.1} parent=11 // pred_check_branch
          %482 = sbr.rel (%p480) target = $region48
        $region47: #{conv_autoencoder_forward.1} parent=11 // pred_region
          _
        $region48: #{conv_autoencoder_forward.1} parent=11 // pred_fallthru
          _
        // Predicated region
        $region49: #{conv_autoencoder_forward.1} parent=11 // pred_check
          %p483 = pneg %p263
        $region50: #{conv_autoencoder_forward.1} parent=11 // pred_check_branch
          %485 = sbr.rel (%p483) target = $region52
        $region51: #{conv_autoencoder_forward.1} parent=11 // pred_region
          _
        $region52: #{conv_autoencoder_forward.1} parent=11 // pred_fallthru
          _
        // Predicated region
        $region53: #{conv_autoencoder_forward.1} parent=11 // pred_check
          %p486 = pneg %p284
        $region54: #{conv_autoencoder_forward.1} parent=11 // pred_check_branch
          %488 = sbr.rel (%p486) target = $region56
        $region55: #{conv_autoencoder_forward.1} parent=11 // pred_region
          _
        $region56: #{conv_autoencoder_forward.1} parent=11 // pred_fallthru
          _
        // Predicated region
        $region57: #{conv_autoencoder_forward.1} parent=11 // pred_check
          %p489 = pneg %p305
        $region58: #{conv_autoencoder_forward.1} parent=11 // pred_check_branch
          %491 = sbr.rel (%p489) target = $region60
        $region59: #{conv_autoencoder_forward.1} parent=11 // pred_region
          _
        $region60: #{conv_autoencoder_forward.1} parent=11 // pred_fallthru
          _
        // Predicated region
        $region61: #{conv_autoencoder_forward.1} parent=11 // pred_check
          %p492 = pneg %p326
        $region62: #{conv_autoencoder_forward.1} parent=11 // pred_check_branch
          %494 = sbr.rel (%p492) target = $region64
        $region63: #{conv_autoencoder_forward.1} parent=11 // pred_region
          _
        $region64: #{conv_autoencoder_forward.1} parent=11 // pred_fallthru
          _
        // Predicated region
        $region65: #{conv_autoencoder_forward.1} parent=11 // pred_check
          %p495 = pneg %p347
        $region66: #{conv_autoencoder_forward.1} parent=11 // pred_check_branch
          %497 = sbr.rel (%p495) target = $region68
        $region67: #{conv_autoencoder_forward.1} parent=11 // pred_region
          _
        $region68: #{conv_autoencoder_forward.1} parent=11 // pred_fallthru
          _
        // Predicated region
        $region69: #{conv_autoencoder_forward.1} parent=11 // pred_check
          %p498 = pneg %p368
        $region70: #{conv_autoencoder_forward.1} parent=11 // pred_check_branch
          %500 = sbr.rel (%p498) target = $region72
        $region71: #{conv_autoencoder_forward.1} parent=11 // pred_region
          %502 = vsyncadd [#allocation8], 0
          %s503 = sshll.u32 %s15, 4
          %s504 = int_to_ptr.hbm [resolvable:$true] %s503
          %s505 = sshll.u32 [#allocation7], 4
          %s506 = int_to_ptr.vmem [resolvable:$true] %s505
          %511 = dma.hbm_to_vmem [thread:$0]  %s504, 10752, %s506, [#allocation8], 384, 384, 24
        $region72: #{conv_autoencoder_forward.1} parent=11 // pred_fallthru
          _
        // Predicated region
        $region73: #{conv_autoencoder_forward.1} parent=11 // pred_check
          %p512 = pneg %p389
        $region74: #{conv_autoencoder_forward.1} parent=11 // pred_check_branch
          %514 = sbr.rel (%p512) target = $region76
        $region75: #{conv_autoencoder_forward.1} parent=11 // pred_region
          %516 = vsyncadd [#allocation10], 0
          %s517 = sshll.u32 %s16, 4
          %s518 = int_to_ptr.hbm [resolvable:$true] %s517
          %s519 = sshll.u32 [#allocation9], 4
          %s520 = int_to_ptr.vmem [resolvable:$true] %s519
          %525 = dma.hbm_to_vmem [thread:$0]  %s518, 9216, %s520, [#allocation10], 256, 256, 16
        $region76: #{conv_autoencoder_forward.1} parent=11 // pred_fallthru
          _
      $region12: #{conv_autoencoder_forward.1} parent=5 // pred_fallthru
        _
      %p526 = scmp.lt.s32.totalorder %s27, 2
      // Predicated region
      $region77: #{conv_autoencoder_forward.1} parent=5 // pred_check
        %p527 = pneg %p526
      $region78: #{conv_autoencoder_forward.1} parent=5 // pred_check_branch
        %529 = sbr.rel (%p527) target = $region80
      $region79: #{conv_autoencoder_forward.1} parent=5 // pred_region
        // Predicated region
        $region81: #{conv_autoencoder_forward.1} parent=79 // pred_check
          %p530 = pneg %p47
        $region82: #{conv_autoencoder_forward.1} parent=79 // pred_check_branch
          %532 = sbr.rel (%p530) target = $region84
        $region83: #{conv_autoencoder_forward.1} parent=79 // pred_region
          %p533 = scmp.lt.s32.totalorder %s27, 1
          %s534 = scalar_select %p533, %s27, 1
          %s535 = smul.addr %s534, 2
          %s536 = smul.addr %s535, 4
          %s537 = scalar_lea.vmem %s0, %s536
        $region84: #{conv_autoencoder_forward.1} parent=79 // pred_fallthru
          _
      $region80: #{conv_autoencoder_forward.1} parent=5 // pred_fallthru
        _
      %p538 = scmp.le.s32.totalorder 1, %s27
      %p539 = scmp.lt.s32.totalorder %s27, 3
      %p540 = pnand %p538, %p539
      %p541 = pneg %p540
      // Predicated region
      $region85: #{conv_autoencoder_forward.1} parent=5 // pred_check
        _
      $region86: #{conv_autoencoder_forward.1} parent=5 // pred_check_branch
        %543 = sbr.rel (%p540) target = $region88
      $region87: #{conv_autoencoder_forward.1} parent=5 // pred_region
        %s544 = ssub.s32 %s27, 1
        // Predicated region
        $region89: #{conv_autoencoder_forward.1} parent=87 // pred_check
          %p545 = pneg %p368
        $region90: #{conv_autoencoder_forward.1} parent=87 // pred_check_branch
          %547 = sbr.rel (%p545) target = $region92
        $region91: #{conv_autoencoder_forward.1} parent=87 // pred_region
          %549 = dma.done [#allocation8], 10752
        $region92: #{conv_autoencoder_forward.1} parent=87 // pred_fallthru
          _
        // Predicated region
        $region93: #{conv_autoencoder_forward.1} parent=87 // pred_check
          %p550 = pneg %p389
        $region94: #{conv_autoencoder_forward.1} parent=87 // pred_check_branch
          %552 = sbr.rel (%p550) target = $region96
        $region95: #{conv_autoencoder_forward.1} parent=87 // pred_region
          %554 = dma.done [#allocation10], 9216
        $region96: #{conv_autoencoder_forward.1} parent=87 // pred_fallthru
          _
        %p555 = scmp.lt.s32.totalorder %s32, 1
        %s556 = scalar_select %p555, %s32, 1
        %s557 = smul.addr %s556, 2
        %s558 = smul.addr %s557, 4
        %s559 = scalar_lea.vmem %s0, %s558
        %p560 = pneg %p53
        %p561 = pneg %p50
        %p562 = pneg %p74
        %p563 = pneg %p71
        %p564 = pneg %p95
        %p565 = pneg %p92
        %p566 = pneg %p116
        %p567 = pneg %p113
        %p568 = pneg %p137
        %p569 = pneg %p134
        %p570 = pneg %p158
        %p571 = pneg %p155
        %p572 = pneg %p179
        %p573 = pneg %p176
        %p574 = pneg %p200
        %p575 = pneg %p197
        %p576 = pneg %p221
        %p577 = pneg %p218
        %p578 = pneg %p242
        %p579 = pneg %p239
        %p580 = pneg %p263
        %p581 = pneg %p260
        %p582 = pneg %p284
        %p583 = pneg %p281
        %p584 = pneg %p305
        %p585 = pneg %p302
        %p586 = pneg %p326
        %p587 = pneg %p323
        %p588 = pneg %p347
        %p589 = pneg %p344
        %p590 = pneg %p368
        %p591 = pneg %p365
        %p592 = pneg %p389
        %p593 = pneg %p386
        %p594 = pneg %p415
        %p595 = pneg %p412
        %p596 = scmp.lt.s32.totalorder %s32, 1
        %s597 = scalar_select %p596, %s32, 1
        %s598 = smul.addr %s597, 4
        %s599 = smul.addr %s598, 8
        %s600 = scalar_lea.vmem %s17, %s599
        %p601 = pneg %p441
        %p602 = pneg %p438
        %p603 = scmp.lt.s32.totalorder %s32, 1
        %s604 = scalar_select %p603, %s32, 1
        %s605 = smul.addr %s604, 2
        %s606 = smul.addr %s605, 4
        %s607 = scalar_lea.vmem %s18, %s606
        %p608 = scmp.lt.s32.totalorder %s32, 1
        %s609 = scalar_select %p608, %s32, 1
        %s610 = smul.addr %s609, 2
        %s611 = smul.addr %s610, 4
        %s612 = scalar_lea.vmem %s0, %s611
        %p613 = scmp.lt.s32.totalorder %s32, 1
        %s614 = scalar_select %p613, %s32, 1
        %s615 = smul.addr %s614, 4
        %s616 = smul.addr %s615, 8
        %s617 = scalar_lea.vmem %s17, %s616
        %p618 = scmp.lt.s32.totalorder %s32, 1
        %s619 = scalar_select %p618, %s32, 1
        %s620 = smul.addr %s619, 2
        %s621 = smul.addr %s620, 4
        %s622 = scalar_lea.vmem %s18, %s621
        %v623 = vld [vmem:[%s1] sm:$0xff]
        %v624 = vld [vmem:[%s1 + $0x8] sm:$0xff]
        %v625 = vld [vmem:[%s612] sm:$0xff]
        %s626 = scalar_lea.vmem %s1, 16
        %v627 = vld [vmem:[%s626] sm:$0xff]
        %v628 = vld [vmem:[%s626 + $0x8] sm:$0xff]
        %630 = vst [vmem:[#allocation1] ss:$2 sm:$0xff] %v625
        %v631 = vld.sshfl [vmem:[#allocation1] sm:$0xff pattern:$0x75316420]
        %v632 = vld.sshfl [vmem:[#allocation1 + $0x8] sm:$0xff pattern:$0x75316420]
        %633 = vrot.lane.b32.xlu0 %v631, 127
        %v634 = vpop.permute.xlu0 %633
        %635 = vrot.lane.b32.xlu0 %v632, 127
        %v636 = vpop.permute.xlu0 %635
        %vm637 = vcmask 1039360
        %v638 = vsel %vm637, %v634, %v636
        %vm639 = vcmask 31744
        %v641 = vsel %vm639, %v627, 0
        %v644 = vsel %vm639, %v628, 0
        %vm646 = vcmask 1043456
        %v647 = vsel %vm646, %v638, 0
        %v649 = vsel %vm646, %v636, 0
        %651 = vmatpush.msra.mxu0 0.0
        %652 = vmatpush.msra.mxu0 0.0
        %653 = vmatpush.msra.mxu0 0.0
        %654 = vmatpush.msra.mxu0 0.0
        %655 = vmatpush.msra.mxu0 0.0
        %656 = vmatpush.msra.mxu0 0.0
        %657 = vmatpush.msra.mxu0 0.0
        %658 = vmatpush.msra.mxu0 0.0
        %659 = vmatpush.msra.mxu0 0.0
        %660 = vmatpush.msra.mxu0 0.0
        %661 = vmatpush.msra.mxu0 0.0
        %662 = vmatpush.msra.mxu0 0.0
        %663 = vmatpush.msra.mxu0 0.0
        %664 = vmatpush.msra.mxu0 0.0
        %665 = vmatpush.msra.mxu0 0.0
        %666 = vmatpush.msra.mxu0 %v647
        %667 = vmatmul.f32.gmra.mxu0 %v641
        %v668 = vpop.f32.mrf.mxu0
        %v669 = vadd.f32 0.0, %v668
        %670 = vmatmul.f32.gmra.mxu0 %v644
        %v671 = vpop.f32.mrf.mxu0
        %v672 = vadd.f32 0.0, %v671
        %673 = vdwg.mxu0
        %674 = vmatpush.msra.mxu0 0.0
        %675 = vmatpush.msra.mxu0 0.0
        %676 = vmatpush.msra.mxu0 0.0
        %677 = vmatpush.msra.mxu0 0.0
        %678 = vmatpush.msra.mxu0 0.0
        %679 = vmatpush.msra.mxu0 0.0
        %680 = vmatpush.msra.mxu0 0.0
        %681 = vmatpush.msra.mxu0 0.0
        %682 = vmatpush.msra.mxu0 0.0
        %683 = vmatpush.msra.mxu0 0.0
        %684 = vmatpush.msra.mxu0 0.0
        %685 = vmatpush.msra.mxu0 0.0
        %686 = vmatpush.msra.mxu0 0.0
        %687 = vmatpush.msra.mxu0 0.0
        %688 = vmatpush.msra.mxu0 0.0
        %689 = vmatpush.msra.mxu0 %v649
        %690 = vmatmul.f32.gmra.mxu0 %v641
        %v691 = vpop.f32.mrf.mxu0
        %v692 = vadd.f32 0.0, %v691
        %693 = vmatmul.f32.gmra.mxu0 %v644
        %v694 = vpop.f32.mrf.mxu0
        %v695 = vadd.f32 0.0, %v694
        %696 = vdwg.mxu0
        %697 = vst [vmem:[#allocation1] ss:$2 sm:$0xff] %v625
        %v698 = vld.sshfl [vmem:[#allocation1] sm:$0xff pattern:$0x75316420]
        %v699 = vld.sshfl [vmem:[#allocation1 + $0x8] sm:$0xff pattern:$0x75316420]
        %v701 = vsel %vm639, %v623, 0
        %v704 = vsel %vm639, %v624, 0
        %v706 = vsel %vm646, %v698, 0
        %v708 = vsel %vm646, %v699, 0
        %710 = vmatpush.msra.mxu0 0.0
        %711 = vmatpush.msra.mxu0 0.0
        %712 = vmatpush.msra.mxu0 0.0
        %713 = vmatpush.msra.mxu0 0.0
        %714 = vmatpush.msra.mxu0 0.0
        %715 = vmatpush.msra.mxu0 0.0
        %716 = vmatpush.msra.mxu0 0.0
        %717 = vmatpush.msra.mxu0 0.0
        %718 = vmatpush.msra.mxu0 0.0
        %719 = vmatpush.msra.mxu0 0.0
        %720 = vmatpush.msra.mxu0 0.0
        %721 = vmatpush.msra.mxu0 0.0
        %722 = vmatpush.msra.mxu0 0.0
        %723 = vmatpush.msra.mxu0 0.0
        %724 = vmatpush.msra.mxu0 0.0
        %725 = vmatpush.msra.mxu0 %v706
        %726 = vmatmul.f32.gmra.mxu0 %v701
        %v727 = vpop.f32.mrf.mxu0
        %v728 = vadd.f32 %v669, %v727
        %729 = vmatmul.f32.gmra.mxu0 %v704
        %v730 = vpop.f32.mrf.mxu0
        %v731 = vadd.f32 %v672, %v730
        %732 = vdwg.mxu0
        %733 = vmatpush.msra.mxu0 0.0
        %734 = vmatpush.msra.mxu0 0.0
        %735 = vmatpush.msra.mxu0 0.0
        %736 = vmatpush.msra.mxu0 0.0
        %737 = vmatpush.msra.mxu0 0.0
        %738 = vmatpush.msra.mxu0 0.0
        %739 = vmatpush.msra.mxu0 0.0
        %740 = vmatpush.msra.mxu0 0.0
        %741 = vmatpush.msra.mxu0 0.0
        %742 = vmatpush.msra.mxu0 0.0
        %743 = vmatpush.msra.mxu0 0.0
        %744 = vmatpush.msra.mxu0 0.0
        %745 = vmatpush.msra.mxu0 0.0
        %746 = vmatpush.msra.mxu0 0.0
        %747 = vmatpush.msra.mxu0 0.0
        %748 = vmatpush.msra.mxu0 %v708
        %749 = vmatmul.f32.gmra.mxu0 %v701
        %v750 = vpop.f32.mrf.mxu0
        %v751 = vadd.f32 %v692, %v750
        %752 = vmatmul.f32.gmra.mxu0 %v704
        %v753 = vpop.f32.mrf.mxu0
        %v754 = vadd.f32 %v695, %v753
        %755 = vdwg.mxu0
        %s756 = scalar_lea.vmem %s1, 32
        %v757 = vld [vmem:[%s756] sm:$0xff]
        %v758 = vld [vmem:[%s756 + $0x8] sm:$0xff]
        %v759 = vld [vmem:[%s612] sm:$0xff]
        %761 = vst [vmem:[#allocation1] ss:$2 sm:$0xff] %v759
        %v762 = vld.sshfl [vmem:[#allocation1] sm:$0xff pattern:$0x75316420]
        %v763 = vld.sshfl [vmem:[#allocation1 + $0x8] sm:$0xff pattern:$0x75316420]
        %764 = vrot.lane.b32.xlu0 %v762, 126
        %v765 = vpop.permute.xlu0 %764
        %766 = vrot.lane.b32.xlu0 %v763, 126
        %v767 = vpop.permute.xlu0 %766
        %vm768 = vcmask 1031168
        %v769 = vsel %vm768, %v765, %v767
        %v771 = vsel %vm639, %v757, 0
        %v774 = vsel %vm639, %v758, 0
        %v776 = vsel %vm646, %v769, 0
        %v778 = vsel %vm646, %v767, 0
        %780 = vmatpush.msra.mxu0 0.0
        %781 = vmatpush.msra.mxu0 0.0
        %782 = vmatpush.msra.mxu0 0.0
        %783 = vmatpush.msra.mxu0 0.0
        %784 = vmatpush.msra.mxu0 0.0
        %785 = vmatpush.msra.mxu0 0.0
        %786 = vmatpush.msra.mxu0 0.0
        %787 = vmatpush.msra.mxu0 0.0
        %788 = vmatpush.msra.mxu0 0.0
        %789 = vmatpush.msra.mxu0 0.0
        %790 = vmatpush.msra.mxu0 0.0
        %791 = vmatpush.msra.mxu0 0.0
        %792 = vmatpush.msra.mxu0 0.0
        %793 = vmatpush.msra.mxu0 0.0
        %794 = vmatpush.msra.mxu0 0.0
        %795 = vmatpush.msra.mxu0 %v776
        %796 = vmatmul.f32.gmra.mxu0 %v771
        %v797 = vpop.f32.mrf.mxu0
        %v798 = vadd.f32 0.0, %v797
        %799 = vmatmul.f32.gmra.mxu0 %v774
        %v800 = vpop.f32.mrf.mxu0
        %v801 = vadd.f32 0.0, %v800
        %802 = vdwg.mxu0
        %803 = vmatpush.msra.mxu0 0.0
        %804 = vmatpush.msra.mxu0 0.0
        %805 = vmatpush.msra.mxu0 0.0
        %806 = vmatpush.msra.mxu0 0.0
        %807 = vmatpush.msra.mxu0 0.0
        %808 = vmatpush.msra.mxu0 0.0
        %809 = vmatpush.msra.mxu0 0.0
        %810 = vmatpush.msra.mxu0 0.0
        %811 = vmatpush.msra.mxu0 0.0
        %812 = vmatpush.msra.mxu0 0.0
        %813 = vmatpush.msra.mxu0 0.0
        %814 = vmatpush.msra.mxu0 0.0
        %815 = vmatpush.msra.mxu0 0.0
        %816 = vmatpush.msra.mxu0 0.0
        %817 = vmatpush.msra.mxu0 0.0
        %818 = vmatpush.msra.mxu0 %v778
        %819 = vmatmul.f32.gmra.mxu0 %v771
        %v820 = vpop.f32.mrf.mxu0
        %v821 = vadd.f32 0.0, %v820
        %822 = vmatmul.f32.gmra.mxu0 %v774
        %v823 = vpop.f32.mrf.mxu0
        %v824 = vadd.f32 0.0, %v823
        %825 = vdwg.mxu0
        %v826 = vadd.f32 %v728, %v798
        %v827 = vadd.f32 %v751, %v821
        %v828 = vadd.f32 %v731, %v801
        %v829 = vadd.f32 %v754, %v824
        %s830 = scalar_lea.vmem %s1, 48
        %v831 = vld [vmem:[%s830] sm:$0xff]
        %v832 = vld [vmem:[%s830 + $0x8] sm:$0xff]
        %v833 = vld [vmem:[%s612] sm:$0xff]
        %835 = vst [vmem:[#allocation1] ss:$2 sm:$0xff] %v833
        %v836 = vld.sshfl [vmem:[#allocation1] sm:$0xff pattern:$0x75316420]
        %v837 = vld.sshfl [vmem:[#allocation1 + $0x8] sm:$0xff pattern:$0x75316420]
        %838 = vrot.lane.b32.xlu0 %v836, 112
        %v839 = vpop.permute.xlu0 %838
        %840 = vrot.lane.b32.xlu0 %v837, 112
        %v841 = vpop.permute.xlu0 %840
        %vm842 = vcmask 916480
        %v843 = vsel %vm842, %v839, %v841
        %v845 = vsel %vm639, %v831, 0
        %v848 = vsel %vm639, %v832, 0
        %v850 = vsel %vm646, %v843, 0
        %v852 = vsel %vm646, %v841, 0
        %854 = vmatpush.msra.mxu0 0.0
        %855 = vmatpush.msra.mxu0 0.0
        %856 = vmatpush.msra.mxu0 0.0
        %857 = vmatpush.msra.mxu0 0.0
        %858 = vmatpush.msra.mxu0 0.0
        %859 = vmatpush.msra.mxu0 0.0
        %860 = vmatpush.msra.mxu0 0.0
        %861 = vmatpush.msra.mxu0 0.0
        %862 = vmatpush.msra.mxu0 0.0
        %863 = vmatpush.msra.mxu0 0.0
        %864 = vmatpush.msra.mxu0 0.0
        %865 = vmatpush.msra.mxu0 0.0
        %866 = vmatpush.msra.mxu0 0.0
        %867 = vmatpush.msra.mxu0 0.0
        %868 = vmatpush.msra.mxu0 0.0
        %869 = vmatpush.msra.mxu0 %v850
        %870 = vmatmul.f32.gmra.mxu0 %v845
        %v871 = vpop.f32.mrf.mxu0
        %v872 = vadd.f32 0.0, %v871
        %873 = vmatmul.f32.gmra.mxu0 %v848
        %v874 = vpop.f32.mrf.mxu0
        %v875 = vadd.f32 0.0, %v874
        %876 = vdwg.mxu0
        %877 = vmatpush.msra.mxu0 0.0
        %878 = vmatpush.msra.mxu0 0.0
        %879 = vmatpush.msra.mxu0 0.0
        %880 = vmatpush.msra.mxu0 0.0
        %881 = vmatpush.msra.mxu0 0.0
        %882 = vmatpush.msra.mxu0 0.0
        %883 = vmatpush.msra.mxu0 0.0
        %884 = vmatpush.msra.mxu0 0.0
        %885 = vmatpush.msra.mxu0 0.0
        %886 = vmatpush.msra.mxu0 0.0
        %887 = vmatpush.msra.mxu0 0.0
        %888 = vmatpush.msra.mxu0 0.0
        %889 = vmatpush.msra.mxu0 0.0
        %890 = vmatpush.msra.mxu0 0.0
        %891 = vmatpush.msra.mxu0 0.0
        %892 = vmatpush.msra.mxu0 %v852
        %893 = vmatmul.f32.gmra.mxu0 %v845
        %v894 = vpop.f32.mrf.mxu0
        %v895 = vadd.f32 0.0, %v894
        %896 = vmatmul.f32.gmra.mxu0 %v848
        %v897 = vpop.f32.mrf.mxu0
        %v898 = vadd.f32 0.0, %v897
        %899 = vdwg.mxu0
        %v900 = vadd.f32 %v826, %v872
        %v901 = vadd.f32 %v827, %v895
        %v902 = vadd.f32 %v828, %v875
        %v903 = vadd.f32 %v829, %v898
        %s904 = scalar_lea.vmem %s1, 64
        %v905 = vld [vmem:[%s904] sm:$0xff]
        %v906 = vld [vmem:[%s904 + $0x8] sm:$0xff]
        %v907 = vld [vmem:[%s612] sm:$0xff]
        %909 = vst [vmem:[#allocation1] ss:$2 sm:$0xff] %v907
        %v910 = vld.sshfl [vmem:[#allocation1] sm:$0xff pattern:$0x75316420]
        %v911 = vld.sshfl [vmem:[#allocation1 + $0x8] sm:$0xff pattern:$0x75316420]
        %912 = vrot.lane.b32.xlu0 %v910, 111
        %v913 = vpop.permute.xlu0 %912
        %914 = vrot.lane.b32.xlu0 %v911, 111
        %v915 = vpop.permute.xlu0 %914
        %vm916 = vcmask 908288
        %v917 = vsel %vm916, %v913, %v915
        %v919 = vsel %vm639, %v905, 0
        %v922 = vsel %vm639, %v906, 0
        %v924 = vsel %vm646, %v917, 0
        %v926 = vsel %vm646, %v915, 0
        %928 = vmatpush.msra.mxu0 0.0
        %929 = vmatpush.msra.mxu0 0.0
        %930 = vmatpush.msra.mxu0 0.0
        %931 = vmatpush.msra.mxu0 0.0
        %932 = vmatpush.msra.mxu0 0.0
        %933 = vmatpush.msra.mxu0 0.0
        %934 = vmatpush.msra.mxu0 0.0
        %935 = vmatpush.msra.mxu0 0.0
        %936 = vmatpush.msra.mxu0 0.0
        %937 = vmatpush.msra.mxu0 0.0
        %938 = vmatpush.msra.mxu0 0.0
        %939 = vmatpush.msra.mxu0 0.0
        %940 = vmatpush.msra.mxu0 0.0
        %941 = vmatpush.msra.mxu0 0.0
        %942 = vmatpush.msra.mxu0 0.0
        %943 = vmatpush.msra.mxu0 %v924
        %944 = vmatmul.f32.gmra.mxu0 %v919
        %v945 = vpop.f32.mrf.mxu0
        %v946 = vadd.f32 0.0, %v945
        %947 = vmatmul.f32.gmra.mxu0 %v922
        %v948 = vpop.f32.mrf.mxu0
        %v949 = vadd.f32 0.0, %v948
        %950 = vdwg.mxu0
        %951 = vmatpush.msra.mxu0 0.0
        %952 = vmatpush.msra.mxu0 0.0
        %953 = vmatpush.msra.mxu0 0.0
        %954 = vmatpush.msra.mxu0 0.0
        %955 = vmatpush.msra.mxu0 0.0
        %956 = vmatpush.msra.mxu0 0.0
        %957 = vmatpush.msra.mxu0 0.0
        %958 = vmatpush.msra.mxu0 0.0
        %959 = vmatpush.msra.mxu0 0.0
        %960 = vmatpush.msra.mxu0 0.0
        %961 = vmatpush.msra.mxu0 0.0
        %962 = vmatpush.msra.mxu0 0.0
        %963 = vmatpush.msra.mxu0 0.0
        %964 = vmatpush.msra.mxu0 0.0
        %965 = vmatpush.msra.mxu0 0.0
        %966 = vmatpush.msra.mxu0 %v926
        %967 = vmatmul.f32.gmra.mxu0 %v919
        %v968 = vpop.f32.mrf.mxu0
        %v969 = vadd.f32 0.0, %v968
        %970 = vmatmul.f32.gmra.mxu0 %v922
        %v971 = vpop.f32.mrf.mxu0
        %v972 = vadd.f32 0.0, %v971
        %973 = vdwg.mxu0
        %v974 = vadd.f32 %v900, %v946
        %v975 = vadd.f32 %v901, %v969
        %v976 = vadd.f32 %v902, %v949
        %v977 = vadd.f32 %v903, %v972
        %s978 = scalar_lea.vmem %s1, 80
        %v979 = vld [vmem:[%s978] sm:$0xff]
        %v980 = vld [vmem:[%s978 + $0x8] sm:$0xff]
        %v981 = vld [vmem:[%s612] sm:$0xff]
        %983 = vst [vmem:[#allocation1] ss:$2 sm:$0xff] %v981
        %v984 = vld.sshfl [vmem:[#allocation1] sm:$0xff pattern:$0x75316420]
        %v985 = vld.sshfl [vmem:[#allocation1 + $0x8] sm:$0xff pattern:$0x75316420]
        %986 = vrot.lane.b32.xlu0 %v984, 110
        %v987 = vpop.permute.xlu0 %986
        %988 = vrot.lane.b32.xlu0 %v985, 110
        %v989 = vpop.permute.xlu0 %988
        %vm990 = vcmask 900096
        %v991 = vsel %vm990, %v987, %v989
        %v993 = vsel %vm639, %v979, 0
        %v996 = vsel %vm639, %v980, 0
        %v998 = vsel %vm646, %v991, 0
        %v1000 = vsel %vm646, %v989, 0
        %1002 = vmatpush.msra.mxu0 0.0
        %1003 = vmatpush.msra.mxu0 0.0
        %1004 = vmatpush.msra.mxu0 0.0
        %1005 = vmatpush.msra.mxu0 0.0
        %1006 = vmatpush.msra.mxu0 0.0
        %1007 = vmatpush.msra.mxu0 0.0
        %1008 = vmatpush.msra.mxu0 0.0
        %1009 = vmatpush.msra.mxu0 0.0
        %1010 = vmatpush.msra.mxu0 0.0
        %1011 = vmatpush.msra.mxu0 0.0
        %1012 = vmatpush.msra.mxu0 0.0
        %1013 = vmatpush.msra.mxu0 0.0
        %1014 = vmatpush.msra.mxu0 0.0
        %1015 = vmatpush.msra.mxu0 0.0
        %1016 = vmatpush.msra.mxu0 0.0
        %1017 = vmatpush.msra.mxu0 %v998
        %1018 = vmatmul.f32.gmra.mxu0 %v993
        %v1019 = vpop.f32.mrf.mxu0
        %v1020 = vadd.f32 0.0, %v1019
        %1021 = vmatmul.f32.gmra.mxu0 %v996
        %v1022 = vpop.f32.mrf.mxu0
        %v1023 = vadd.f32 0.0, %v1022
        %1024 = vdwg.mxu0
        %1025 = vmatpush.msra.mxu0 0.0
        %1026 = vmatpush.msra.mxu0 0.0
        %1027 = vmatpush.msra.mxu0 0.0
        %1028 = vmatpush.msra.mxu0 0.0
        %1029 = vmatpush.msra.mxu0 0.0
        %1030 = vmatpush.msra.mxu0 0.0
        %1031 = vmatpush.msra.mxu0 0.0
        %1032 = vmatpush.msra.mxu0 0.0
        %1033 = vmatpush.msra.mxu0 0.0
        %1034 = vmatpush.msra.mxu0 0.0
        %1035 = vmatpush.msra.mxu0 0.0
        %1036 = vmatpush.msra.mxu0 0.0
        %1037 = vmatpush.msra.mxu0 0.0
        %1038 = vmatpush.msra.mxu0 0.0
        %1039 = vmatpush.msra.mxu0 0.0
        %1040 = vmatpush.msra.mxu0 %v1000
        %1041 = vmatmul.f32.gmra.mxu0 %v993
        %v1042 = vpop.f32.mrf.mxu0
        %v1043 = vadd.f32 0.0, %v1042
        %1044 = vmatmul.f32.gmra.mxu0 %v996
        %v1045 = vpop.f32.mrf.mxu0
        %v1046 = vadd.f32 0.0, %v1045
        %1047 = vdwg.mxu0
        %v1048 = vadd.f32 %v974, %v1020
        %v1049 = vadd.f32 %v975, %v1043
        %v1050 = vadd.f32 %v976, %v1023
        %v1051 = vadd.f32 %v977, %v1046
        %s1052 = scalar_lea.vmem %s1, 96
        %v1053 = vld [vmem:[%s1052] sm:$0xff]
        %v1054 = vld [vmem:[%s1052 + $0x8] sm:$0xff]
        %v1055 = vld [vmem:[%s612] sm:$0xff]
        %1057 = vst [vmem:[#allocation1] ss:$2 sm:$0xff] %v1055
        %v1058 = vld.sshfl [vmem:[#allocation1] sm:$0xff pattern:$0x75316420]
        %v1059 = vld.sshfl [vmem:[#allocation1 + $0x8] sm:$0xff pattern:$0x75316420]
        %1060 = vrot.lane.b32.xlu0 %v1058, 96
        %v1061 = vpop.permute.xlu0 %1060
        %1062 = vrot.lane.b32.xlu0 %v1059, 96
        %v1063 = vpop.permute.xlu0 %1062
        %vm1064 = vcmask 785408
        %v1065 = vsel %vm1064, %v1061, %v1063
        %v1067 = vsel %vm639, %v1053, 0
        %v1070 = vsel %vm639, %v1054, 0
        %v1072 = vsel %vm646, %v1065, 0
        %v1074 = vsel %vm646, %v1063, 0
        %1076 = vmatpush.msra.mxu0 0.0
        %1077 = vmatpush.msra.mxu0 0.0
        %1078 = vmatpush.msra.mxu0 0.0
        %1079 = vmatpush.msra.mxu0 0.0
        %1080 = vmatpush.msra.mxu0 0.0
        %1081 = vmatpush.msra.mxu0 0.0
        %1082 = vmatpush.msra.mxu0 0.0
        %1083 = vmatpush.msra.mxu0 0.0
        %1084 = vmatpush.msra.mxu0 0.0
        %1085 = vmatpush.msra.mxu0 0.0
        %1086 = vmatpush.msra.mxu0 0.0
        %1087 = vmatpush.msra.mxu0 0.0
        %1088 = vmatpush.msra.mxu0 0.0
        %1089 = vmatpush.msra.mxu0 0.0
        %1090 = vmatpush.msra.mxu0 0.0
        %1091 = vmatpush.msra.mxu0 %v1072
        %1092 = vmatmul.f32.gmra.mxu0 %v1067
        %v1093 = vpop.f32.mrf.mxu0
        %v1094 = vadd.f32 0.0, %v1093
        %1095 = vmatmul.f32.gmra.mxu0 %v1070
        %v1096 = vpop.f32.mrf.mxu0
        %v1097 = vadd.f32 0.0, %v1096
        %1098 = vdwg.mxu0
        %1099 = vmatpush.msra.mxu0 0.0
        %1100 = vmatpush.msra.mxu0 0.0
        %1101 = vmatpush.msra.mxu0 0.0
        %1102 = vmatpush.msra.mxu0 0.0
        %1103 = vmatpush.msra.mxu0 0.0
        %1104 = vmatpush.msra.mxu0 0.0
        %1105 = vmatpush.msra.mxu0 0.0
        %1106 = vmatpush.msra.mxu0 0.0
        %1107 = vmatpush.msra.mxu0 0.0
        %1108 = vmatpush.msra.mxu0 0.0
        %1109 = vmatpush.msra.mxu0 0.0
        %1110 = vmatpush.msra.mxu0 0.0
        %1111 = vmatpush.msra.mxu0 0.0
        %1112 = vmatpush.msra.mxu0 0.0
        %1113 = vmatpush.msra.mxu0 0.0
        %1114 = vmatpush.msra.mxu0 %v1074
        %1115 = vmatmul.f32.gmra.mxu0 %v1067
        %v1116 = vpop.f32.mrf.mxu0
        %v1117 = vadd.f32 0.0, %v1116
        %1118 = vmatmul.f32.gmra.mxu0 %v1070
        %v1119 = vpop.f32.mrf.mxu0
        %v1120 = vadd.f32 0.0, %v1119
        %1121 = vdwg.mxu0
        %v1122 = vadd.f32 %v1048, %v1094
        %v1123 = vadd.f32 %v1049, %v1117
        %v1124 = vadd.f32 %v1050, %v1097
        %v1125 = vadd.f32 %v1051, %v1120
        %s1126 = scalar_lea.vmem %s1, 112
        %v1127 = vld [vmem:[%s1126] sm:$0xff]
        %v1128 = vld [vmem:[%s1126 + $0x8] sm:$0xff]
        %v1129 = vld [vmem:[%s612] sm:$0xff]
        %1131 = vst [vmem:[#allocation1] ss:$2 sm:$0xff] %v1129
        %v1132 = vld.sshfl [vmem:[#allocation1] sm:$0xff pattern:$0x75316420]
        %v1133 = vld.sshfl [vmem:[#allocation1 + $0x8] sm:$0xff pattern:$0x75316420]
        %1134 = vrot.lane.b32.xlu0 %v1132, 95
        %v1135 = vpop.permute.xlu0 %1134
        %1136 = vrot.lane.b32.xlu0 %v1133, 95
        %v1137 = vpop.permute.xlu0 %1136
        %vm1138 = vcmask 777216
        %v1139 = vsel %vm1138, %v1135, %v1137
        %v1141 = vsel %vm639, %v1127, 0
        %v1144 = vsel %vm639, %v1128, 0
        %v1146 = vsel %vm646, %v1139, 0
        %v1148 = vsel %vm646, %v1137, 0
        %1150 = vmatpush.msra.mxu0 0.0
        %1151 = vmatpush.msra.mxu0 0.0
        %1152 = vmatpush.msra.mxu0 0.0
        %1153 = vmatpush.msra.mxu0 0.0
        %1154 = vmatpush.msra.mxu0 0.0
        %1155 = vmatpush.msra.mxu0 0.0
        %1156 = vmatpush.msra.mxu0 0.0
        %1157 = vmatpush.msra.mxu0 0.0
        %1158 = vmatpush.msra.mxu0 0.0
        %1159 = vmatpush.msra.mxu0 0.0
        %1160 = vmatpush.msra.mxu0 0.0
        %1161 = vmatpush.msra.mxu0 0.0
        %1162 = vmatpush.msra.mxu0 0.0
        %1163 = vmatpush.msra.mxu0 0.0
        %1164 = vmatpush.msra.mxu0 0.0
        %1165 = vmatpush.msra.mxu0 %v1146
        %1166 = vmatmul.f32.gmra.mxu0 %v1141
        %v1167 = vpop.f32.mrf.mxu0
        %v1168 = vadd.f32 0.0, %v1167
        %1169 = vmatmul.f32.gmra.mxu0 %v1144
        %v1170 = vpop.f32.mrf.mxu0
        %v1171 = vadd.f32 0.0, %v1170
        %1172 = vdwg.mxu0
        %1173 = vmatpush.msra.mxu0 0.0
        %1174 = vmatpush.msra.mxu0 0.0
        %1175 = vmatpush.msra.mxu0 0.0
        %1176 = vmatpush.msra.mxu0 0.0
        %1177 = vmatpush.msra.mxu0 0.0
        %1178 = vmatpush.msra.mxu0 0.0
        %1179 = vmatpush.msra.mxu0 0.0
        %1180 = vmatpush.msra.mxu0 0.0
        %1181 = vmatpush.msra.mxu0 0.0
        %1182 = vmatpush.msra.mxu0 0.0
        %1183 = vmatpush.msra.mxu0 0.0
        %1184 = vmatpush.msra.mxu0 0.0
        %1185 = vmatpush.msra.mxu0 0.0
        %1186 = vmatpush.msra.mxu0 0.0
        %1187 = vmatpush.msra.mxu0 0.0
        %1188 = vmatpush.msra.mxu0 %v1148
        %1189 = vmatmul.f32.gmra.mxu0 %v1141
        %v1190 = vpop.f32.mrf.mxu0
        %v1191 = vadd.f32 0.0, %v1190
        %1192 = vmatmul.f32.gmra.mxu0 %v1144
        %v1193 = vpop.f32.mrf.mxu0
        %v1194 = vadd.f32 0.0, %v1193
        %1195 = vdwg.mxu0
        %v1196 = vadd.f32 %v1122, %v1168
        %v1197 = vadd.f32 %v1123, %v1191
        %v1198 = vadd.f32 %v1124, %v1171
        %v1199 = vadd.f32 %v1125, %v1194
        %s1200 = scalar_lea.vmem %s1, 128
        %v1201 = vld [vmem:[%s1200] sm:$0xff]
        %v1202 = vld [vmem:[%s1200 + $0x8] sm:$0xff]
        %v1203 = vld [vmem:[%s612] sm:$0xff]
        %1205 = vst [vmem:[#allocation1] ss:$2 sm:$0xff] %v1203
        %v1206 = vld.sshfl [vmem:[#allocation1] sm:$0xff pattern:$0x75316420]
        %v1207 = vld.sshfl [vmem:[#allocation1 + $0x8] sm:$0xff pattern:$0x75316420]
        %1208 = vrot.lane.b32.xlu0 %v1206, 94
        %v1209 = vpop.permute.xlu0 %1208
        %1210 = vrot.lane.b32.xlu0 %v1207, 94
        %v1211 = vpop.permute.xlu0 %1210
        %vm1212 = vcmask 769024
        %v1213 = vsel %vm1212, %v1209, %v1211
        %v1215 = vsel %vm639, %v1201, 0
        %v1218 = vsel %vm639, %v1202, 0
        %v1220 = vsel %vm646, %v1213, 0
        %v1222 = vsel %vm646, %v1211, 0
        %1224 = vmatpush.msra.mxu0 0.0
        %1225 = vmatpush.msra.mxu0 0.0
        %1226 = vmatpush.msra.mxu0 0.0
        %1227 = vmatpush.msra.mxu0 0.0
        %1228 = vmatpush.msra.mxu0 0.0
        %1229 = vmatpush.msra.mxu0 0.0
        %1230 = vmatpush.msra.mxu0 0.0
        %1231 = vmatpush.msra.mxu0 0.0
        %1232 = vmatpush.msra.mxu0 0.0
        %1233 = vmatpush.msra.mxu0 0.0
        %1234 = vmatpush.msra.mxu0 0.0
        %1235 = vmatpush.msra.mxu0 0.0
        %1236 = vmatpush.msra.mxu0 0.0
        %1237 = vmatpush.msra.mxu0 0.0
        %1238 = vmatpush.msra.mxu0 0.0
        %1239 = vmatpush.msra.mxu0 %v1220
        %1240 = vmatmul.f32.gmra.mxu0 %v1215
        %v1241 = vpop.f32.mrf.mxu0
        %v1242 = vadd.f32 0.0, %v1241
        %1243 = vmatmul.f32.gmra.mxu0 %v1218
        %v1244 = vpop.f32.mrf.mxu0
        %v1245 = vadd.f32 0.0, %v1244
        %1246 = vdwg.mxu0
        %1247 = vmatpush.msra.mxu0 0.0
        %1248 = vmatpush.msra.mxu0 0.0
        %1249 = vmatpush.msra.mxu0 0.0
        %1250 = vmatpush.msra.mxu0 0.0
        %1251 = vmatpush.msra.mxu0 0.0
        %1252 = vmatpush.msra.mxu0 0.0
        %1253 = vmatpush.msra.mxu0 0.0
        %1254 = vmatpush.msra.mxu0 0.0
        %1255 = vmatpush.msra.mxu0 0.0
        %1256 = vmatpush.msra.mxu0 0.0
        %1257 = vmatpush.msra.mxu0 0.0
        %1258 = vmatpush.msra.mxu0 0.0
        %1259 = vmatpush.msra.mxu0 0.0
        %1260 = vmatpush.msra.mxu0 0.0
        %1261 = vmatpush.msra.mxu0 0.0
        %1262 = vmatpush.msra.mxu0 %v1222
        %1263 = vmatmul.f32.gmra.mxu0 %v1215
        %v1264 = vpop.f32.mrf.mxu0
        %v1265 = vadd.f32 0.0, %v1264
        %1266 = vmatmul.f32.gmra.mxu0 %v1218
        %v1267 = vpop.f32.mrf.mxu0
        %v1268 = vadd.f32 0.0, %v1267
        %1269 = vdwg.mxu0
        %v1270 = vadd.f32 %v1196, %v1242
        %v1271 = vadd.f32 %v1197, %v1265
        %v1272 = vadd.f32 %v1198, %v1245
        %v1273 = vadd.f32 %v1199, %v1268
        %v1274 = vld [vmem:[%s2] sm:$0xff]
        %v1275 = vld [vmem:[%s2 + $0x8] sm:$0xff]
        %1277 = vset.pattern.permute.xlu0 0
        %1278 = vperm.xlu0 %1277, %v1274
        %v1279 = vpop.permute.xlu0 %1278
        %1282 = vset.pattern.permute.xlu0 0
        %1283 = vperm.xlu0 %1282, %v1275
        %v1284 = vpop.permute.xlu0 %1283
        %v1286 = vadd.f32 %v1270, %v1279
        %v1287 = vadd.f32 %v1271, %v1279
        %v1288 = vadd.f32 %v1272, %v1284
        %v1289 = vadd.f32 %v1273, %v1284
        %v1290 = vmax.f32 %v1286, 0.0
        %v1291 = vmax.f32 %v1287, 0.0
        %v1292 = vmax.f32 %v1288, 0.0
        %v1293 = vmax.f32 %v1289, 0.0
        %1294 = vst [vmem:[#allocation2] sm:$0xff] %v1290
        %1295 = vst.msk [vmem:[#allocation2 + $0x8] sm:$0xff] %vm1212, %v1291
        %1296 = vst [vmem:[#allocation2 + $0x10] sm:$0xff] %v1292
        %1297 = vst.msk [vmem:[#allocation2 + $0x18] sm:$0xff] %vm1212, %v1293
        %v1298 = vld [vmem:[#allocation2] sm:$0xff]
        %v1299 = vld [vmem:[#allocation2 + $0x8] sm:$0xff]
        %v1300 = vld [vmem:[#allocation2 + $0x10] sm:$0xff]
        %v1301 = vld [vmem:[#allocation2 + $0x18] sm:$0xff]
        %v1302 = vld [vmem:[%s9] sm:$0xff]
        %v1303 = vld [vmem:[%s9 + $0x8] sm:$0xff]
        %v1304 = vld [vmem:[%s9 + $0x10] sm:$0xff]
        %v1305 = vld [vmem:[%s9 + $0x18] sm:$0xff]
        %v1306 = vld [vmem:[%s9 + $0x20] sm:$0xff]
        %v1307 = vld [vmem:[%s9 + $0x28] sm:$0xff]
        %v1308 = vld [vmem:[%s9 + $0x30] sm:$0xff]
        %v1309 = vld [vmem:[%s9 + $0x38] sm:$0xff]
        %v1310 = vld [vmem:[%s9 + $0x40] sm:$0xff]
        %v1311 = vld [vmem:[%s9 + $0x48] sm:$0xff]
        %v1312 = vld [vmem:[%s9 + $0x50] sm:$0xff]
        %v1313 = vld [vmem:[%s9 + $0x58] sm:$0xff]
        %v1314 = vld [vmem:[%s9 + $0x60] sm:$0xff]
        %v1315 = vld [vmem:[%s9 + $0x68] sm:$0xff]
        %v1316 = vld [vmem:[%s9 + $0x70] sm:$0xff]
        %v1317 = vld [vmem:[%s9 + $0x78] sm:$0xff]
        %v1318 = vld [vmem:[%s9 + $0x80] sm:$0xff]
        %v1319 = vld [vmem:[%s9 + $0x88] sm:$0xff]
        %v1320 = vld [vmem:[%s9 + $0x90] sm:$0xff]
        %v1321 = vld [vmem:[%s9 + $0x98] sm:$0xff]
        %v1322 = vld [vmem:[%s9 + $0xa0] sm:$0xff]
        %v1323 = vld [vmem:[%s9 + $0xa8] sm:$0xff]
        %v1324 = vld [vmem:[%s9 + $0xb0] sm:$0xff]
        %v1325 = vld [vmem:[%s9 + $0xb8] sm:$0xff]
        %v1326 = vld [vmem:[%s9 + $0xc0] sm:$0xff]
        %v1327 = vld [vmem:[%s9 + $0xc8] sm:$0x1f]
        %vm1328 = vcmask 629760
        %v1330 = vsel %vm1328, %v1299, 0
        %v1333 = vsel %vm1328, %v1301, 0
        %vm1335 = vcmask 1044480
        %v1337 = vsel %vm1335, %v1327, 0
        %1339 = vmatpush.msra.mxu0 %v1317
        %1340 = vmatpush.msra.mxu0 %v1316
        %1341 = vmatpush.msra.mxu0 %v1315
        %1342 = vmatpush.msra.mxu0 %v1314
        %1343 = vmatpush.msra.mxu0 %v1313
        %1344 = vmatpush.msra.mxu0 %v1312
        %1345 = vmatpush.msra.mxu0 %v1311
        %1346 = vmatpush.msra.mxu0 %v1310
        %1347 = vmatpush.msra.mxu0 %v1309
        %1348 = vmatpush.msra.mxu0 %v1308
        %1349 = vmatpush.msra.mxu0 %v1307
        %1350 = vmatpush.msra.mxu0 %v1306
        %1351 = vmatpush.msra.mxu0 %v1305
        %1352 = vmatpush.msra.mxu0 %v1304
        %1353 = vmatpush.msra.mxu0 %v1303
        %1354 = vmatpush.msra.mxu0 %v1302
        %1355 = vmatmul.f32.gmra.mxu0 %v1298
        %v1356 = vpop.f32.mrf.mxu0
        %v1357 = vadd.f32 0.0, %v1356
        %1358 = vmatmul.f32.gmra.mxu0 %v1300
        %v1359 = vpop.f32.mrf.mxu0
        %v1360 = vadd.f32 0.0, %v1359
        %1361 = vdwg.mxu0
        %1362 = vmatpush.msra.mxu0 0.0
        %1363 = vmatpush.msra.mxu0 0.0
        %1364 = vmatpush.msra.mxu0 0.0
        %1365 = vmatpush.msra.mxu0 0.0
        %1366 = vmatpush.msra.mxu0 0.0
        %1367 = vmatpush.msra.mxu0 0.0
        %1368 = vmatpush.msra.mxu0 %v1337
        %1369 = vmatpush.msra.mxu0 %v1326
        %1370 = vmatpush.msra.mxu0 %v1325
        %1371 = vmatpush.msra.mxu0 %v1324
        %1372 = vmatpush.msra.mxu0 %v1323
        %1373 = vmatpush.msra.mxu0 %v1322
        %1374 = vmatpush.msra.mxu0 %v1321
        %1375 = vmatpush.msra.mxu0 %v1320
        %1376 = vmatpush.msra.mxu0 %v1319
        %1377 = vmatpush.msra.mxu0 %v1318
        %1378 = vmatmul.f32.gmra.mxu0 %v1330
        %v1379 = vpop.f32.mrf.mxu0
        %v1380 = vadd.f32 %v1357, %v1379
        %1381 = vmatmul.f32.gmra.mxu0 %v1333
        %v1382 = vpop.f32.mrf.mxu0
        %v1383 = vadd.f32 %v1360, %v1382
        %1384 = vdwg.mxu0
        %v1385 = vld [vmem:[%s10] sm:$0x1]
        %v1386 = vperm.slane %v1385, 0
        %1389 = vrot.lane.b32.xlu0 %v1298, 127
        %v1390 = vpop.permute.xlu0 %1389
        %1391 = vrot.lane.b32.xlu0 %v1299, 127
        %v1392 = vpop.permute.xlu0 %1391
        %1393 = vrot.lane.b32.xlu0 %v1300, 127
        %v1394 = vpop.permute.xlu0 %1393
        %1395 = vrot.lane.b32.xlu0 %v1301, 127
        %v1396 = vpop.permute.xlu0 %1395
        %v1397 = vsel %vm637, %v1390, %v1392
        %v1398 = vsel %vm637, %v1394, %v1396
        %v1401 = vsel %vm1328, %v1392, 0
        %v1403 = vsel %vm1328, %v1396, 0
        %1405 = vmatpush.msra.mxu0 %v1317
        %1406 = vmatpush.msra.mxu0 %v1316
        %1407 = vmatpush.msra.mxu0 %v1315
        %1408 = vmatpush.msra.mxu0 %v1314
        %1409 = vmatpush.msra.mxu0 %v1313
        %1410 = vmatpush.msra.mxu0 %v1312
        %1411 = vmatpush.msra.mxu0 %v1311
        %1412 = vmatpush.msra.mxu0 %v1310
        %1413 = vmatpush.msra.mxu0 %v1309
        %1414 = vmatpush.msra.mxu0 %v1308
        %1415 = vmatpush.msra.mxu0 %v1307
        %1416 = vmatpush.msra.mxu0 %v1306
        %1417 = vmatpush.msra.mxu0 %v1305
        %1418 = vmatpush.msra.mxu0 %v1304
        %1419 = vmatpush.msra.mxu0 %v1303
        %1420 = vmatpush.msra.mxu0 %v1302
        %1421 = vmatmul.f32.gmra.mxu0 %v1397
        %v1422 = vpop.f32.mrf.mxu0
        %v1423 = vadd.f32 0.0, %v1422
        %1424 = vmatmul.f32.gmra.mxu0 %v1398
        %v1425 = vpop.f32.mrf.mxu0
        %v1426 = vadd.f32 0.0, %v1425
        %1427 = vdwg.mxu0
        %1428 = vmatpush.msra.mxu0 0.0
        %1429 = vmatpush.msra.mxu0 0.0
        %1430 = vmatpush.msra.mxu0 0.0
        %1431 = vmatpush.msra.mxu0 0.0
        %1432 = vmatpush.msra.mxu0 0.0
        %1433 = vmatpush.msra.mxu0 0.0
        %1434 = vmatpush.msra.mxu0 %v1337
        %1435 = vmatpush.msra.mxu0 %v1326
        %1436 = vmatpush.msra.mxu0 %v1325
        %1437 = vmatpush.msra.mxu0 %v1324
        %1438 = vmatpush.msra.mxu0 %v1323
        %1439 = vmatpush.msra.mxu0 %v1322
        %1440 = vmatpush.msra.mxu0 %v1321
        %1441 = vmatpush.msra.mxu0 %v1320
        %1442 = vmatpush.msra.mxu0 %v1319
        %1443 = vmatpush.msra.mxu0 %v1318
        %1444 = vmatmul.f32.gmra.mxu0 %v1401
        %v1445 = vpop.f32.mrf.mxu0
        %v1446 = vadd.f32 %v1423, %v1445
        %1447 = vmatmul.f32.gmra.mxu0 %v1403
        %v1448 = vpop.f32.mrf.mxu0
        %v1449 = vadd.f32 %v1426, %v1448
        %1450 = vdwg.mxu0
        %s1451 = scalar_lea.vmem %s10, 1
        %v1452 = vld [vmem:[%s1451] sm:$0x1]
        %v1453 = vperm.slane %v1452, 0
        %vm1454 = vcmp.gt.f32.partialorder %v1446, %v1380
        %vm1455 = vcmp.gt.f32.partialorder %v1449, %v1383
        %v1456 = vsel %vm1454, %v1446, %v1380
        %v1457 = vsel %vm1455, %v1449, %v1383
        %v1458 = vsel %vm1454, %v1453, %v1386
        %v1459 = vsel %vm1455, %v1453, %v1386
        %1460 = vrot.lane.b32.xlu0 %v1298, 112
        %v1461 = vpop.permute.xlu0 %1460
        %1462 = vrot.lane.b32.xlu0 %v1299, 112
        %v1463 = vpop.permute.xlu0 %1462
        %1464 = vrot.lane.b32.xlu0 %v1300, 112
        %v1465 = vpop.permute.xlu0 %1464
        %1466 = vrot.lane.b32.xlu0 %v1301, 112
        %v1467 = vpop.permute.xlu0 %1466
        %v1468 = vsel %vm842, %v1461, %v1463
        %v1469 = vsel %vm842, %v1465, %v1467
        %v1472 = vsel %vm1328, %v1463, 0
        %v1474 = vsel %vm1328, %v1467, 0
        %1476 = vmatpush.msra.mxu0 %v1317
        %1477 = vmatpush.msra.mxu0 %v1316
        %1478 = vmatpush.msra.mxu0 %v1315
        %1479 = vmatpush.msra.mxu0 %v1314
        %1480 = vmatpush.msra.mxu0 %v1313
        %1481 = vmatpush.msra.mxu0 %v1312
        %1482 = vmatpush.msra.mxu0 %v1311
        %1483 = vmatpush.msra.mxu0 %v1310
        %1484 = vmatpush.msra.mxu0 %v1309
        %1485 = vmatpush.msra.mxu0 %v1308
        %1486 = vmatpush.msra.mxu0 %v1307
        %1487 = vmatpush.msra.mxu0 %v1306
        %1488 = vmatpush.msra.mxu0 %v1305
        %1489 = vmatpush.msra.mxu0 %v1304
        %1490 = vmatpush.msra.mxu0 %v1303
        %1491 = vmatpush.msra.mxu0 %v1302
        %1492 = vmatmul.f32.gmra.mxu0 %v1468
        %v1493 = vpop.f32.mrf.mxu0
        %v1494 = vadd.f32 0.0, %v1493
        %1495 = vmatmul.f32.gmra.mxu0 %v1469
        %v1496 = vpop.f32.mrf.mxu0
        %v1497 = vadd.f32 0.0, %v1496
        %1498 = vdwg.mxu0
        %1499 = vmatpush.msra.mxu0 0.0
        %1500 = vmatpush.msra.mxu0 0.0
        %1501 = vmatpush.msra.mxu0 0.0
        %1502 = vmatpush.msra.mxu0 0.0
        %1503 = vmatpush.msra.mxu0 0.0
        %1504 = vmatpush.msra.mxu0 0.0
        %1505 = vmatpush.msra.mxu0 %v1337
        %1506 = vmatpush.msra.mxu0 %v1326
        %1507 = vmatpush.msra.mxu0 %v1325
        %1508 = vmatpush.msra.mxu0 %v1324
        %1509 = vmatpush.msra.mxu0 %v1323
        %1510 = vmatpush.msra.mxu0 %v1322
        %1511 = vmatpush.msra.mxu0 %v1321
        %1512 = vmatpush.msra.mxu0 %v1320
        %1513 = vmatpush.msra.mxu0 %v1319
        %1514 = vmatpush.msra.mxu0 %v1318
        %1515 = vmatmul.f32.gmra.mxu0 %v1472
        %v1516 = vpop.f32.mrf.mxu0
        %v1517 = vadd.f32 %v1494, %v1516
        %1518 = vmatmul.f32.gmra.mxu0 %v1474
        %v1519 = vpop.f32.mrf.mxu0
        %v1520 = vadd.f32 %v1497, %v1519
        %1521 = vdwg.mxu0
        %s1522 = scalar_lea.vmem %s10, 2
        %v1523 = vld [vmem:[%s1522] sm:$0x1]
        %v1524 = vperm.slane %v1523, 0
        %vm1525 = vcmp.gt.f32.partialorder %v1517, %v1456
        %vm1526 = vcmp.gt.f32.partialorder %v1520, %v1457
        %v1527 = vsel %vm1525, %v1517, %v1456
        %v1528 = vsel %vm1526, %v1520, %v1457
        %v1529 = vsel %vm1525, %v1524, %v1458
        %v1530 = vsel %vm1526, %v1524, %v1459
        %1531 = vrot.lane.b32.xlu0 %v1298, 111
        %v1532 = vpop.permute.xlu0 %1531
        %1533 = vrot.lane.b32.xlu0 %v1299, 111
        %v1534 = vpop.permute.xlu0 %1533
        %1535 = vrot.lane.b32.xlu0 %v1300, 111
        %v1536 = vpop.permute.xlu0 %1535
        %1537 = vrot.lane.b32.xlu0 %v1301, 111
        %v1538 = vpop.permute.xlu0 %1537
        %v1539 = vsel %vm916, %v1532, %v1534
        %v1540 = vsel %vm916, %v1536, %v1538
        %v1543 = vsel %vm1328, %v1534, 0
        %v1545 = vsel %vm1328, %v1538, 0
        %1547 = vmatpush.msra.mxu0 %v1317
        %1548 = vmatpush.msra.mxu0 %v1316
        %1549 = vmatpush.msra.mxu0 %v1315
        %1550 = vmatpush.msra.mxu0 %v1314
        %1551 = vmatpush.msra.mxu0 %v1313
        %1552 = vmatpush.msra.mxu0 %v1312
        %1553 = vmatpush.msra.mxu0 %v1311
        %1554 = vmatpush.msra.mxu0 %v1310
        %1555 = vmatpush.msra.mxu0 %v1309
        %1556 = vmatpush.msra.mxu0 %v1308
        %1557 = vmatpush.msra.mxu0 %v1307
        %1558 = vmatpush.msra.mxu0 %v1306
        %1559 = vmatpush.msra.mxu0 %v1305
        %1560 = vmatpush.msra.mxu0 %v1304
        %1561 = vmatpush.msra.mxu0 %v1303
        %1562 = vmatpush.msra.mxu0 %v1302
        %1563 = vmatmul.f32.gmra.mxu0 %v1539
        %v1564 = vpop.f32.mrf.mxu0
        %v1565 = vadd.f32 0.0, %v1564
        %1566 = vmatmul.f32.gmra.mxu0 %v1540
        %v1567 = vpop.f32.mrf.mxu0
        %v1568 = vadd.f32 0.0, %v1567
        %1569 = vdwg.mxu0
        %1570 = vmatpush.msra.mxu0 0.0
        %1571 = vmatpush.msra.mxu0 0.0
        %1572 = vmatpush.msra.mxu0 0.0
        %1573 = vmatpush.msra.mxu0 0.0
        %1574 = vmatpush.msra.mxu0 0.0
        %1575 = vmatpush.msra.mxu0 0.0
        %1576 = vmatpush.msra.mxu0 %v1337
        %1577 = vmatpush.msra.mxu0 %v1326
        %1578 = vmatpush.msra.mxu0 %v1325
        %1579 = vmatpush.msra.mxu0 %v1324
        %1580 = vmatpush.msra.mxu0 %v1323
        %1581 = vmatpush.msra.mxu0 %v1322
        %1582 = vmatpush.msra.mxu0 %v1321
        %1583 = vmatpush.msra.mxu0 %v1320
        %1584 = vmatpush.msra.mxu0 %v1319
        %1585 = vmatpush.msra.mxu0 %v1318
        %1586 = vmatmul.f32.gmra.mxu0 %v1543
        %v1587 = vpop.f32.mrf.mxu0
        %v1588 = vadd.f32 %v1565, %v1587
        %1589 = vmatmul.f32.gmra.mxu0 %v1545
        %v1590 = vpop.f32.mrf.mxu0
        %v1591 = vadd.f32 %v1568, %v1590
        %1592 = vdwg.mxu0
        %s1593 = scalar_lea.vmem %s10, 3
        %v1594 = vld [vmem:[%s1593] sm:$0x1]
        %v1595 = vperm.slane %v1594, 0
        %vm1596 = vcmp.gt.f32.partialorder %v1588, %v1527
        %vm1597 = vcmp.gt.f32.partialorder %v1591, %v1528
        %v1598 = vsel %vm1596, %v1588, %v1527
        %v1599 = vsel %vm1597, %v1591, %v1528
        %v1600 = vsel %vm1596, %v1595, %v1529
        %v1601 = vsel %vm1597, %v1595, %v1530
        %vm1602 = vcmask 400384
        %1603 = vst.msk [vmem:[#allocation3] sm:$0xff] %vm1602, %v1598
        %1604 = vst.msk [vmem:[#allocation3 + $0x8] sm:$0xff] %vm1602, %v1599
        %v1605 = vld [vmem:[%s3] sm:$0xff]
        %v1606 = vld [vmem:[%s3 + $0x8] sm:$0xff]
        %v1607 = vld [vmem:[%s3 + $0x10] sm:$0xff]
        %v1608 = vld [vmem:[%s3 + $0x18] sm:$0xff]
        %v1609 = vld [vmem:[#allocation3] sm:$0xff]
        %v1610 = vld [vmem:[#allocation3 + $0x8] sm:$0xff]
        %s1611 = scalar_lea.vmem %s3, 32
        %v1612 = vld [vmem:[%s1611] sm:$0xff]
        %v1613 = vld [vmem:[%s1611 + $0x8] sm:$0xff]
        %v1614 = vld [vmem:[%s1611 + $0x10] sm:$0xff]
        %v1615 = vld [vmem:[%s1611 + $0x18] sm:$0xff]
        %1618 = vrot.lane.b32.xlu0 %v1609, 127
        %v1619 = vpop.permute.xlu0 %1618
        %1620 = vrot.lane.b32.xlu0 %v1610, 127
        %v1621 = vpop.permute.xlu0 %1620
        %vm1624 = vcmask 130048
        %v1626 = vsel %vm1624, %v1612, 0
        %v1629 = vsel %vm1624, %v1613, 0
        %v1632 = vsel %vm1624, %v1614, 0
        %v1635 = vsel %vm1624, %v1615, 0
        %1637 = vmatpush.msra.mxu0 0.0
        %1638 = vmatpush.msra.mxu0 0.0
        %1639 = vmatpush.msra.mxu0 0.0
        %1640 = vmatpush.msra.mxu0 0.0
        %1641 = vmatpush.msra.mxu0 0.0
        %1642 = vmatpush.msra.mxu0 0.0
        %1643 = vmatpush.msra.mxu0 0.0
        %1644 = vmatpush.msra.mxu0 0.0
        %1645 = vmatpush.msra.mxu0 0.0
        %1646 = vmatpush.msra.mxu0 0.0
        %1647 = vmatpush.msra.mxu0 0.0
        %1648 = vmatpush.msra.mxu0 0.0
        %1649 = vmatpush.msra.mxu0 0.0
        %1650 = vmatpush.msra.mxu0 0.0
        %1651 = vmatpush.msra.mxu0 %v1621
        %1652 = vmatpush.msra.mxu0 %v1619
        %1653 = vmatmul.f32.gmra.mxu0 %v1626
        %v1654 = vpop.f32.mrf.mxu0
        %v1655 = vadd.f32 0.0, %v1654
        %1656 = vmatmul.f32.gmra.mxu0 %v1629
        %v1657 = vpop.f32.mrf.mxu0
        %v1658 = vadd.f32 0.0, %v1657
        %1659 = vmatmul.f32.gmra.mxu0 %v1632
        %v1660 = vpop.f32.mrf.mxu0
        %v1661 = vadd.f32 0.0, %v1660
        %1662 = vmatmul.f32.gmra.mxu0 %v1635
        %v1663 = vpop.f32.mrf.mxu0
        %v1664 = vadd.f32 0.0, %v1663
        %1665 = vdwg.mxu0
        %v1667 = vsel %vm1624, %v1605, 0
        %v1670 = vsel %vm1624, %v1606, 0
        %v1673 = vsel %vm1624, %v1607, 0
        %v1676 = vsel %vm1624, %v1608, 0
        %1678 = vmatpush.msra.mxu0 0.0
        %1679 = vmatpush.msra.mxu0 0.0
        %1680 = vmatpush.msra.mxu0 0.0
        %1681 = vmatpush.msra.mxu0 0.0
        %1682 = vmatpush.msra.mxu0 0.0
        %1683 = vmatpush.msra.mxu0 0.0
        %1684 = vmatpush.msra.mxu0 0.0
        %1685 = vmatpush.msra.mxu0 0.0
        %1686 = vmatpush.msra.mxu0 0.0
        %1687 = vmatpush.msra.mxu0 0.0
        %1688 = vmatpush.msra.mxu0 0.0
        %1689 = vmatpush.msra.mxu0 0.0
        %1690 = vmatpush.msra.mxu0 0.0
        %1691 = vmatpush.msra.mxu0 0.0
        %1692 = vmatpush.msra.mxu0 %v1610
        %1693 = vmatpush.msra.mxu0 %v1609
        %1694 = vmatmul.f32.gmra.mxu0 %v1667
        %v1695 = vpop.f32.mrf.mxu0
        %v1696 = vadd.f32 %v1655, %v1695
        %1697 = vmatmul.f32.gmra.mxu0 %v1670
        %v1698 = vpop.f32.mrf.mxu0
        %v1699 = vadd.f32 %v1658, %v1698
        %1700 = vmatmul.f32.gmra.mxu0 %v1673
        %v1701 = vpop.f32.mrf.mxu0
        %v1702 = vadd.f32 %v1661, %v1701
        %1703 = vmatmul.f32.gmra.mxu0 %v1676
        %v1704 = vpop.f32.mrf.mxu0
        %v1705 = vadd.f32 %v1664, %v1704
        %1706 = vdwg.mxu0
        %s1707 = scalar_lea.vmem %s3, 64
        %v1708 = vld [vmem:[%s1707] sm:$0xff]
        %v1709 = vld [vmem:[%s1707 + $0x8] sm:$0xff]
        %v1710 = vld [vmem:[%s1707 + $0x10] sm:$0xff]
        %v1711 = vld [vmem:[%s1707 + $0x18] sm:$0xff]
        %1712 = vrot.lane.b32.xlu0 %v1609, 121
        %v1713 = vpop.permute.xlu0 %1712
        %1714 = vrot.lane.b32.xlu0 %v1610, 121
        %v1715 = vpop.permute.xlu0 %1714
        %v1719 = vsel %vm1624, %v1708, 0
        %v1722 = vsel %vm1624, %v1709, 0
        %v1725 = vsel %vm1624, %v1710, 0
        %v1728 = vsel %vm1624, %v1711, 0
        %1730 = vmatpush.msra.mxu0 0.0
        %1731 = vmatpush.msra.mxu0 0.0
        %1732 = vmatpush.msra.mxu0 0.0
        %1733 = vmatpush.msra.mxu0 0.0
        %1734 = vmatpush.msra.mxu0 0.0
        %1735 = vmatpush.msra.mxu0 0.0
        %1736 = vmatpush.msra.mxu0 0.0
        %1737 = vmatpush.msra.mxu0 0.0
        %1738 = vmatpush.msra.mxu0 0.0
        %1739 = vmatpush.msra.mxu0 0.0
        %1740 = vmatpush.msra.mxu0 0.0
        %1741 = vmatpush.msra.mxu0 0.0
        %1742 = vmatpush.msra.mxu0 0.0
        %1743 = vmatpush.msra.mxu0 0.0
        %1744 = vmatpush.msra.mxu0 %v1715
        %1745 = vmatpush.msra.mxu0 %v1713
        %1746 = vmatmul.f32.gmra.mxu0 %v1719
        %v1747 = vpop.f32.mrf.mxu0
        %v1748 = vadd.f32 0.0, %v1747
        %1749 = vmatmul.f32.gmra.mxu0 %v1722
        %v1750 = vpop.f32.mrf.mxu0
        %v1751 = vadd.f32 0.0, %v1750
        %1752 = vmatmul.f32.gmra.mxu0 %v1725
        %v1753 = vpop.f32.mrf.mxu0
        %v1754 = vadd.f32 0.0, %v1753
        %1755 = vmatmul.f32.gmra.mxu0 %v1728
        %v1756 = vpop.f32.mrf.mxu0
        %v1757 = vadd.f32 0.0, %v1756
        %1758 = vdwg.mxu0
        %v1759 = vadd.f32 %v1696, %v1748
        %v1760 = vadd.f32 %v1699, %v1751
        %v1761 = vadd.f32 %v1702, %v1754
        %v1762 = vadd.f32 %v1705, %v1757
        %s1763 = scalar_lea.vmem %s3, 96
        %v1764 = vld [vmem:[%s1763] sm:$0xff]
        %v1765 = vld [vmem:[%s1763 + $0x8] sm:$0xff]
        %v1766 = vld [vmem:[%s1763 + $0x10] sm:$0xff]
        %v1767 = vld [vmem:[%s1763 + $0x18] sm:$0xff]
        %1768 = vrot.lane.b32.xlu0 %v1609, 120
        %v1769 = vpop.permute.xlu0 %1768
        %1770 = vrot.lane.b32.xlu0 %v1610, 120
        %v1771 = vpop.permute.xlu0 %1770
        %v1775 = vsel %vm1624, %v1764, 0
        %v1778 = vsel %vm1624, %v1765, 0
        %v1781 = vsel %vm1624, %v1766, 0
        %v1784 = vsel %vm1624, %v1767, 0
        %1786 = vmatpush.msra.mxu0 0.0
        %1787 = vmatpush.msra.mxu0 0.0
        %1788 = vmatpush.msra.mxu0 0.0
        %1789 = vmatpush.msra.mxu0 0.0
        %1790 = vmatpush.msra.mxu0 0.0
        %1791 = vmatpush.msra.mxu0 0.0
        %1792 = vmatpush.msra.mxu0 0.0
        %1793 = vmatpush.msra.mxu0 0.0
        %1794 = vmatpush.msra.mxu0 0.0
        %1795 = vmatpush.msra.mxu0 0.0
        %1796 = vmatpush.msra.mxu0 0.0
        %1797 = vmatpush.msra.mxu0 0.0
        %1798 = vmatpush.msra.mxu0 0.0
        %1799 = vmatpush.msra.mxu0 0.0
        %1800 = vmatpush.msra.mxu0 %v1771
        %1801 = vmatpush.msra.mxu0 %v1769
        %1802 = vmatmul.f32.gmra.mxu0 %v1775
        %v1803 = vpop.f32.mrf.mxu0
        %v1804 = vadd.f32 0.0, %v1803
        %1805 = vmatmul.f32.gmra.mxu0 %v1778
        %v1806 = vpop.f32.mrf.mxu0
        %v1807 = vadd.f32 0.0, %v1806
        %1808 = vmatmul.f32.gmra.mxu0 %v1781
        %v1809 = vpop.f32.mrf.mxu0
        %v1810 = vadd.f32 0.0, %v1809
        %1811 = vmatmul.f32.gmra.mxu0 %v1784
        %v1812 = vpop.f32.mrf.mxu0
        %v1813 = vadd.f32 0.0, %v1812
        %1814 = vdwg.mxu0
        %v1815 = vadd.f32 %v1759, %v1804
        %v1816 = vadd.f32 %v1760, %v1807
        %v1817 = vadd.f32 %v1761, %v1810
        %v1818 = vadd.f32 %v1762, %v1813
        %v1819 = vld [vmem:[%s4] sm:$0xff]
        %v1820 = vld [vmem:[%s4 + $0x8] sm:$0xff]
        %v1821 = vld [vmem:[%s4 + $0x10] sm:$0xff]
        %v1822 = vld [vmem:[%s4 + $0x18] sm:$0xff]
        %1824 = vset.pattern.permute.xlu0 0
        %1825 = vperm.xlu0 %1824, %v1819
        %v1826 = vpop.permute.xlu0 %1825
        %1829 = vset.pattern.permute.xlu0 0
        %1830 = vperm.xlu0 %1829, %v1820
        %v1831 = vpop.permute.xlu0 %1830
        %1834 = vset.pattern.permute.xlu0 0
        %1835 = vperm.xlu0 %1834, %v1821
        %v1836 = vpop.permute.xlu0 %1835
        %1839 = vset.pattern.permute.xlu0 0
        %1840 = vperm.xlu0 %1839, %v1822
        %v1841 = vpop.permute.xlu0 %1840
        %v1843 = vadd.f32 %v1815, %v1826
        %v1844 = vadd.f32 %v1816, %v1831
        %v1845 = vadd.f32 %v1817, %v1836
        %v1846 = vadd.f32 %v1818, %v1841
        %v1847 = vmax.f32 %v1843, 0.0
        %v1848 = vmax.f32 %v1844, 0.0
        %v1849 = vmax.f32 %v1845, 0.0
        %v1850 = vmax.f32 %v1846, 0.0
        %vm1851 = vcmask 334848
        %1852 = vst.msk [vmem:[#allocation4] sm:$0xff] %vm1851, %v1847
        %1853 = vst.msk [vmem:[#allocation4 + $0x8] sm:$0xff] %vm1851, %v1848
        %1854 = vst.msk [vmem:[#allocation4 + $0x10] sm:$0xff] %vm1851, %v1849
        %1855 = vst.msk [vmem:[#allocation4 + $0x18] sm:$0xff] %vm1851, %v1850
        %v1856 = vld [vmem:[#allocation4] sm:$0xff]
        %v1857 = vld [vmem:[#allocation4 + $0x8] sm:$0xff]
        %v1858 = vld [vmem:[#allocation4 + $0x10] sm:$0xff]
        %v1859 = vld [vmem:[#allocation4 + $0x18] sm:$0xff]
        %v1860 = vld [vmem:[%s11] sm:$0xff]
        %v1861 = vld [vmem:[%s11 + $0x8] sm:$0xff]
        %v1862 = vld [vmem:[%s11 + $0x10] sm:$0xff]
        %v1863 = vld [vmem:[%s11 + $0x18] sm:$0xff]
        %v1864 = vld [vmem:[%s11 + $0x20] sm:$0x1]
        %vm1865 = vcmask 269312
        %v1867 = vsel %vm1865, %v1856, 0
        %v1870 = vsel %vm1865, %v1857, 0
        %v1873 = vsel %vm1865, %v1858, 0
        %v1876 = vsel %vm1865, %v1859, 0
        %vm1878 = vcmask 1040384
        %v1880 = vsel %vm1878, %v1864, 0
        %1882 = vmatpush.msra.mxu0 0.0
        %1883 = vmatpush.msra.mxu0 0.0
        %1884 = vmatpush.msra.mxu0 0.0
        %1885 = vmatpush.msra.mxu0 0.0
        %1886 = vmatpush.msra.mxu0 0.0
        %1887 = vmatpush.msra.mxu0 0.0
        %1888 = vmatpush.msra.mxu0 0.0
        %1889 = vmatpush.msra.mxu0 0.0
        %1890 = vmatpush.msra.mxu0 0.0
        %1891 = vmatpush.msra.mxu0 0.0
        %1892 = vmatpush.msra.mxu0 0.0
        %1893 = vmatpush.msra.mxu0 %v1880
        %1894 = vmatpush.msra.mxu0 %v1863
        %1895 = vmatpush.msra.mxu0 %v1862
        %1896 = vmatpush.msra.mxu0 %v1861
        %1897 = vmatpush.msra.mxu0 %v1860
        %1898 = vmatmul.f32.gmra.mxu0 %v1867
        %v1899 = vpop.f32.mrf.mxu0
        %v1900 = vadd.f32 0.0, %v1899
        %1901 = vmatmul.f32.gmra.mxu0 %v1870
        %v1902 = vpop.f32.mrf.mxu0
        %v1903 = vadd.f32 0.0, %v1902
        %1904 = vmatmul.f32.gmra.mxu0 %v1873
        %v1905 = vpop.f32.mrf.mxu0
        %v1906 = vadd.f32 0.0, %v1905
        %1907 = vmatmul.f32.gmra.mxu0 %v1876
        %v1908 = vpop.f32.mrf.mxu0
        %v1909 = vadd.f32 0.0, %v1908
        %1910 = vdwg.mxu0
        %v1911 = vld [vmem:[%s12] sm:$0x1]
        %v1912 = vperm.slane %v1911, 0
        %1913 = vrot.lane.b32.xlu0 %v1856, 127
        %v1914 = vpop.permute.xlu0 %1913
        %1915 = vrot.lane.b32.xlu0 %v1857, 127
        %v1916 = vpop.permute.xlu0 %1915
        %1917 = vrot.lane.b32.xlu0 %v1858, 127
        %v1918 = vpop.permute.xlu0 %1917
        %1919 = vrot.lane.b32.xlu0 %v1859, 127
        %v1920 = vpop.permute.xlu0 %1919
        %v1921 = vsel %vm1865, %v1914, 0
        %v1923 = vsel %vm1865, %v1916, 0
        %v1925 = vsel %vm1865, %v1918, 0
        %v1927 = vsel %vm1865, %v1920, 0
        %1929 = vmatpush.msra.mxu0 0.0
        %1930 = vmatpush.msra.mxu0 0.0
        %1931 = vmatpush.msra.mxu0 0.0
        %1932 = vmatpush.msra.mxu0 0.0
        %1933 = vmatpush.msra.mxu0 0.0
        %1934 = vmatpush.msra.mxu0 0.0
        %1935 = vmatpush.msra.mxu0 0.0
        %1936 = vmatpush.msra.mxu0 0.0
        %1937 = vmatpush.msra.mxu0 0.0
        %1938 = vmatpush.msra.mxu0 0.0
        %1939 = vmatpush.msra.mxu0 0.0
        %1940 = vmatpush.msra.mxu0 %v1880
        %1941 = vmatpush.msra.mxu0 %v1863
        %1942 = vmatpush.msra.mxu0 %v1862
        %1943 = vmatpush.msra.mxu0 %v1861
        %1944 = vmatpush.msra.mxu0 %v1860
        %1945 = vmatmul.f32.gmra.mxu0 %v1921
        %v1946 = vpop.f32.mrf.mxu0
        %v1947 = vadd.f32 0.0, %v1946
        %1948 = vmatmul.f32.gmra.mxu0 %v1923
        %v1949 = vpop.f32.mrf.mxu0
        %v1950 = vadd.f32 0.0, %v1949
        %1951 = vmatmul.f32.gmra.mxu0 %v1925
        %v1952 = vpop.f32.mrf.mxu0
        %v1953 = vadd.f32 0.0, %v1952
        %1954 = vmatmul.f32.gmra.mxu0 %v1927
        %v1955 = vpop.f32.mrf.mxu0
        %v1956 = vadd.f32 0.0, %v1955
        %1957 = vdwg.mxu0
        %s1958 = scalar_lea.vmem %s12, 1
        %v1959 = vld [vmem:[%s1958] sm:$0x1]
        %v1960 = vperm.slane %v1959, 0
        %vm1961 = vcmp.gt.f32.partialorder %v1947, %v1900
        %vm1962 = vcmp.gt.f32.partialorder %v1950, %v1903
        %vm1963 = vcmp.gt.f32.partialorder %v1953, %v1906
        %vm1964 = vcmp.gt.f32.partialorder %v1956, %v1909
        %v1965 = vsel %vm1961, %v1947, %v1900
        %v1966 = vsel %vm1962, %v1950, %v1903
        %v1967 = vsel %vm1963, %v1953, %v1906
        %v1968 = vsel %vm1964, %v1956, %v1909
        %v1969 = vsel %vm1961, %v1960, %v1912
        %v1970 = vsel %vm1962, %v1960, %v1912
        %v1971 = vsel %vm1963, %v1960, %v1912
        %v1972 = vsel %vm1964, %v1960, %v1912
        %1973 = vrot.lane.b32.xlu0 %v1856, 121
        %v1974 = vpop.permute.xlu0 %1973
        %1975 = vrot.lane.b32.xlu0 %v1857, 121
        %v1976 = vpop.permute.xlu0 %1975
        %1977 = vrot.lane.b32.xlu0 %v1858, 121
        %v1978 = vpop.permute.xlu0 %1977
        %1979 = vrot.lane.b32.xlu0 %v1859, 121
        %v1980 = vpop.permute.xlu0 %1979
        %v1981 = vsel %vm1865, %v1974, 0
        %v1983 = vsel %vm1865, %v1976, 0
        %v1985 = vsel %vm1865, %v1978, 0
        %v1987 = vsel %vm1865, %v1980, 0
        %1989 = vmatpush.msra.mxu0 0.0
        %1990 = vmatpush.msra.mxu0 0.0
        %1991 = vmatpush.msra.mxu0 0.0
        %1992 = vmatpush.msra.mxu0 0.0
        %1993 = vmatpush.msra.mxu0 0.0
        %1994 = vmatpush.msra.mxu0 0.0
        %1995 = vmatpush.msra.mxu0 0.0
        %1996 = vmatpush.msra.mxu0 0.0
        %1997 = vmatpush.msra.mxu0 0.0
        %1998 = vmatpush.msra.mxu0 0.0
        %1999 = vmatpush.msra.mxu0 0.0
        %2000 = vmatpush.msra.mxu0 %v1880
        %2001 = vmatpush.msra.mxu0 %v1863
        %2002 = vmatpush.msra.mxu0 %v1862
        %2003 = vmatpush.msra.mxu0 %v1861
        %2004 = vmatpush.msra.mxu0 %v1860
        %2005 = vmatmul.f32.gmra.mxu0 %v1981
        %v2006 = vpop.f32.mrf.mxu0
        %v2007 = vadd.f32 0.0, %v2006
        %2008 = vmatmul.f32.gmra.mxu0 %v1983
        %v2009 = vpop.f32.mrf.mxu0
        %v2010 = vadd.f32 0.0, %v2009
        %2011 = vmatmul.f32.gmra.mxu0 %v1985
        %v2012 = vpop.f32.mrf.mxu0
        %v2013 = vadd.f32 0.0, %v2012
        %2014 = vmatmul.f32.gmra.mxu0 %v1987
        %v2015 = vpop.f32.mrf.mxu0
        %v2016 = vadd.f32 0.0, %v2015
        %2017 = vdwg.mxu0
        %s2018 = scalar_lea.vmem %s12, 2
        %v2019 = vld [vmem:[%s2018] sm:$0x1]
        %v2020 = vperm.slane %v2019, 0
        %vm2021 = vcmp.gt.f32.partialorder %v2007, %v1965
        %vm2022 = vcmp.gt.f32.partialorder %v2010, %v1966
        %vm2023 = vcmp.gt.f32.partialorder %v2013, %v1967
        %vm2024 = vcmp.gt.f32.partialorder %v2016, %v1968
        %v2025 = vsel %vm2021, %v2007, %v1965
        %v2026 = vsel %vm2022, %v2010, %v1966
        %v2027 = vsel %vm2023, %v2013, %v1967
        %v2028 = vsel %vm2024, %v2016, %v1968
        %v2029 = vsel %vm2021, %v2020, %v1969
        %v2030 = vsel %vm2022, %v2020, %v1970
        %v2031 = vsel %vm2023, %v2020, %v1971
        %v2032 = vsel %vm2024, %v2020, %v1972
        %2033 = vrot.lane.b32.xlu0 %v1856, 120
        %v2034 = vpop.permute.xlu0 %2033
        %2035 = vrot.lane.b32.xlu0 %v1857, 120
        %v2036 = vpop.permute.xlu0 %2035
        %2037 = vrot.lane.b32.xlu0 %v1858, 120
        %v2038 = vpop.permute.xlu0 %2037
        %2039 = vrot.lane.b32.xlu0 %v1859, 120
        %v2040 = vpop.permute.xlu0 %2039
        %v2041 = vsel %vm1865, %v2034, 0
        %v2043 = vsel %vm1865, %v2036, 0
        %v2045 = vsel %vm1865, %v2038, 0
        %v2047 = vsel %vm1865, %v2040, 0
        %2049 = vmatpush.msra.mxu0 0.0
        %2050 = vmatpush.msra.mxu0 0.0
        %2051 = vmatpush.msra.mxu0 0.0
        %2052 = vmatpush.msra.mxu0 0.0
        %2053 = vmatpush.msra.mxu0 0.0
        %2054 = vmatpush.msra.mxu0 0.0
        %2055 = vmatpush.msra.mxu0 0.0
        %2056 = vmatpush.msra.mxu0 0.0
        %2057 = vmatpush.msra.mxu0 0.0
        %2058 = vmatpush.msra.mxu0 0.0
        %2059 = vmatpush.msra.mxu0 0.0
        %2060 = vmatpush.msra.mxu0 %v1880
        %2061 = vmatpush.msra.mxu0 %v1863
        %2062 = vmatpush.msra.mxu0 %v1862
        %2063 = vmatpush.msra.mxu0 %v1861
        %2064 = vmatpush.msra.mxu0 %v1860
        %2065 = vmatmul.f32.gmra.mxu0 %v2041
        %v2066 = vpop.f32.mrf.mxu0
        %v2067 = vadd.f32 0.0, %v2066
        %2068 = vmatmul.f32.gmra.mxu0 %v2043
        %v2069 = vpop.f32.mrf.mxu0
        %v2070 = vadd.f32 0.0, %v2069
        %2071 = vmatmul.f32.gmra.mxu0 %v2045
        %v2072 = vpop.f32.mrf.mxu0
        %v2073 = vadd.f32 0.0, %v2072
        %2074 = vmatmul.f32.gmra.mxu0 %v2047
        %v2075 = vpop.f32.mrf.mxu0
        %v2076 = vadd.f32 0.0, %v2075
        %2077 = vdwg.mxu0
        %s2078 = scalar_lea.vmem %s12, 3
        %v2079 = vld [vmem:[%s2078] sm:$0x1]
        %v2080 = vperm.slane %v2079, 0
        %vm2081 = vcmp.gt.f32.partialorder %v2067, %v2025
        %vm2082 = vcmp.gt.f32.partialorder %v2070, %v2026
        %vm2083 = vcmp.gt.f32.partialorder %v2073, %v2027
        %vm2084 = vcmp.gt.f32.partialorder %v2076, %v2028
        %v2085 = vsel %vm2081, %v2067, %v2025
        %v2086 = vsel %vm2082, %v2070, %v2026
        %v2087 = vsel %vm2083, %v2073, %v2027
        %v2088 = vsel %vm2084, %v2076, %v2028
        %v2089 = vsel %vm2081, %v2080, %v2029
        %v2090 = vsel %vm2082, %v2080, %v2030
        %v2091 = vsel %vm2083, %v2080, %v2031
        %v2092 = vsel %vm2084, %v2080, %v2032
        %vm2093 = vcmask 72704
        %2094 = vst.msk [vmem:[%s617] sm:$0xff] %vm2093, %v2085
        %2095 = vst.msk [vmem:[%s617 + $0x8] sm:$0xff] %vm2093, %v2086
        %2096 = vst.msk [vmem:[%s617 + $0x10] sm:$0xff] %vm2093, %v2087
        %2097 = vst.msk [vmem:[%s617 + $0x18] sm:$0xff] %vm2093, %v2088
        %v2098 = vmax.f32 %v2085, 0.0
        %v2099 = vmax.f32 %v2086, 0.0
        %v2100 = vmax.f32 %v2087, 0.0
        %v2101 = vmax.f32 %v2088, 0.0
        %v2102 = vld [vmem:[%s12] sm:$0x1]
        %v2103 = vperm.slane %v2102, 0
        %vm2104 = vcmp.eq.s32.totalorder %v2089, %v2103
        %vm2105 = vcmp.eq.s32.totalorder %v2090, %v2103
        %vm2106 = vcmp.eq.s32.totalorder %v2091, %v2103
        %vm2107 = vcmp.eq.s32.totalorder %v2092, %v2103
        %v2108 = vsel %vm2104, %v2098, 0.0
        %v2109 = vsel %vm2105, %v2099, 0.0
        %v2110 = vsel %vm2106, %v2100, 0.0
        %v2111 = vsel %vm2107, %v2101, 0.0
        %v2112 = vld [vmem:[%s13] sm:$0xff]
        %v2113 = vld [vmem:[%s13 + $0x8] sm:$0x1]
        %v2114 = vld [vmem:[%s1958] sm:$0x1]
        %v2115 = vperm.slane %v2114, 0
        %vm2116 = vcmp.eq.s32.totalorder %v2089, %v2115
        %vm2117 = vcmp.eq.s32.totalorder %v2090, %v2115
        %vm2118 = vcmp.eq.s32.totalorder %v2091, %v2115
        %vm2119 = vcmp.eq.s32.totalorder %v2092, %v2115
        %v2120 = vsel %vm2116, %v2098, 0.0
        %v2121 = vsel %vm2117, %v2099, 0.0
        %v2122 = vsel %vm2118, %v2100, 0.0
        %v2123 = vsel %vm2119, %v2101, 0.0
        %s2124 = scalar_lea.vmem %s13, 16
        %v2125 = vld [vmem:[%s2124] sm:$0xff]
        %v2126 = vld [vmem:[%s2124 + $0x8] sm:$0x1]
        %v2128 = vsel %vm2093, %v2120, 0
        %v2131 = vsel %vm2093, %v2121, 0
        %v2134 = vsel %vm2093, %v2122, 0
        %v2137 = vsel %vm2093, %v2123, 0
        %v2140 = vsel %vm1878, %v2126, 0
        %2142 = vmatpush.msra.mxu0 0.0
        %2143 = vmatpush.msra.mxu0 0.0
        %2144 = vmatpush.msra.mxu0 0.0
        %2145 = vmatpush.msra.mxu0 0.0
        %2146 = vmatpush.msra.mxu0 0.0
        %2147 = vmatpush.msra.mxu0 0.0
        %2148 = vmatpush.msra.mxu0 0.0
        %2149 = vmatpush.msra.mxu0 0.0
        %2150 = vmatpush.msra.mxu0 0.0
        %2151 = vmatpush.msra.mxu0 0.0
        %2152 = vmatpush.msra.mxu0 0.0
        %2153 = vmatpush.msra.mxu0 0.0
        %2154 = vmatpush.msra.mxu0 0.0
        %2155 = vmatpush.msra.mxu0 0.0
        %2156 = vmatpush.msra.mxu0 %v2140
        %2157 = vmatpush.msra.mxu0 %v2125
        %2158 = vmatmul.f32.gmra.mxu0 %v2128
        %v2159 = vpop.f32.mrf.mxu0
        %v2160 = vadd.f32 0.0, %v2159
        %2161 = vmatmul.f32.gmra.mxu0 %v2131
        %v2162 = vpop.f32.mrf.mxu0
        %v2163 = vadd.f32 0.0, %v2162
        %2164 = vmatmul.f32.gmra.mxu0 %v2134
        %v2165 = vpop.f32.mrf.mxu0
        %v2166 = vadd.f32 0.0, %v2165
        %2167 = vmatmul.f32.gmra.mxu0 %v2137
        %v2168 = vpop.f32.mrf.mxu0
        %v2169 = vadd.f32 0.0, %v2168
        %2170 = vdwg.mxu0
        %v2172 = vsel %vm2093, %v2108, 0
        %v2175 = vsel %vm2093, %v2109, 0
        %v2178 = vsel %vm2093, %v2110, 0
        %v2181 = vsel %vm2093, %v2111, 0
        %v2184 = vsel %vm1878, %v2113, 0
        %2186 = vmatpush.msra.mxu0 0.0
        %2187 = vmatpush.msra.mxu0 0.0
        %2188 = vmatpush.msra.mxu0 0.0
        %2189 = vmatpush.msra.mxu0 0.0
        %2190 = vmatpush.msra.mxu0 0.0
        %2191 = vmatpush.msra.mxu0 0.0
        %2192 = vmatpush.msra.mxu0 0.0
        %2193 = vmatpush.msra.mxu0 0.0
        %2194 = vmatpush.msra.mxu0 0.0
        %2195 = vmatpush.msra.mxu0 0.0
        %2196 = vmatpush.msra.mxu0 0.0
        %2197 = vmatpush.msra.mxu0 0.0
        %2198 = vmatpush.msra.mxu0 0.0
        %2199 = vmatpush.msra.mxu0 0.0
        %2200 = vmatpush.msra.mxu0 %v2184
        %2201 = vmatpush.msra.mxu0 %v2112
        %2202 = vmatmul.f32.gmra.mxu0 %v2172
        %v2203 = vpop.f32.mrf.mxu0
        %v2204 = vadd.f32 %v2160, %v2203
        %2205 = vmatmul.f32.gmra.mxu0 %v2175
        %v2206 = vpop.f32.mrf.mxu0
        %v2207 = vadd.f32 %v2163, %v2206
        %2208 = vmatmul.f32.gmra.mxu0 %v2178
        %v2209 = vpop.f32.mrf.mxu0
        %v2210 = vadd.f32 %v2166, %v2209
        %2211 = vmatmul.f32.gmra.mxu0 %v2181
        %v2212 = vpop.f32.mrf.mxu0
        %v2213 = vadd.f32 %v2169, %v2212
        %2214 = vdwg.mxu0
        %v2215 = vld [vmem:[%s2018] sm:$0x1]
        %v2216 = vperm.slane %v2215, 0
        %vm2217 = vcmp.eq.s32.totalorder %v2089, %v2216
        %vm2218 = vcmp.eq.s32.totalorder %v2090, %v2216
        %vm2219 = vcmp.eq.s32.totalorder %v2091, %v2216
        %vm2220 = vcmp.eq.s32.totalorder %v2092, %v2216
        %v2221 = vsel %vm2217, %v2098, 0.0
        %v2222 = vsel %vm2218, %v2099, 0.0
        %v2223 = vsel %vm2219, %v2100, 0.0
        %v2224 = vsel %vm2220, %v2101, 0.0
        %s2225 = scalar_lea.vmem %s13, 32
        %v2226 = vld [vmem:[%s2225] sm:$0xff]
        %v2227 = vld [vmem:[%s2225 + $0x8] sm:$0x1]
        %v2229 = vsel %vm2093, %v2221, 0
        %v2232 = vsel %vm2093, %v2222, 0
        %v2235 = vsel %vm2093, %v2223, 0
        %v2238 = vsel %vm2093, %v2224, 0
        %v2241 = vsel %vm1878, %v2227, 0
        %2243 = vmatpush.msra.mxu0 0.0
        %2244 = vmatpush.msra.mxu0 0.0
        %2245 = vmatpush.msra.mxu0 0.0
        %2246 = vmatpush.msra.mxu0 0.0
        %2247 = vmatpush.msra.mxu0 0.0
        %2248 = vmatpush.msra.mxu0 0.0
        %2249 = vmatpush.msra.mxu0 0.0
        %2250 = vmatpush.msra.mxu0 0.0
        %2251 = vmatpush.msra.mxu0 0.0
        %2252 = vmatpush.msra.mxu0 0.0
        %2253 = vmatpush.msra.mxu0 0.0
        %2254 = vmatpush.msra.mxu0 0.0
        %2255 = vmatpush.msra.mxu0 0.0
        %2256 = vmatpush.msra.mxu0 0.0
        %2257 = vmatpush.msra.mxu0 %v2241
        %2258 = vmatpush.msra.mxu0 %v2226
        %2259 = vmatmul.f32.gmra.mxu0 %v2229
        %v2260 = vpop.f32.mrf.mxu0
        %v2261 = vadd.f32 0.0, %v2260
        %2262 = vmatmul.f32.gmra.mxu0 %v2232
        %v2263 = vpop.f32.mrf.mxu0
        %v2264 = vadd.f32 0.0, %v2263
        %2265 = vmatmul.f32.gmra.mxu0 %v2235
        %v2266 = vpop.f32.mrf.mxu0
        %v2267 = vadd.f32 0.0, %v2266
        %2268 = vmatmul.f32.gmra.mxu0 %v2238
        %v2269 = vpop.f32.mrf.mxu0
        %v2270 = vadd.f32 0.0, %v2269
        %2271 = vdwg.mxu0
        %v2272 = vadd.f32 %v2204, %v2261
        %v2273 = vadd.f32 %v2207, %v2264
        %v2274 = vadd.f32 %v2210, %v2267
        %v2275 = vadd.f32 %v2213, %v2270
        %v2276 = vld [vmem:[%s2078] sm:$0x1]
        %v2277 = vperm.slane %v2276, 0
        %vm2278 = vcmp.eq.s32.totalorder %v2089, %v2277
        %vm2279 = vcmp.eq.s32.totalorder %v2090, %v2277
        %vm2280 = vcmp.eq.s32.totalorder %v2091, %v2277
        %vm2281 = vcmp.eq.s32.totalorder %v2092, %v2277
        %v2282 = vsel %vm2278, %v2098, 0.0
        %v2283 = vsel %vm2279, %v2099, 0.0
        %v2284 = vsel %vm2280, %v2100, 0.0
        %v2285 = vsel %vm2281, %v2101, 0.0
        %s2286 = scalar_lea.vmem %s13, 48
        %v2287 = vld [vmem:[%s2286] sm:$0xff]
        %v2288 = vld [vmem:[%s2286 + $0x8] sm:$0x1]
        %v2290 = vsel %vm2093, %v2282, 0
        %v2293 = vsel %vm2093, %v2283, 0
        %v2296 = vsel %vm2093, %v2284, 0
        %v2299 = vsel %vm2093, %v2285, 0
        %v2302 = vsel %vm1878, %v2288, 0
        %2304 = vmatpush.msra.mxu0 0.0
        %2305 = vmatpush.msra.mxu0 0.0
        %2306 = vmatpush.msra.mxu0 0.0
        %2307 = vmatpush.msra.mxu0 0.0
        %2308 = vmatpush.msra.mxu0 0.0
        %2309 = vmatpush.msra.mxu0 0.0
        %2310 = vmatpush.msra.mxu0 0.0
        %2311 = vmatpush.msra.mxu0 0.0
        %2312 = vmatpush.msra.mxu0 0.0
        %2313 = vmatpush.msra.mxu0 0.0
        %2314 = vmatpush.msra.mxu0 0.0
        %2315 = vmatpush.msra.mxu0 0.0
        %2316 = vmatpush.msra.mxu0 0.0
        %2317 = vmatpush.msra.mxu0 0.0
        %2318 = vmatpush.msra.mxu0 %v2302
        %2319 = vmatpush.msra.mxu0 %v2287
        %2320 = vmatmul.f32.gmra.mxu0 %v2290
        %v2321 = vpop.f32.mrf.mxu0
        %v2322 = vadd.f32 0.0, %v2321
        %2323 = vmatmul.f32.gmra.mxu0 %v2293
        %v2324 = vpop.f32.mrf.mxu0
        %v2325 = vadd.f32 0.0, %v2324
        %2326 = vmatmul.f32.gmra.mxu0 %v2296
        %v2327 = vpop.f32.mrf.mxu0
        %v2328 = vadd.f32 0.0, %v2327
        %2329 = vmatmul.f32.gmra.mxu0 %v2299
        %v2330 = vpop.f32.mrf.mxu0
        %v2331 = vadd.f32 0.0, %v2330
        %2332 = vdwg.mxu0
        %v2333 = vadd.f32 %v2272, %v2322
        %v2334 = vadd.f32 %v2273, %v2325
        %v2335 = vadd.f32 %v2274, %v2328
        %v2336 = vadd.f32 %v2275, %v2331
        %vm2337 = vcmask 523264
        %2338 = vst.msk [vmem:[#allocation5] sm:$0xff] %vm2337, %v2333
        %2339 = vst.msk [vmem:[#allocation5 + $0x8] sm:$0xff] %vm2337, %v2334
        %2340 = vst.msk [vmem:[#allocation5 + $0x10] sm:$0xff] %vm2337, %v2335
        %2341 = vst.msk [vmem:[#allocation5 + $0x18] sm:$0xff] %vm2337, %v2336
        %v2342 = vld [vmem:[%s5] sm:$0xff]
        %v2343 = vld [vmem:[%s5 + $0x8] sm:$0xff]
        %v2344 = vld [vmem:[#allocation5] sm:$0xff]
        %v2345 = vld [vmem:[#allocation5 + $0x8] sm:$0xff]
        %v2346 = vld [vmem:[#allocation5 + $0x10] sm:$0xff]
        %v2347 = vld [vmem:[#allocation5 + $0x18] sm:$0xff]
        %s2348 = scalar_lea.vmem %s5, 16
        %v2349 = vld [vmem:[%s2348] sm:$0xff]
        %v2350 = vld [vmem:[%s2348 + $0x8] sm:$0xff]
        %2355 = vrot.lane.b32.xlu0 %v2344, 127
        %v2356 = vpop.permute.xlu0 %2355
        %2357 = vrot.lane.b32.xlu0 %v2345, 127
        %v2358 = vpop.permute.xlu0 %2357
        %2359 = vrot.lane.b32.xlu0 %v2346, 127
        %v2360 = vpop.permute.xlu0 %2359
        %2361 = vrot.lane.b32.xlu0 %v2347, 127
        %v2362 = vpop.permute.xlu0 %2361
        %vm2367 = vcmask 261120
        %v2369 = vsel %vm2367, %v2349, 0
        %v2372 = vsel %vm2367, %v2350, 0
        %2374 = vmatpush.msra.mxu0 0.0
        %2375 = vmatpush.msra.mxu0 0.0
        %2376 = vmatpush.msra.mxu0 0.0
        %2377 = vmatpush.msra.mxu0 0.0
        %2378 = vmatpush.msra.mxu0 0.0
        %2379 = vmatpush.msra.mxu0 0.0
        %2380 = vmatpush.msra.mxu0 0.0
        %2381 = vmatpush.msra.mxu0 0.0
        %2382 = vmatpush.msra.mxu0 0.0
        %2383 = vmatpush.msra.mxu0 0.0
        %2384 = vmatpush.msra.mxu0 0.0
        %2385 = vmatpush.msra.mxu0 0.0
        %2386 = vmatpush.msra.mxu0 %v2362
        %2387 = vmatpush.msra.mxu0 %v2360
        %2388 = vmatpush.msra.mxu0 %v2358
        %2389 = vmatpush.msra.mxu0 %v2356
        %2390 = vmatmul.f32.gmra.mxu0 %v2369
        %v2391 = vpop.f32.mrf.mxu0
        %v2392 = vadd.f32 0.0, %v2391
        %2393 = vmatmul.f32.gmra.mxu0 %v2372
        %v2394 = vpop.f32.mrf.mxu0
        %v2395 = vadd.f32 0.0, %v2394
        %2396 = vdwg.mxu0
        %v2398 = vsel %vm2367, %v2342, 0
        %v2401 = vsel %vm2367, %v2343, 0
        %2403 = vmatpush.msra.mxu0 0.0
        %2404 = vmatpush.msra.mxu0 0.0
        %2405 = vmatpush.msra.mxu0 0.0
        %2406 = vmatpush.msra.mxu0 0.0
        %2407 = vmatpush.msra.mxu0 0.0
        %2408 = vmatpush.msra.mxu0 0.0
        %2409 = vmatpush.msra.mxu0 0.0
        %2410 = vmatpush.msra.mxu0 0.0
        %2411 = vmatpush.msra.mxu0 0.0
        %2412 = vmatpush.msra.mxu0 0.0
        %2413 = vmatpush.msra.mxu0 0.0
        %2414 = vmatpush.msra.mxu0 0.0
        %2415 = vmatpush.msra.mxu0 %v2347
        %2416 = vmatpush.msra.mxu0 %v2346
        %2417 = vmatpush.msra.mxu0 %v2345
        %2418 = vmatpush.msra.mxu0 %v2344
        %2419 = vmatmul.f32.gmra.mxu0 %v2398
        %v2420 = vpop.f32.mrf.mxu0
        %v2421 = vadd.f32 %v2392, %v2420
        %2422 = vmatmul.f32.gmra.mxu0 %v2401
        %v2423 = vpop.f32.mrf.mxu0
        %v2424 = vadd.f32 %v2395, %v2423
        %2425 = vdwg.mxu0
        %s2426 = scalar_lea.vmem %s5, 32
        %v2427 = vld [vmem:[%s2426] sm:$0xff]
        %v2428 = vld [vmem:[%s2426 + $0x8] sm:$0xff]
        %2429 = vrot.lane.b32.xlu0 %v2344, 120
        %v2430 = vpop.permute.xlu0 %2429
        %2431 = vrot.lane.b32.xlu0 %v2345, 120
        %v2432 = vpop.permute.xlu0 %2431
        %2433 = vrot.lane.b32.xlu0 %v2346, 120
        %v2434 = vpop.permute.xlu0 %2433
        %2435 = vrot.lane.b32.xlu0 %v2347, 120
        %v2436 = vpop.permute.xlu0 %2435
        %v2442 = vsel %vm2367, %v2427, 0
        %v2445 = vsel %vm2367, %v2428, 0
        %2447 = vmatpush.msra.mxu0 0.0
        %2448 = vmatpush.msra.mxu0 0.0
        %2449 = vmatpush.msra.mxu0 0.0
        %2450 = vmatpush.msra.mxu0 0.0
        %2451 = vmatpush.msra.mxu0 0.0
        %2452 = vmatpush.msra.mxu0 0.0
        %2453 = vmatpush.msra.mxu0 0.0
        %2454 = vmatpush.msra.mxu0 0.0
        %2455 = vmatpush.msra.mxu0 0.0
        %2456 = vmatpush.msra.mxu0 0.0
        %2457 = vmatpush.msra.mxu0 0.0
        %2458 = vmatpush.msra.mxu0 0.0
        %2459 = vmatpush.msra.mxu0 %v2436
        %2460 = vmatpush.msra.mxu0 %v2434
        %2461 = vmatpush.msra.mxu0 %v2432
        %2462 = vmatpush.msra.mxu0 %v2430
        %2463 = vmatmul.f32.gmra.mxu0 %v2442
        %v2464 = vpop.f32.mrf.mxu0
        %v2465 = vadd.f32 0.0, %v2464
        %2466 = vmatmul.f32.gmra.mxu0 %v2445
        %v2467 = vpop.f32.mrf.mxu0
        %v2468 = vadd.f32 0.0, %v2467
        %2469 = vdwg.mxu0
        %v2470 = vadd.f32 %v2421, %v2465
        %v2471 = vadd.f32 %v2424, %v2468
        %s2472 = scalar_lea.vmem %s5, 48
        %v2473 = vld [vmem:[%s2472] sm:$0xff]
        %v2474 = vld [vmem:[%s2472 + $0x8] sm:$0xff]
        %2475 = vrot.lane.b32.xlu0 %v2344, 119
        %v2476 = vpop.permute.xlu0 %2475
        %2477 = vrot.lane.b32.xlu0 %v2345, 119
        %v2478 = vpop.permute.xlu0 %2477
        %2479 = vrot.lane.b32.xlu0 %v2346, 119
        %v2480 = vpop.permute.xlu0 %2479
        %2481 = vrot.lane.b32.xlu0 %v2347, 119
        %v2482 = vpop.permute.xlu0 %2481
        %v2488 = vsel %vm2367, %v2473, 0
        %v2491 = vsel %vm2367, %v2474, 0
        %2493 = vmatpush.msra.mxu0 0.0
        %2494 = vmatpush.msra.mxu0 0.0
        %2495 = vmatpush.msra.mxu0 0.0
        %2496 = vmatpush.msra.mxu0 0.0
        %2497 = vmatpush.msra.mxu0 0.0
        %2498 = vmatpush.msra.mxu0 0.0
        %2499 = vmatpush.msra.mxu0 0.0
        %2500 = vmatpush.msra.mxu0 0.0
        %2501 = vmatpush.msra.mxu0 0.0
        %2502 = vmatpush.msra.mxu0 0.0
        %2503 = vmatpush.msra.mxu0 0.0
        %2504 = vmatpush.msra.mxu0 0.0
        %2505 = vmatpush.msra.mxu0 %v2482
        %2506 = vmatpush.msra.mxu0 %v2480
        %2507 = vmatpush.msra.mxu0 %v2478
        %2508 = vmatpush.msra.mxu0 %v2476
        %2509 = vmatmul.f32.gmra.mxu0 %v2488
        %v2510 = vpop.f32.mrf.mxu0
        %v2511 = vadd.f32 0.0, %v2510
        %2512 = vmatmul.f32.gmra.mxu0 %v2491
        %v2513 = vpop.f32.mrf.mxu0
        %v2514 = vadd.f32 0.0, %v2513
        %2515 = vdwg.mxu0
        %v2516 = vadd.f32 %v2470, %v2511
        %v2517 = vadd.f32 %v2471, %v2514
        %v2518 = vld [vmem:[%s6] sm:$0xff]
        %v2519 = vld [vmem:[%s6 + $0x8] sm:$0xff]
        %2521 = vset.pattern.permute.xlu0 0
        %2522 = vperm.xlu0 %2521, %v2518
        %v2523 = vpop.permute.xlu0 %2522
        %2526 = vset.pattern.permute.xlu0 0
        %2527 = vperm.xlu0 %2526, %v2519
        %v2528 = vpop.permute.xlu0 %2527
        %v2530 = vadd.f32 %v2516, %v2523
        %v2531 = vadd.f32 %v2517, %v2528
        %v2532 = vld [vmem:[%s14] sm:$0xff]
        %v2533 = vld [vmem:[%s14 + $0x8] sm:$0xff]
        %v2534 = vld [vmem:[%s14 + $0x10] sm:$0xff]
        %v2535 = vld [vmem:[%s14 + $0x18] sm:$0xff]
        %v2536 = vld [vmem:[%s14 + $0x20] sm:$0xff]
        %v2537 = vld [vmem:[%s14 + $0x28] sm:$0xff]
        %v2538 = vld [vmem:[%s14 + $0x30] sm:$0x7f]
        %vm2539 = vcmask 449536
        %v2541 = vsel %vm2539, %v2530, 0
        %v2544 = vsel %vm2539, %v2531, 0
        %vm2546 = vcmask 1046528
        %v2548 = vsel %vm2546, %v2538, 0
        %2550 = vmatpush.msra.mxu0 0.0
        %2551 = vmatpush.msra.mxu0 0.0
        %2552 = vmatpush.msra.mxu0 0.0
        %2553 = vmatpush.msra.mxu0 0.0
        %2554 = vmatpush.msra.mxu0 0.0
        %2555 = vmatpush.msra.mxu0 0.0
        %2556 = vmatpush.msra.mxu0 0.0
        %2557 = vmatpush.msra.mxu0 0.0
        %2558 = vmatpush.msra.mxu0 0.0
        %2559 = vmatpush.msra.mxu0 %v2548
        %2560 = vmatpush.msra.mxu0 %v2537
        %2561 = vmatpush.msra.mxu0 %v2536
        %2562 = vmatpush.msra.mxu0 %v2535
        %2563 = vmatpush.msra.mxu0 %v2534
        %2564 = vmatpush.msra.mxu0 %v2533
        %2565 = vmatpush.msra.mxu0 %v2532
        %2566 = vmatmul.f32.gmra.mxu0 %v2541
        %v2567 = vpop.f32.mrf.mxu0
        %v2568 = vadd.f32 0.0, %v2567
        %2569 = vmatmul.f32.gmra.mxu0 %v2544
        %v2570 = vpop.f32.mrf.mxu0
        %v2571 = vadd.f32 0.0, %v2570
        %2572 = vdwg.mxu0
        %v2573 = vmax.f32 %v2568, 0.0
        %v2574 = vmax.f32 %v2571, 0.0
        %v2575 = vld [vmem:[%s10] sm:$0x1]
        %v2576 = vperm.slane %v2575, 0
        %vm2577 = vcmp.eq.s32.totalorder %v1600, %v2576
        %vm2578 = vcmp.eq.s32.totalorder %v1601, %v2576
        %v2579 = vsel %vm2577, %v2573, 0.0
        %v2580 = vsel %vm2578, %v2574, 0.0
        %v2581 = vld [vmem:[#allocation7] sm:$0xff]
        %v2582 = vld [vmem:[#allocation7 + $0x8] sm:$0xff]
        %v2583 = vld [vmem:[#allocation7 + $0x10] sm:$0xff]
        %v2584 = vld [vmem:[#allocation7 + $0x18] sm:$0xff]
        %v2585 = vld [vmem:[#allocation7 + $0x20] sm:$0xff]
        %v2586 = vld [vmem:[#allocation7 + $0x28] sm:$0xff]
        %v2587 = vld [vmem:[#allocation7 + $0x30] sm:$0xff]
        %v2588 = vld [vmem:[#allocation7 + $0x38] sm:$0xff]
        %v2589 = vld [vmem:[#allocation7 + $0x40] sm:$0xff]
        %v2590 = vld [vmem:[#allocation7 + $0x48] sm:$0xff]
        %v2591 = vld [vmem:[#allocation7 + $0x50] sm:$0xff]
        %v2592 = vld [vmem:[#allocation7 + $0x58] sm:$0xff]
        %v2593 = vld [vmem:[#allocation7 + $0x60] sm:$0xff]
        %v2594 = vld [vmem:[#allocation7 + $0x68] sm:$0xff]
        %v2595 = vld [vmem:[#allocation7 + $0x70] sm:$0xff]
        %v2596 = vld [vmem:[#allocation7 + $0x78] sm:$0xff]
        %v2597 = vld [vmem:[#allocation7 + $0x80] sm:$0xff]
        %v2598 = vld [vmem:[#allocation7 + $0x88] sm:$0xff]
        %v2599 = vld [vmem:[#allocation7 + $0x90] sm:$0x1]
        %v2600 = vld [vmem:[#allocation7 + $0x98] sm:$0x1]
        %v2601 = vld [vmem:[#allocation7 + $0xa0] sm:$0x1]
        %v2602 = vld [vmem:[%s1451] sm:$0x1]
        %v2603 = vperm.slane %v2602, 0
        %vm2604 = vcmp.eq.s32.totalorder %v1600, %v2603
        %vm2605 = vcmp.eq.s32.totalorder %v1601, %v2603
        %v2606 = vsel %vm2604, %v2573, 0.0
        %v2607 = vsel %vm2605, %v2574, 0.0
        %s2608 = scalar_lea.vmem [#allocation7], 168
        %v2609 = vld [vmem:[%s2608] sm:$0xff]
        %v2610 = vld [vmem:[%s2608 + $0x8] sm:$0xff]
        %v2611 = vld [vmem:[%s2608 + $0x10] sm:$0xff]
        %v2612 = vld [vmem:[%s2608 + $0x18] sm:$0xff]
        %v2613 = vld [vmem:[%s2608 + $0x20] sm:$0xff]
        %v2614 = vld [vmem:[%s2608 + $0x28] sm:$0xff]
        %v2615 = vld [vmem:[%s2608 + $0x30] sm:$0xff]
        %v2616 = vld [vmem:[%s2608 + $0x38] sm:$0xff]
        %v2617 = vld [vmem:[%s2608 + $0x40] sm:$0xff]
        %v2618 = vld [vmem:[%s2608 + $0x48] sm:$0xff]
        %v2619 = vld [vmem:[%s2608 + $0x50] sm:$0xff]
        %v2620 = vld [vmem:[%s2608 + $0x58] sm:$0xff]
        %v2621 = vld [vmem:[%s2608 + $0x60] sm:$0xff]
        %v2622 = vld [vmem:[%s2608 + $0x68] sm:$0xff]
        %v2623 = vld [vmem:[%s2608 + $0x70] sm:$0xff]
        %v2624 = vld [vmem:[%s2608 + $0x78] sm:$0xff]
        %v2625 = vld [vmem:[%s2608 + $0x80] sm:$0xff]
        %v2626 = vld [vmem:[%s2608 + $0x88] sm:$0xff]
        %v2627 = vld [vmem:[%s2608 + $0x90] sm:$0x1]
        %v2628 = vld [vmem:[%s2608 + $0x98] sm:$0x1]
        %v2629 = vld [vmem:[%s2608 + $0xa0] sm:$0x1]
        %v2631 = vsel %vm1602, %v2606, 0
        %v2634 = vsel %vm1602, %v2607, 0
        %v2637 = vsel %vm1878, %v2627, 0
        %v2640 = vsel %vm1878, %v2628, 0
        %v2643 = vsel %vm1878, %v2629, 0
        %2645 = vmatpush.msra.mxu0 0.0
        %2646 = vmatpush.msra.mxu0 0.0
        %2647 = vmatpush.msra.mxu0 0.0
        %2648 = vmatpush.msra.mxu0 0.0
        %2649 = vmatpush.msra.mxu0 0.0
        %2650 = vmatpush.msra.mxu0 0.0
        %2651 = vmatpush.msra.mxu0 0.0
        %2652 = vmatpush.msra.mxu0 0.0
        %2653 = vmatpush.msra.mxu0 0.0
        %2654 = vmatpush.msra.mxu0 %v2637
        %2655 = vmatpush.msra.mxu0 %v2624
        %2656 = vmatpush.msra.mxu0 %v2621
        %2657 = vmatpush.msra.mxu0 %v2618
        %2658 = vmatpush.msra.mxu0 %v2615
        %2659 = vmatpush.msra.mxu0 %v2612
        %2660 = vmatpush.msra.mxu0 %v2609
        %2661 = vmatmul.f32.gmra.mxu0 %v2631
        %v2662 = vpop.f32.mrf.mxu0
        %v2663 = vadd.f32 0.0, %v2662
        %2664 = vmatmul.f32.gmra.mxu0 %v2634
        %v2665 = vpop.f32.mrf.mxu0
        %v2666 = vadd.f32 0.0, %v2665
        %2667 = vdwg.mxu0
        %2668 = vmatpush.msra.mxu0 0.0
        %2669 = vmatpush.msra.mxu0 0.0
        %2670 = vmatpush.msra.mxu0 0.0
        %2671 = vmatpush.msra.mxu0 0.0
        %2672 = vmatpush.msra.mxu0 0.0
        %2673 = vmatpush.msra.mxu0 0.0
        %2674 = vmatpush.msra.mxu0 0.0
        %2675 = vmatpush.msra.mxu0 0.0
        %2676 = vmatpush.msra.mxu0 0.0
        %2677 = vmatpush.msra.mxu0 %v2640
        %2678 = vmatpush.msra.mxu0 %v2625
        %2679 = vmatpush.msra.mxu0 %v2622
        %2680 = vmatpush.msra.mxu0 %v2619
        %2681 = vmatpush.msra.mxu0 %v2616
        %2682 = vmatpush.msra.mxu0 %v2613
        %2683 = vmatpush.msra.mxu0 %v2610
        %2684 = vmatmul.f32.gmra.mxu0 %v2631
        %v2685 = vpop.f32.mrf.mxu0
        %v2686 = vadd.f32 0.0, %v2685
        %2687 = vmatmul.f32.gmra.mxu0 %v2634
        %v2688 = vpop.f32.mrf.mxu0
        %v2689 = vadd.f32 0.0, %v2688
        %2690 = vdwg.mxu0
        %2691 = vmatpush.msra.mxu0 0.0
        %2692 = vmatpush.msra.mxu0 0.0
        %2693 = vmatpush.msra.mxu0 0.0
        %2694 = vmatpush.msra.mxu0 0.0
        %2695 = vmatpush.msra.mxu0 0.0
        %2696 = vmatpush.msra.mxu0 0.0
        %2697 = vmatpush.msra.mxu0 0.0
        %2698 = vmatpush.msra.mxu0 0.0
        %2699 = vmatpush.msra.mxu0 0.0
        %2700 = vmatpush.msra.mxu0 %v2643
        %2701 = vmatpush.msra.mxu0 %v2626
        %2702 = vmatpush.msra.mxu0 %v2623
        %2703 = vmatpush.msra.mxu0 %v2620
        %2704 = vmatpush.msra.mxu0 %v2617
        %2705 = vmatpush.msra.mxu0 %v2614
        %2706 = vmatpush.msra.mxu0 %v2611
        %2707 = vmatmul.f32.gmra.mxu0 %v2631
        %v2708 = vpop.f32.mrf.mxu0
        %v2709 = vadd.f32 0.0, %v2708
        %2710 = vmatmul.f32.gmra.mxu0 %v2634
        %v2711 = vpop.f32.mrf.mxu0
        %v2712 = vadd.f32 0.0, %v2711
        %2713 = vdwg.mxu0
        %v2715 = vsel %vm1602, %v2579, 0
        %v2718 = vsel %vm1602, %v2580, 0
        %v2721 = vsel %vm1878, %v2599, 0
        %v2724 = vsel %vm1878, %v2600, 0
        %v2727 = vsel %vm1878, %v2601, 0
        %2729 = vmatpush.msra.mxu0 0.0
        %2730 = vmatpush.msra.mxu0 0.0
        %2731 = vmatpush.msra.mxu0 0.0
        %2732 = vmatpush.msra.mxu0 0.0
        %2733 = vmatpush.msra.mxu0 0.0
        %2734 = vmatpush.msra.mxu0 0.0
        %2735 = vmatpush.msra.mxu0 0.0
        %2736 = vmatpush.msra.mxu0 0.0
        %2737 = vmatpush.msra.mxu0 0.0
        %2738 = vmatpush.msra.mxu0 %v2721
        %2739 = vmatpush.msra.mxu0 %v2596
        %2740 = vmatpush.msra.mxu0 %v2593
        %2741 = vmatpush.msra.mxu0 %v2590
        %2742 = vmatpush.msra.mxu0 %v2587
        %2743 = vmatpush.msra.mxu0 %v2584
        %2744 = vmatpush.msra.mxu0 %v2581
        %2745 = vmatmul.f32.gmra.mxu0 %v2715
        %v2746 = vpop.f32.mrf.mxu0
        %v2747 = vadd.f32 %v2663, %v2746
        %2748 = vmatmul.f32.gmra.mxu0 %v2718
        %v2749 = vpop.f32.mrf.mxu0
        %v2750 = vadd.f32 %v2666, %v2749
        %2751 = vdwg.mxu0
        %2752 = vmatpush.msra.mxu0 0.0
        %2753 = vmatpush.msra.mxu0 0.0
        %2754 = vmatpush.msra.mxu0 0.0
        %2755 = vmatpush.msra.mxu0 0.0
        %2756 = vmatpush.msra.mxu0 0.0
        %2757 = vmatpush.msra.mxu0 0.0
        %2758 = vmatpush.msra.mxu0 0.0
        %2759 = vmatpush.msra.mxu0 0.0
        %2760 = vmatpush.msra.mxu0 0.0
        %2761 = vmatpush.msra.mxu0 %v2724
        %2762 = vmatpush.msra.mxu0 %v2597
        %2763 = vmatpush.msra.mxu0 %v2594
        %2764 = vmatpush.msra.mxu0 %v2591
        %2765 = vmatpush.msra.mxu0 %v2588
        %2766 = vmatpush.msra.mxu0 %v2585
        %2767 = vmatpush.msra.mxu0 %v2582
        %2768 = vmatmul.f32.gmra.mxu0 %v2715
        %v2769 = vpop.f32.mrf.mxu0
        %v2770 = vadd.f32 %v2686, %v2769
        %2771 = vmatmul.f32.gmra.mxu0 %v2718
        %v2772 = vpop.f32.mrf.mxu0
        %v2773 = vadd.f32 %v2689, %v2772
        %2774 = vdwg.mxu0
        %2775 = vmatpush.msra.mxu0 0.0
        %2776 = vmatpush.msra.mxu0 0.0
        %2777 = vmatpush.msra.mxu0 0.0
        %2778 = vmatpush.msra.mxu0 0.0
        %2779 = vmatpush.msra.mxu0 0.0
        %2780 = vmatpush.msra.mxu0 0.0
        %2781 = vmatpush.msra.mxu0 0.0
        %2782 = vmatpush.msra.mxu0 0.0
        %2783 = vmatpush.msra.mxu0 0.0
        %2784 = vmatpush.msra.mxu0 %v2727
        %2785 = vmatpush.msra.mxu0 %v2598
        %2786 = vmatpush.msra.mxu0 %v2595
        %2787 = vmatpush.msra.mxu0 %v2592
        %2788 = vmatpush.msra.mxu0 %v2589
        %2789 = vmatpush.msra.mxu0 %v2586
        %2790 = vmatpush.msra.mxu0 %v2583
        %2791 = vmatmul.f32.gmra.mxu0 %v2715
        %v2792 = vpop.f32.mrf.mxu0
        %v2793 = vadd.f32 %v2709, %v2792
        %2794 = vmatmul.f32.gmra.mxu0 %v2718
        %v2795 = vpop.f32.mrf.mxu0
        %v2796 = vadd.f32 %v2712, %v2795
        %2797 = vdwg.mxu0
        %v2798 = vld [vmem:[%s1522] sm:$0x1]
        %v2799 = vperm.slane %v2798, 0
        %vm2800 = vcmp.eq.s32.totalorder %v1600, %v2799
        %vm2801 = vcmp.eq.s32.totalorder %v1601, %v2799
        %v2802 = vsel %vm2800, %v2573, 0.0
        %v2803 = vsel %vm2801, %v2574, 0.0
        %s2804 = scalar_lea.vmem [#allocation7], 336
        %v2805 = vld [vmem:[%s2804] sm:$0xff]
        %v2806 = vld [vmem:[%s2804 + $0x8] sm:$0xff]
        %v2807 = vld [vmem:[%s2804 + $0x10] sm:$0xff]
        %v2808 = vld [vmem:[%s2804 + $0x18] sm:$0xff]
        %v2809 = vld [vmem:[%s2804 + $0x20] sm:$0xff]
        %v2810 = vld [vmem:[%s2804 + $0x28] sm:$0xff]
        %v2811 = vld [vmem:[%s2804 + $0x30] sm:$0xff]
        %v2812 = vld [vmem:[%s2804 + $0x38] sm:$0xff]
        %v2813 = vld [vmem:[%s2804 + $0x40] sm:$0xff]
        %v2814 = vld [vmem:[%s2804 + $0x48] sm:$0xff]
        %v2815 = vld [vmem:[%s2804 + $0x50] sm:$0xff]
        %v2816 = vld [vmem:[%s2804 + $0x58] sm:$0xff]
        %v2817 = vld [vmem:[%s2804 + $0x60] sm:$0xff]
        %v2818 = vld [vmem:[%s2804 + $0x68] sm:$0xff]
        %v2819 = vld [vmem:[%s2804 + $0x70] sm:$0xff]
        %v2820 = vld [vmem:[%s2804 + $0x78] sm:$0xff]
        %v2821 = vld [vmem:[%s2804 + $0x80] sm:$0xff]
        %v2822 = vld [vmem:[%s2804 + $0x88] sm:$0xff]
        %v2823 = vld [vmem:[%s2804 + $0x90] sm:$0x1]
        %v2824 = vld [vmem:[%s2804 + $0x98] sm:$0x1]
        %v2825 = vld [vmem:[%s2804 + $0xa0] sm:$0x1]
        %v2827 = vsel %vm1602, %v2802, 0
        %v2830 = vsel %vm1602, %v2803, 0
        %v2833 = vsel %vm1878, %v2823, 0
        %v2836 = vsel %vm1878, %v2824, 0
        %v2839 = vsel %vm1878, %v2825, 0
        %2841 = vmatpush.msra.mxu0 0.0
        %2842 = vmatpush.msra.mxu0 0.0
        %2843 = vmatpush.msra.mxu0 0.0
        %2844 = vmatpush.msra.mxu0 0.0
        %2845 = vmatpush.msra.mxu0 0.0
        %2846 = vmatpush.msra.mxu0 0.0
        %2847 = vmatpush.msra.mxu0 0.0
        %2848 = vmatpush.msra.mxu0 0.0
        %2849 = vmatpush.msra.mxu0 0.0
        %2850 = vmatpush.msra.mxu0 %v2833
        %2851 = vmatpush.msra.mxu0 %v2820
        %2852 = vmatpush.msra.mxu0 %v2817
        %2853 = vmatpush.msra.mxu0 %v2814
        %2854 = vmatpush.msra.mxu0 %v2811
        %2855 = vmatpush.msra.mxu0 %v2808
        %2856 = vmatpush.msra.mxu0 %v2805
        %2857 = vmatmul.f32.gmra.mxu0 %v2827
        %v2858 = vpop.f32.mrf.mxu0
        %v2859 = vadd.f32 0.0, %v2858
        %2860 = vmatmul.f32.gmra.mxu0 %v2830
        %v2861 = vpop.f32.mrf.mxu0
        %v2862 = vadd.f32 0.0, %v2861
        %2863 = vdwg.mxu0
        %2864 = vmatpush.msra.mxu0 0.0
        %2865 = vmatpush.msra.mxu0 0.0
        %2866 = vmatpush.msra.mxu0 0.0
        %2867 = vmatpush.msra.mxu0 0.0
        %2868 = vmatpush.msra.mxu0 0.0
        %2869 = vmatpush.msra.mxu0 0.0
        %2870 = vmatpush.msra.mxu0 0.0
        %2871 = vmatpush.msra.mxu0 0.0
        %2872 = vmatpush.msra.mxu0 0.0
        %2873 = vmatpush.msra.mxu0 %v2836
        %2874 = vmatpush.msra.mxu0 %v2821
        %2875 = vmatpush.msra.mxu0 %v2818
        %2876 = vmatpush.msra.mxu0 %v2815
        %2877 = vmatpush.msra.mxu0 %v2812
        %2878 = vmatpush.msra.mxu0 %v2809
        %2879 = vmatpush.msra.mxu0 %v2806
        %2880 = vmatmul.f32.gmra.mxu0 %v2827
        %v2881 = vpop.f32.mrf.mxu0
        %v2882 = vadd.f32 0.0, %v2881
        %2883 = vmatmul.f32.gmra.mxu0 %v2830
        %v2884 = vpop.f32.mrf.mxu0
        %v2885 = vadd.f32 0.0, %v2884
        %2886 = vdwg.mxu0
        %2887 = vmatpush.msra.mxu0 0.0
        %2888 = vmatpush.msra.mxu0 0.0
        %2889 = vmatpush.msra.mxu0 0.0
        %2890 = vmatpush.msra.mxu0 0.0
        %2891 = vmatpush.msra.mxu0 0.0
        %2892 = vmatpush.msra.mxu0 0.0
        %2893 = vmatpush.msra.mxu0 0.0
        %2894 = vmatpush.msra.mxu0 0.0
        %2895 = vmatpush.msra.mxu0 0.0
        %2896 = vmatpush.msra.mxu0 %v2839
        %2897 = vmatpush.msra.mxu0 %v2822
        %2898 = vmatpush.msra.mxu0 %v2819
        %2899 = vmatpush.msra.mxu0 %v2816
        %2900 = vmatpush.msra.mxu0 %v2813
        %2901 = vmatpush.msra.mxu0 %v2810
        %2902 = vmatpush.msra.mxu0 %v2807
        %2903 = vmatmul.f32.gmra.mxu0 %v2827
        %v2904 = vpop.f32.mrf.mxu0
        %v2905 = vadd.f32 0.0, %v2904
        %2906 = vmatmul.f32.gmra.mxu0 %v2830
        %v2907 = vpop.f32.mrf.mxu0
        %v2908 = vadd.f32 0.0, %v2907
        %2909 = vdwg.mxu0
        %v2910 = vadd.f32 %v2747, %v2859
        %v2911 = vadd.f32 %v2770, %v2882
        %v2912 = vadd.f32 %v2793, %v2905
        %v2913 = vadd.f32 %v2750, %v2862
        %v2914 = vadd.f32 %v2773, %v2885
        %v2915 = vadd.f32 %v2796, %v2908
        %v2916 = vld [vmem:[%s1593] sm:$0x1]
        %v2917 = vperm.slane %v2916, 0
        %vm2918 = vcmp.eq.s32.totalorder %v1600, %v2917
        %vm2919 = vcmp.eq.s32.totalorder %v1601, %v2917
        %v2920 = vsel %vm2918, %v2573, 0.0
        %v2921 = vsel %vm2919, %v2574, 0.0
        %s2922 = scalar_lea.vmem [#allocation7], 504
        %v2923 = vld [vmem:[%s2922] sm:$0xff]
        %v2924 = vld [vmem:[%s2922 + $0x8] sm:$0xff]
        %v2925 = vld [vmem:[%s2922 + $0x10] sm:$0xff]
        %v2926 = vld [vmem:[%s2922 + $0x18] sm:$0xff]
        %v2927 = vld [vmem:[%s2922 + $0x20] sm:$0xff]
        %v2928 = vld [vmem:[%s2922 + $0x28] sm:$0xff]
        %v2929 = vld [vmem:[%s2922 + $0x30] sm:$0xff]
        %v2930 = vld [vmem:[%s2922 + $0x38] sm:$0xff]
        %v2931 = vld [vmem:[%s2922 + $0x40] sm:$0xff]
        %v2932 = vld [vmem:[%s2922 + $0x48] sm:$0xff]
        %v2933 = vld [vmem:[%s2922 + $0x50] sm:$0xff]
        %v2934 = vld [vmem:[%s2922 + $0x58] sm:$0xff]
        %v2935 = vld [vmem:[%s2922 + $0x60] sm:$0xff]
        %v2936 = vld [vmem:[%s2922 + $0x68] sm:$0xff]
        %v2937 = vld [vmem:[%s2922 + $0x70] sm:$0xff]
        %v2938 = vld [vmem:[%s2922 + $0x78] sm:$0xff]
        %v2939 = vld [vmem:[%s2922 + $0x80] sm:$0xff]
        %v2940 = vld [vmem:[%s2922 + $0x88] sm:$0xff]
        %v2941 = vld [vmem:[%s2922 + $0x90] sm:$0x1]
        %v2942 = vld [vmem:[%s2922 + $0x98] sm:$0x1]
        %v2943 = vld [vmem:[%s2922 + $0xa0] sm:$0x1]
        %v2945 = vsel %vm1602, %v2920, 0
        %v2948 = vsel %vm1602, %v2921, 0
        %v2951 = vsel %vm1878, %v2941, 0
        %v2954 = vsel %vm1878, %v2942, 0
        %v2957 = vsel %vm1878, %v2943, 0
        %2959 = vmatpush.msra.mxu0 0.0
        %2960 = vmatpush.msra.mxu0 0.0
        %2961 = vmatpush.msra.mxu0 0.0
        %2962 = vmatpush.msra.mxu0 0.0
        %2963 = vmatpush.msra.mxu0 0.0
        %2964 = vmatpush.msra.mxu0 0.0
        %2965 = vmatpush.msra.mxu0 0.0
        %2966 = vmatpush.msra.mxu0 0.0
        %2967 = vmatpush.msra.mxu0 0.0
        %2968 = vmatpush.msra.mxu0 %v2951
        %2969 = vmatpush.msra.mxu0 %v2938
        %2970 = vmatpush.msra.mxu0 %v2935
        %2971 = vmatpush.msra.mxu0 %v2932
        %2972 = vmatpush.msra.mxu0 %v2929
        %2973 = vmatpush.msra.mxu0 %v2926
        %2974 = vmatpush.msra.mxu0 %v2923
        %2975 = vmatmul.f32.gmra.mxu0 %v2945
        %v2976 = vpop.f32.mrf.mxu0
        %v2977 = vadd.f32 0.0, %v2976
        %2978 = vmatmul.f32.gmra.mxu0 %v2948
        %v2979 = vpop.f32.mrf.mxu0
        %v2980 = vadd.f32 0.0, %v2979
        %2981 = vdwg.mxu0
        %2982 = vmatpush.msra.mxu0 0.0
        %2983 = vmatpush.msra.mxu0 0.0
        %2984 = vmatpush.msra.mxu0 0.0
        %2985 = vmatpush.msra.mxu0 0.0
        %2986 = vmatpush.msra.mxu0 0.0
        %2987 = vmatpush.msra.mxu0 0.0
        %2988 = vmatpush.msra.mxu0 0.0
        %2989 = vmatpush.msra.mxu0 0.0
        %2990 = vmatpush.msra.mxu0 0.0
        %2991 = vmatpush.msra.mxu0 %v2954
        %2992 = vmatpush.msra.mxu0 %v2939
        %2993 = vmatpush.msra.mxu0 %v2936
        %2994 = vmatpush.msra.mxu0 %v2933
        %2995 = vmatpush.msra.mxu0 %v2930
        %2996 = vmatpush.msra.mxu0 %v2927
        %2997 = vmatpush.msra.mxu0 %v2924
        %2998 = vmatmul.f32.gmra.mxu0 %v2945
        %v2999 = vpop.f32.mrf.mxu0
        %v3000 = vadd.f32 0.0, %v2999
        %3001 = vmatmul.f32.gmra.mxu0 %v2948
        %v3002 = vpop.f32.mrf.mxu0
        %v3003 = vadd.f32 0.0, %v3002
        %3004 = vdwg.mxu0
        %3005 = vmatpush.msra.mxu0 0.0
        %3006 = vmatpush.msra.mxu0 0.0
        %3007 = vmatpush.msra.mxu0 0.0
        %3008 = vmatpush.msra.mxu0 0.0
        %3009 = vmatpush.msra.mxu0 0.0
        %3010 = vmatpush.msra.mxu0 0.0
        %3011 = vmatpush.msra.mxu0 0.0
        %3012 = vmatpush.msra.mxu0 0.0
        %3013 = vmatpush.msra.mxu0 0.0
        %3014 = vmatpush.msra.mxu0 %v2957
        %3015 = vmatpush.msra.mxu0 %v2940
        %3016 = vmatpush.msra.mxu0 %v2937
        %3017 = vmatpush.msra.mxu0 %v2934
        %3018 = vmatpush.msra.mxu0 %v2931
        %3019 = vmatpush.msra.mxu0 %v2928
        %3020 = vmatpush.msra.mxu0 %v2925
        %3021 = vmatmul.f32.gmra.mxu0 %v2945
        %v3022 = vpop.f32.mrf.mxu0
        %v3023 = vadd.f32 0.0, %v3022
        %3024 = vmatmul.f32.gmra.mxu0 %v2948
        %v3025 = vpop.f32.mrf.mxu0
        %v3026 = vadd.f32 0.0, %v3025
        %3027 = vdwg.mxu0
        %v3028 = vadd.f32 %v2910, %v2977
        %v3029 = vadd.f32 %v2911, %v3000
        %v3030 = vadd.f32 %v2912, %v3023
        %v3031 = vadd.f32 %v2913, %v2980
        %v3032 = vadd.f32 %v2914, %v3003
        %v3033 = vadd.f32 %v2915, %v3026
        %3034 = vst [vmem:[#allocation6] sm:$0xff] %v3028
        %3035 = vst [vmem:[#allocation6 + $0x8] sm:$0xff] %v3029
        %vm3036 = vcmask 556032
        %3037 = vst.msk [vmem:[#allocation6 + $0x10] sm:$0xff] %vm3036, %v3030
        %3038 = vst [vmem:[#allocation6 + $0x18] sm:$0xff] %v3031
        %3039 = vst [vmem:[#allocation6 + $0x20] sm:$0xff] %v3032
        %3040 = vst.msk [vmem:[#allocation6 + $0x28] sm:$0xff] %vm3036, %v3033
        %v3041 = vld [vmem:[%s7] sm:$0xf]
        %v3042 = vld [vmem:[#allocation6] sm:$0xff]
        %v3043 = vld [vmem:[#allocation6 + $0x8] sm:$0xff]
        %v3044 = vld [vmem:[#allocation6 + $0x10] sm:$0xff]
        %v3045 = vld [vmem:[#allocation6 + $0x18] sm:$0xff]
        %v3046 = vld [vmem:[#allocation6 + $0x20] sm:$0xff]
        %v3047 = vld [vmem:[#allocation6 + $0x28] sm:$0xff]
        %s3048 = scalar_lea.vmem %s7, 4
        %v3049 = vld [vmem:[%s3048] sm:$0xf]
        %3056 = vrot.lane.b32.xlu0 %v3042, 127
        %v3057 = vpop.permute.xlu0 %3056
        %3058 = vrot.lane.b32.xlu0 %v3043, 127
        %v3059 = vpop.permute.xlu0 %3058
        %3060 = vrot.lane.b32.xlu0 %v3044, 127
        %v3061 = vpop.permute.xlu0 %3060
        %3062 = vrot.lane.b32.xlu0 %v3045, 127
        %v3063 = vpop.permute.xlu0 %3062
        %3064 = vrot.lane.b32.xlu0 %v3046, 127
        %v3065 = vpop.permute.xlu0 %3064
        %3066 = vrot.lane.b32.xlu0 %v3047, 127
        %v3067 = vpop.permute.xlu0 %3066
        %v3068 = vsel %vm637, %v3057, %v3059
        %v3069 = vsel %vm637, %v3059, %v3061
        %v3070 = vsel %vm637, %v3063, %v3065
        %v3071 = vsel %vm637, %v3065, %v3067
        %v3079 = vsel %vm1624, %v3049, 0
        %3081 = vmatpush.msra.mxu0 0.0
        %3082 = vmatpush.msra.mxu0 0.0
        %3083 = vmatpush.msra.mxu0 0.0
        %3084 = vmatpush.msra.mxu0 0.0
        %3085 = vmatpush.msra.mxu0 0.0
        %3086 = vmatpush.msra.mxu0 0.0
        %3087 = vmatpush.msra.mxu0 0.0
        %3088 = vmatpush.msra.mxu0 0.0
        %3089 = vmatpush.msra.mxu0 0.0
        %3090 = vmatpush.msra.mxu0 0.0
        %3091 = vmatpush.msra.mxu0 0.0
        %3092 = vmatpush.msra.mxu0 0.0
        %3093 = vmatpush.msra.mxu0 0.0
        %3094 = vmatpush.msra.mxu0 0.0
        %3095 = vmatpush.msra.mxu0 %v3070
        %3096 = vmatpush.msra.mxu0 %v3068
        %3097 = vmatmul.f32.gmra.mxu0 %v3079
        %v3098 = vpop.f32.mrf.mxu0
        %v3099 = vadd.f32 0.0, %v3098
        %3100 = vdwg.mxu0
        %3101 = vmatpush.msra.mxu0 0.0
        %3102 = vmatpush.msra.mxu0 0.0
        %3103 = vmatpush.msra.mxu0 0.0
        %3104 = vmatpush.msra.mxu0 0.0
        %3105 = vmatpush.msra.mxu0 0.0
        %3106 = vmatpush.msra.mxu0 0.0
        %3107 = vmatpush.msra.mxu0 0.0
        %3108 = vmatpush.msra.mxu0 0.0
        %3109 = vmatpush.msra.mxu0 0.0
        %3110 = vmatpush.msra.mxu0 0.0
        %3111 = vmatpush.msra.mxu0 0.0
        %3112 = vmatpush.msra.mxu0 0.0
        %3113 = vmatpush.msra.mxu0 0.0
        %3114 = vmatpush.msra.mxu0 0.0
        %3115 = vmatpush.msra.mxu0 %v3071
        %3116 = vmatpush.msra.mxu0 %v3069
        %3117 = vmatmul.f32.gmra.mxu0 %v3079
        %v3118 = vpop.f32.mrf.mxu0
        %v3119 = vadd.f32 0.0, %v3118
        %3120 = vdwg.mxu0
        %3121 = vmatpush.msra.mxu0 0.0
        %3122 = vmatpush.msra.mxu0 0.0
        %3123 = vmatpush.msra.mxu0 0.0
        %3124 = vmatpush.msra.mxu0 0.0
        %3125 = vmatpush.msra.mxu0 0.0
        %3126 = vmatpush.msra.mxu0 0.0
        %3127 = vmatpush.msra.mxu0 0.0
        %3128 = vmatpush.msra.mxu0 0.0
        %3129 = vmatpush.msra.mxu0 0.0
        %3130 = vmatpush.msra.mxu0 0.0
        %3131 = vmatpush.msra.mxu0 0.0
        %3132 = vmatpush.msra.mxu0 0.0
        %3133 = vmatpush.msra.mxu0 0.0
        %3134 = vmatpush.msra.mxu0 0.0
        %3135 = vmatpush.msra.mxu0 %v3067
        %3136 = vmatpush.msra.mxu0 %v3061
        %3137 = vmatmul.f32.gmra.mxu0 %v3079
        %v3138 = vpop.f32.mrf.mxu0
        %v3139 = vadd.f32 0.0, %v3138
        %3140 = vdwg.mxu0
        %v3142 = vsel %vm1624, %v3041, 0
        %3144 = vmatpush.msra.mxu0 0.0
        %3145 = vmatpush.msra.mxu0 0.0
        %3146 = vmatpush.msra.mxu0 0.0
        %3147 = vmatpush.msra.mxu0 0.0
        %3148 = vmatpush.msra.mxu0 0.0
        %3149 = vmatpush.msra.mxu0 0.0
        %3150 = vmatpush.msra.mxu0 0.0
        %3151 = vmatpush.msra.mxu0 0.0
        %3152 = vmatpush.msra.mxu0 0.0
        %3153 = vmatpush.msra.mxu0 0.0
        %3154 = vmatpush.msra.mxu0 0.0
        %3155 = vmatpush.msra.mxu0 0.0
        %3156 = vmatpush.msra.mxu0 0.0
        %3157 = vmatpush.msra.mxu0 0.0
        %3158 = vmatpush.msra.mxu0 %v3045
        %3159 = vmatpush.msra.mxu0 %v3042
        %3160 = vmatmul.f32.gmra.mxu0 %v3142
        %v3161 = vpop.f32.mrf.mxu0
        %v3162 = vadd.f32 %v3099, %v3161
        %3163 = vdwg.mxu0
        %3164 = vmatpush.msra.mxu0 0.0
        %3165 = vmatpush.msra.mxu0 0.0
        %3166 = vmatpush.msra.mxu0 0.0
        %3167 = vmatpush.msra.mxu0 0.0
        %3168 = vmatpush.msra.mxu0 0.0
        %3169 = vmatpush.msra.mxu0 0.0
        %3170 = vmatpush.msra.mxu0 0.0
        %3171 = vmatpush.msra.mxu0 0.0
        %3172 = vmatpush.msra.mxu0 0.0
        %3173 = vmatpush.msra.mxu0 0.0
        %3174 = vmatpush.msra.mxu0 0.0
        %3175 = vmatpush.msra.mxu0 0.0
        %3176 = vmatpush.msra.mxu0 0.0
        %3177 = vmatpush.msra.mxu0 0.0
        %3178 = vmatpush.msra.mxu0 %v3046
        %3179 = vmatpush.msra.mxu0 %v3043
        %3180 = vmatmul.f32.gmra.mxu0 %v3142
        %v3181 = vpop.f32.mrf.mxu0
        %v3182 = vadd.f32 %v3119, %v3181
        %3183 = vdwg.mxu0
        %3184 = vmatpush.msra.mxu0 0.0
        %3185 = vmatpush.msra.mxu0 0.0
        %3186 = vmatpush.msra.mxu0 0.0
        %3187 = vmatpush.msra.mxu0 0.0
        %3188 = vmatpush.msra.mxu0 0.0
        %3189 = vmatpush.msra.mxu0 0.0
        %3190 = vmatpush.msra.mxu0 0.0
        %3191 = vmatpush.msra.mxu0 0.0
        %3192 = vmatpush.msra.mxu0 0.0
        %3193 = vmatpush.msra.mxu0 0.0
        %3194 = vmatpush.msra.mxu0 0.0
        %3195 = vmatpush.msra.mxu0 0.0
        %3196 = vmatpush.msra.mxu0 0.0
        %3197 = vmatpush.msra.mxu0 0.0
        %3198 = vmatpush.msra.mxu0 %v3047
        %3199 = vmatpush.msra.mxu0 %v3044
        %3200 = vmatmul.f32.gmra.mxu0 %v3142
        %v3201 = vpop.f32.mrf.mxu0
        %v3202 = vadd.f32 %v3139, %v3201
        %3203 = vdwg.mxu0
        %s3204 = scalar_lea.vmem %s7, 8
        %v3205 = vld [vmem:[%s3204] sm:$0xf]
        %3206 = vrot.lane.b32.xlu0 %v3042, 126
        %v3207 = vpop.permute.xlu0 %3206
        %3208 = vrot.lane.b32.xlu0 %v3043, 126
        %v3209 = vpop.permute.xlu0 %3208
        %3210 = vrot.lane.b32.xlu0 %v3044, 126
        %v3211 = vpop.permute.xlu0 %3210
        %3212 = vrot.lane.b32.xlu0 %v3045, 126
        %v3213 = vpop.permute.xlu0 %3212
        %3214 = vrot.lane.b32.xlu0 %v3046, 126
        %v3215 = vpop.permute.xlu0 %3214
        %3216 = vrot.lane.b32.xlu0 %v3047, 126
        %v3217 = vpop.permute.xlu0 %3216
        %v3218 = vsel %vm768, %v3207, %v3209
        %v3219 = vsel %vm768, %v3209, %v3211
        %v3220 = vsel %vm768, %v3213, %v3215
        %v3221 = vsel %vm768, %v3215, %v3217
        %v3229 = vsel %vm1624, %v3205, 0
        %3231 = vmatpush.msra.mxu0 0.0
        %3232 = vmatpush.msra.mxu0 0.0
        %3233 = vmatpush.msra.mxu0 0.0
        %3234 = vmatpush.msra.mxu0 0.0
        %3235 = vmatpush.msra.mxu0 0.0
        %3236 = vmatpush.msra.mxu0 0.0
        %3237 = vmatpush.msra.mxu0 0.0
        %3238 = vmatpush.msra.mxu0 0.0
        %3239 = vmatpush.msra.mxu0 0.0
        %3240 = vmatpush.msra.mxu0 0.0
        %3241 = vmatpush.msra.mxu0 0.0
        %3242 = vmatpush.msra.mxu0 0.0
        %3243 = vmatpush.msra.mxu0 0.0
        %3244 = vmatpush.msra.mxu0 0.0
        %3245 = vmatpush.msra.mxu0 %v3220
        %3246 = vmatpush.msra.mxu0 %v3218
        %3247 = vmatmul.f32.gmra.mxu0 %v3229
        %v3248 = vpop.f32.mrf.mxu0
        %v3249 = vadd.f32 0.0, %v3248
        %3250 = vdwg.mxu0
        %3251 = vmatpush.msra.mxu0 0.0
        %3252 = vmatpush.msra.mxu0 0.0
        %3253 = vmatpush.msra.mxu0 0.0
        %3254 = vmatpush.msra.mxu0 0.0
        %3255 = vmatpush.msra.mxu0 0.0
        %3256 = vmatpush.msra.mxu0 0.0
        %3257 = vmatpush.msra.mxu0 0.0
        %3258 = vmatpush.msra.mxu0 0.0
        %3259 = vmatpush.msra.mxu0 0.0
        %3260 = vmatpush.msra.mxu0 0.0
        %3261 = vmatpush.msra.mxu0 0.0
        %3262 = vmatpush.msra.mxu0 0.0
        %3263 = vmatpush.msra.mxu0 0.0
        %3264 = vmatpush.msra.mxu0 0.0
        %3265 = vmatpush.msra.mxu0 %v3221
        %3266 = vmatpush.msra.mxu0 %v3219
        %3267 = vmatmul.f32.gmra.mxu0 %v3229
        %v3268 = vpop.f32.mrf.mxu0
        %v3269 = vadd.f32 0.0, %v3268
        %3270 = vdwg.mxu0
        %3271 = vmatpush.msra.mxu0 0.0
        %3272 = vmatpush.msra.mxu0 0.0
        %3273 = vmatpush.msra.mxu0 0.0
        %3274 = vmatpush.msra.mxu0 0.0
        %3275 = vmatpush.msra.mxu0 0.0
        %3276 = vmatpush.msra.mxu0 0.0
        %3277 = vmatpush.msra.mxu0 0.0
        %3278 = vmatpush.msra.mxu0 0.0
        %3279 = vmatpush.msra.mxu0 0.0
        %3280 = vmatpush.msra.mxu0 0.0
        %3281 = vmatpush.msra.mxu0 0.0
        %3282 = vmatpush.msra.mxu0 0.0
        %3283 = vmatpush.msra.mxu0 0.0
        %3284 = vmatpush.msra.mxu0 0.0
        %3285 = vmatpush.msra.mxu0 %v3217
        %3286 = vmatpush.msra.mxu0 %v3211
        %3287 = vmatmul.f32.gmra.mxu0 %v3229
        %v3288 = vpop.f32.mrf.mxu0
        %v3289 = vadd.f32 0.0, %v3288
        %3290 = vdwg.mxu0
        %v3291 = vadd.f32 %v3162, %v3249
        %v3292 = vadd.f32 %v3182, %v3269
        %v3293 = vadd.f32 %v3202, %v3289
        %s3294 = scalar_lea.vmem %s7, 12
        %v3295 = vld [vmem:[%s3294] sm:$0xf]
        %3296 = vrot.lane.b32.xlu0 %v3042, 110
        %v3297 = vpop.permute.xlu0 %3296
        %3298 = vrot.lane.b32.xlu0 %v3043, 110
        %v3299 = vpop.permute.xlu0 %3298
        %3300 = vrot.lane.b32.xlu0 %v3044, 110
        %v3301 = vpop.permute.xlu0 %3300
        %3302 = vrot.lane.b32.xlu0 %v3045, 110
        %v3303 = vpop.permute.xlu0 %3302
        %3304 = vrot.lane.b32.xlu0 %v3046, 110
        %v3305 = vpop.permute.xlu0 %3304
        %3306 = vrot.lane.b32.xlu0 %v3047, 110
        %v3307 = vpop.permute.xlu0 %3306
        %v3308 = vsel %vm990, %v3297, %v3299
        %v3309 = vsel %vm990, %v3299, %v3301
        %v3310 = vsel %vm990, %v3303, %v3305
        %v3311 = vsel %vm990, %v3305, %v3307
        %v3319 = vsel %vm1624, %v3295, 0
        %3321 = vmatpush.msra.mxu0 0.0
        %3322 = vmatpush.msra.mxu0 0.0
        %3323 = vmatpush.msra.mxu0 0.0
        %3324 = vmatpush.msra.mxu0 0.0
        %3325 = vmatpush.msra.mxu0 0.0
        %3326 = vmatpush.msra.mxu0 0.0
        %3327 = vmatpush.msra.mxu0 0.0
        %3328 = vmatpush.msra.mxu0 0.0
        %3329 = vmatpush.msra.mxu0 0.0
        %3330 = vmatpush.msra.mxu0 0.0
        %3331 = vmatpush.msra.mxu0 0.0
        %3332 = vmatpush.msra.mxu0 0.0
        %3333 = vmatpush.msra.mxu0 0.0
        %3334 = vmatpush.msra.mxu0 0.0
        %3335 = vmatpush.msra.mxu0 %v3310
        %3336 = vmatpush.msra.mxu0 %v3308
        %3337 = vmatmul.f32.gmra.mxu0 %v3319
        %v3338 = vpop.f32.mrf.mxu0
        %v3339 = vadd.f32 0.0, %v3338
        %3340 = vdwg.mxu0
        %3341 = vmatpush.msra.mxu0 0.0
        %3342 = vmatpush.msra.mxu0 0.0
        %3343 = vmatpush.msra.mxu0 0.0
        %3344 = vmatpush.msra.mxu0 0.0
        %3345 = vmatpush.msra.mxu0 0.0
        %3346 = vmatpush.msra.mxu0 0.0
        %3347 = vmatpush.msra.mxu0 0.0
        %3348 = vmatpush.msra.mxu0 0.0
        %3349 = vmatpush.msra.mxu0 0.0
        %3350 = vmatpush.msra.mxu0 0.0
        %3351 = vmatpush.msra.mxu0 0.0
        %3352 = vmatpush.msra.mxu0 0.0
        %3353 = vmatpush.msra.mxu0 0.0
        %3354 = vmatpush.msra.mxu0 0.0
        %3355 = vmatpush.msra.mxu0 %v3311
        %3356 = vmatpush.msra.mxu0 %v3309
        %3357 = vmatmul.f32.gmra.mxu0 %v3319
        %v3358 = vpop.f32.mrf.mxu0
        %v3359 = vadd.f32 0.0, %v3358
        %3360 = vdwg.mxu0
        %3361 = vmatpush.msra.mxu0 0.0
        %3362 = vmatpush.msra.mxu0 0.0
        %3363 = vmatpush.msra.mxu0 0.0
        %3364 = vmatpush.msra.mxu0 0.0
        %3365 = vmatpush.msra.mxu0 0.0
        %3366 = vmatpush.msra.mxu0 0.0
        %3367 = vmatpush.msra.mxu0 0.0
        %3368 = vmatpush.msra.mxu0 0.0
        %3369 = vmatpush.msra.mxu0 0.0
        %3370 = vmatpush.msra.mxu0 0.0
        %3371 = vmatpush.msra.mxu0 0.0
        %3372 = vmatpush.msra.mxu0 0.0
        %3373 = vmatpush.msra.mxu0 0.0
        %3374 = vmatpush.msra.mxu0 0.0
        %3375 = vmatpush.msra.mxu0 %v3307
        %3376 = vmatpush.msra.mxu0 %v3301
        %3377 = vmatmul.f32.gmra.mxu0 %v3319
        %v3378 = vpop.f32.mrf.mxu0
        %v3379 = vadd.f32 0.0, %v3378
        %3380 = vdwg.mxu0
        %v3381 = vadd.f32 %v3291, %v3339
        %v3382 = vadd.f32 %v3292, %v3359
        %v3383 = vadd.f32 %v3293, %v3379
        %s3384 = scalar_lea.vmem %s7, 16
        %v3385 = vld [vmem:[%s3384] sm:$0xf]
        %3386 = vrot.lane.b32.xlu0 %v3042, 109
        %v3387 = vpop.permute.xlu0 %3386
        %3388 = vrot.lane.b32.xlu0 %v3043, 109
        %v3389 = vpop.permute.xlu0 %3388
        %3390 = vrot.lane.b32.xlu0 %v3044, 109
        %v3391 = vpop.permute.xlu0 %3390
        %3392 = vrot.lane.b32.xlu0 %v3045, 109
        %v3393 = vpop.permute.xlu0 %3392
        %3394 = vrot.lane.b32.xlu0 %v3046, 109
        %v3395 = vpop.permute.xlu0 %3394
        %3396 = vrot.lane.b32.xlu0 %v3047, 109
        %v3397 = vpop.permute.xlu0 %3396
        %vm3398 = vcmask 891904
        %v3399 = vsel %vm3398, %v3387, %v3389
        %v3400 = vsel %vm3398, %v3389, %v3391
        %v3401 = vsel %vm3398, %v3393, %v3395
        %v3402 = vsel %vm3398, %v3395, %v3397
        %v3410 = vsel %vm1624, %v3385, 0
        %3412 = vmatpush.msra.mxu0 0.0
        %3413 = vmatpush.msra.mxu0 0.0
        %3414 = vmatpush.msra.mxu0 0.0
        %3415 = vmatpush.msra.mxu0 0.0
        %3416 = vmatpush.msra.mxu0 0.0
        %3417 = vmatpush.msra.mxu0 0.0
        %3418 = vmatpush.msra.mxu0 0.0
        %3419 = vmatpush.msra.mxu0 0.0
        %3420 = vmatpush.msra.mxu0 0.0
        %3421 = vmatpush.msra.mxu0 0.0
        %3422 = vmatpush.msra.mxu0 0.0
        %3423 = vmatpush.msra.mxu0 0.0
        %3424 = vmatpush.msra.mxu0 0.0
        %3425 = vmatpush.msra.mxu0 0.0
        %3426 = vmatpush.msra.mxu0 %v3401
        %3427 = vmatpush.msra.mxu0 %v3399
        %3428 = vmatmul.f32.gmra.mxu0 %v3410
        %v3429 = vpop.f32.mrf.mxu0
        %v3430 = vadd.f32 0.0, %v3429
        %3431 = vdwg.mxu0
        %3432 = vmatpush.msra.mxu0 0.0
        %3433 = vmatpush.msra.mxu0 0.0
        %3434 = vmatpush.msra.mxu0 0.0
        %3435 = vmatpush.msra.mxu0 0.0
        %3436 = vmatpush.msra.mxu0 0.0
        %3437 = vmatpush.msra.mxu0 0.0
        %3438 = vmatpush.msra.mxu0 0.0
        %3439 = vmatpush.msra.mxu0 0.0
        %3440 = vmatpush.msra.mxu0 0.0
        %3441 = vmatpush.msra.mxu0 0.0
        %3442 = vmatpush.msra.mxu0 0.0
        %3443 = vmatpush.msra.mxu0 0.0
        %3444 = vmatpush.msra.mxu0 0.0
        %3445 = vmatpush.msra.mxu0 0.0
        %3446 = vmatpush.msra.mxu0 %v3402
        %3447 = vmatpush.msra.mxu0 %v3400
        %3448 = vmatmul.f32.gmra.mxu0 %v3410
        %v3449 = vpop.f32.mrf.mxu0
        %v3450 = vadd.f32 0.0, %v3449
        %3451 = vdwg.mxu0
        %3452 = vmatpush.msra.mxu0 0.0
        %3453 = vmatpush.msra.mxu0 0.0
        %3454 = vmatpush.msra.mxu0 0.0
        %3455 = vmatpush.msra.mxu0 0.0
        %3456 = vmatpush.msra.mxu0 0.0
        %3457 = vmatpush.msra.mxu0 0.0
        %3458 = vmatpush.msra.mxu0 0.0
        %3459 = vmatpush.msra.mxu0 0.0
        %3460 = vmatpush.msra.mxu0 0.0
        %3461 = vmatpush.msra.mxu0 0.0
        %3462 = vmatpush.msra.mxu0 0.0
        %3463 = vmatpush.msra.mxu0 0.0
        %3464 = vmatpush.msra.mxu0 0.0
        %3465 = vmatpush.msra.mxu0 0.0
        %3466 = vmatpush.msra.mxu0 %v3397
        %3467 = vmatpush.msra.mxu0 %v3391
        %3468 = vmatmul.f32.gmra.mxu0 %v3410
        %v3469 = vpop.f32.mrf.mxu0
        %v3470 = vadd.f32 0.0, %v3469
        %3471 = vdwg.mxu0
        %v3472 = vadd.f32 %v3381, %v3430
        %v3473 = vadd.f32 %v3382, %v3450
        %v3474 = vadd.f32 %v3383, %v3470
        %s3475 = scalar_lea.vmem %s7, 20
        %v3476 = vld [vmem:[%s3475] sm:$0xf]
        %3477 = vrot.lane.b32.xlu0 %v3042, 108
        %v3478 = vpop.permute.xlu0 %3477
        %3479 = vrot.lane.b32.xlu0 %v3043, 108
        %v3480 = vpop.permute.xlu0 %3479
        %3481 = vrot.lane.b32.xlu0 %v3044, 108
        %v3482 = vpop.permute.xlu0 %3481
        %3483 = vrot.lane.b32.xlu0 %v3045, 108
        %v3484 = vpop.permute.xlu0 %3483
        %3485 = vrot.lane.b32.xlu0 %v3046, 108
        %v3486 = vpop.permute.xlu0 %3485
        %3487 = vrot.lane.b32.xlu0 %v3047, 108
        %v3488 = vpop.permute.xlu0 %3487
        %vm3489 = vcmask 883712
        %v3490 = vsel %vm3489, %v3478, %v3480
        %v3491 = vsel %vm3489, %v3480, %v3482
        %v3492 = vsel %vm3489, %v3484, %v3486
        %v3493 = vsel %vm3489, %v3486, %v3488
        %v3501 = vsel %vm1624, %v3476, 0
        %3503 = vmatpush.msra.mxu0 0.0
        %3504 = vmatpush.msra.mxu0 0.0
        %3505 = vmatpush.msra.mxu0 0.0
        %3506 = vmatpush.msra.mxu0 0.0
        %3507 = vmatpush.msra.mxu0 0.0
        %3508 = vmatpush.msra.mxu0 0.0
        %3509 = vmatpush.msra.mxu0 0.0
        %3510 = vmatpush.msra.mxu0 0.0
        %3511 = vmatpush.msra.mxu0 0.0
        %3512 = vmatpush.msra.mxu0 0.0
        %3513 = vmatpush.msra.mxu0 0.0
        %3514 = vmatpush.msra.mxu0 0.0
        %3515 = vmatpush.msra.mxu0 0.0
        %3516 = vmatpush.msra.mxu0 0.0
        %3517 = vmatpush.msra.mxu0 %v3492
        %3518 = vmatpush.msra.mxu0 %v3490
        %3519 = vmatmul.f32.gmra.mxu0 %v3501
        %v3520 = vpop.f32.mrf.mxu0
        %v3521 = vadd.f32 0.0, %v3520
        %3522 = vdwg.mxu0
        %3523 = vmatpush.msra.mxu0 0.0
        %3524 = vmatpush.msra.mxu0 0.0
        %3525 = vmatpush.msra.mxu0 0.0
        %3526 = vmatpush.msra.mxu0 0.0
        %3527 = vmatpush.msra.mxu0 0.0
        %3528 = vmatpush.msra.mxu0 0.0
        %3529 = vmatpush.msra.mxu0 0.0
        %3530 = vmatpush.msra.mxu0 0.0
        %3531 = vmatpush.msra.mxu0 0.0
        %3532 = vmatpush.msra.mxu0 0.0
        %3533 = vmatpush.msra.mxu0 0.0
        %3534 = vmatpush.msra.mxu0 0.0
        %3535 = vmatpush.msra.mxu0 0.0
        %3536 = vmatpush.msra.mxu0 0.0
        %3537 = vmatpush.msra.mxu0 %v3493
        %3538 = vmatpush.msra.mxu0 %v3491
        %3539 = vmatmul.f32.gmra.mxu0 %v3501
        %v3540 = vpop.f32.mrf.mxu0
        %v3541 = vadd.f32 0.0, %v3540
        %3542 = vdwg.mxu0
        %3543 = vmatpush.msra.mxu0 0.0
        %3544 = vmatpush.msra.mxu0 0.0
        %3545 = vmatpush.msra.mxu0 0.0
        %3546 = vmatpush.msra.mxu0 0.0
        %3547 = vmatpush.msra.mxu0 0.0
        %3548 = vmatpush.msra.mxu0 0.0
        %3549 = vmatpush.msra.mxu0 0.0
        %3550 = vmatpush.msra.mxu0 0.0
        %3551 = vmatpush.msra.mxu0 0.0
        %3552 = vmatpush.msra.mxu0 0.0
        %3553 = vmatpush.msra.mxu0 0.0
        %3554 = vmatpush.msra.mxu0 0.0
        %3555 = vmatpush.msra.mxu0 0.0
        %3556 = vmatpush.msra.mxu0 0.0
        %3557 = vmatpush.msra.mxu0 %v3488
        %3558 = vmatpush.msra.mxu0 %v3482
        %3559 = vmatmul.f32.gmra.mxu0 %v3501
        %v3560 = vpop.f32.mrf.mxu0
        %v3561 = vadd.f32 0.0, %v3560
        %3562 = vdwg.mxu0
        %v3563 = vadd.f32 %v3472, %v3521
        %v3564 = vadd.f32 %v3473, %v3541
        %v3565 = vadd.f32 %v3474, %v3561
        %s3566 = scalar_lea.vmem %s7, 24
        %v3567 = vld [vmem:[%s3566] sm:$0xf]
        %3568 = vrot.lane.b32.xlu0 %v3042, 92
        %v3569 = vpop.permute.xlu0 %3568
        %3570 = vrot.lane.b32.xlu0 %v3043, 92
        %v3571 = vpop.permute.xlu0 %3570
        %3572 = vrot.lane.b32.xlu0 %v3044, 92
        %v3573 = vpop.permute.xlu0 %3572
        %3574 = vrot.lane.b32.xlu0 %v3045, 92
        %v3575 = vpop.permute.xlu0 %3574
        %3576 = vrot.lane.b32.xlu0 %v3046, 92
        %v3577 = vpop.permute.xlu0 %3576
        %3578 = vrot.lane.b32.xlu0 %v3047, 92
        %v3579 = vpop.permute.xlu0 %3578
        %vm3580 = vcmask 752640
        %v3581 = vsel %vm3580, %v3569, %v3571
        %v3582 = vsel %vm3580, %v3571, %v3573
        %v3583 = vsel %vm3580, %v3575, %v3577
        %v3584 = vsel %vm3580, %v3577, %v3579
        %v3592 = vsel %vm1624, %v3567, 0
        %3594 = vmatpush.msra.mxu0 0.0
        %3595 = vmatpush.msra.mxu0 0.0
        %3596 = vmatpush.msra.mxu0 0.0
        %3597 = vmatpush.msra.mxu0 0.0
        %3598 = vmatpush.msra.mxu0 0.0
        %3599 = vmatpush.msra.mxu0 0.0
        %3600 = vmatpush.msra.mxu0 0.0
        %3601 = vmatpush.msra.mxu0 0.0
        %3602 = vmatpush.msra.mxu0 0.0
        %3603 = vmatpush.msra.mxu0 0.0
        %3604 = vmatpush.msra.mxu0 0.0
        %3605 = vmatpush.msra.mxu0 0.0
        %3606 = vmatpush.msra.mxu0 0.0
        %3607 = vmatpush.msra.mxu0 0.0
        %3608 = vmatpush.msra.mxu0 %v3583
        %3609 = vmatpush.msra.mxu0 %v3581
        %3610 = vmatmul.f32.gmra.mxu0 %v3592
        %v3611 = vpop.f32.mrf.mxu0
        %v3612 = vadd.f32 0.0, %v3611
        %3613 = vdwg.mxu0
        %3614 = vmatpush.msra.mxu0 0.0
        %3615 = vmatpush.msra.mxu0 0.0
        %3616 = vmatpush.msra.mxu0 0.0
        %3617 = vmatpush.msra.mxu0 0.0
        %3618 = vmatpush.msra.mxu0 0.0
        %3619 = vmatpush.msra.mxu0 0.0
        %3620 = vmatpush.msra.mxu0 0.0
        %3621 = vmatpush.msra.mxu0 0.0
        %3622 = vmatpush.msra.mxu0 0.0
        %3623 = vmatpush.msra.mxu0 0.0
        %3624 = vmatpush.msra.mxu0 0.0
        %3625 = vmatpush.msra.mxu0 0.0
        %3626 = vmatpush.msra.mxu0 0.0
        %3627 = vmatpush.msra.mxu0 0.0
        %3628 = vmatpush.msra.mxu0 %v3584
        %3629 = vmatpush.msra.mxu0 %v3582
        %3630 = vmatmul.f32.gmra.mxu0 %v3592
        %v3631 = vpop.f32.mrf.mxu0
        %v3632 = vadd.f32 0.0, %v3631
        %3633 = vdwg.mxu0
        %3634 = vmatpush.msra.mxu0 0.0
        %3635 = vmatpush.msra.mxu0 0.0
        %3636 = vmatpush.msra.mxu0 0.0
        %3637 = vmatpush.msra.mxu0 0.0
        %3638 = vmatpush.msra.mxu0 0.0
        %3639 = vmatpush.msra.mxu0 0.0
        %3640 = vmatpush.msra.mxu0 0.0
        %3641 = vmatpush.msra.mxu0 0.0
        %3642 = vmatpush.msra.mxu0 0.0
        %3643 = vmatpush.msra.mxu0 0.0
        %3644 = vmatpush.msra.mxu0 0.0
        %3645 = vmatpush.msra.mxu0 0.0
        %3646 = vmatpush.msra.mxu0 0.0
        %3647 = vmatpush.msra.mxu0 0.0
        %3648 = vmatpush.msra.mxu0 %v3579
        %3649 = vmatpush.msra.mxu0 %v3573
        %3650 = vmatmul.f32.gmra.mxu0 %v3592
        %v3651 = vpop.f32.mrf.mxu0
        %v3652 = vadd.f32 0.0, %v3651
        %3653 = vdwg.mxu0
        %v3654 = vadd.f32 %v3563, %v3612
        %v3655 = vadd.f32 %v3564, %v3632
        %v3656 = vadd.f32 %v3565, %v3652
        %s3657 = scalar_lea.vmem %s7, 28
        %v3658 = vld [vmem:[%s3657] sm:$0xf]
        %3659 = vrot.lane.b32.xlu0 %v3042, 91
        %v3660 = vpop.permute.xlu0 %3659
        %3661 = vrot.lane.b32.xlu0 %v3043, 91
        %v3662 = vpop.permute.xlu0 %3661
        %3663 = vrot.lane.b32.xlu0 %v3044, 91
        %v3664 = vpop.permute.xlu0 %3663
        %3665 = vrot.lane.b32.xlu0 %v3045, 91
        %v3666 = vpop.permute.xlu0 %3665
        %3667 = vrot.lane.b32.xlu0 %v3046, 91
        %v3668 = vpop.permute.xlu0 %3667
        %3669 = vrot.lane.b32.xlu0 %v3047, 91
        %v3670 = vpop.permute.xlu0 %3669
        %vm3671 = vcmask 744448
        %v3672 = vsel %vm3671, %v3660, %v3662
        %v3673 = vsel %vm3671, %v3662, %v3664
        %v3674 = vsel %vm3671, %v3666, %v3668
        %v3675 = vsel %vm3671, %v3668, %v3670
        %v3683 = vsel %vm1624, %v3658, 0
        %3685 = vmatpush.msra.mxu0 0.0
        %3686 = vmatpush.msra.mxu0 0.0
        %3687 = vmatpush.msra.mxu0 0.0
        %3688 = vmatpush.msra.mxu0 0.0
        %3689 = vmatpush.msra.mxu0 0.0
        %3690 = vmatpush.msra.mxu0 0.0
        %3691 = vmatpush.msra.mxu0 0.0
        %3692 = vmatpush.msra.mxu0 0.0
        %3693 = vmatpush.msra.mxu0 0.0
        %3694 = vmatpush.msra.mxu0 0.0
        %3695 = vmatpush.msra.mxu0 0.0
        %3696 = vmatpush.msra.mxu0 0.0
        %3697 = vmatpush.msra.mxu0 0.0
        %3698 = vmatpush.msra.mxu0 0.0
        %3699 = vmatpush.msra.mxu0 %v3674
        %3700 = vmatpush.msra.mxu0 %v3672
        %3701 = vmatmul.f32.gmra.mxu0 %v3683
        %v3702 = vpop.f32.mrf.mxu0
        %v3703 = vadd.f32 0.0, %v3702
        %3704 = vdwg.mxu0
        %3705 = vmatpush.msra.mxu0 0.0
        %3706 = vmatpush.msra.mxu0 0.0
        %3707 = vmatpush.msra.mxu0 0.0
        %3708 = vmatpush.msra.mxu0 0.0
        %3709 = vmatpush.msra.mxu0 0.0
        %3710 = vmatpush.msra.mxu0 0.0
        %3711 = vmatpush.msra.mxu0 0.0
        %3712 = vmatpush.msra.mxu0 0.0
        %3713 = vmatpush.msra.mxu0 0.0
        %3714 = vmatpush.msra.mxu0 0.0
        %3715 = vmatpush.msra.mxu0 0.0
        %3716 = vmatpush.msra.mxu0 0.0
        %3717 = vmatpush.msra.mxu0 0.0
        %3718 = vmatpush.msra.mxu0 0.0
        %3719 = vmatpush.msra.mxu0 %v3675
        %3720 = vmatpush.msra.mxu0 %v3673
        %3721 = vmatmul.f32.gmra.mxu0 %v3683
        %v3722 = vpop.f32.mrf.mxu0
        %v3723 = vadd.f32 0.0, %v3722
        %3724 = vdwg.mxu0
        %3725 = vmatpush.msra.mxu0 0.0
        %3726 = vmatpush.msra.mxu0 0.0
        %3727 = vmatpush.msra.mxu0 0.0
        %3728 = vmatpush.msra.mxu0 0.0
        %3729 = vmatpush.msra.mxu0 0.0
        %3730 = vmatpush.msra.mxu0 0.0
        %3731 = vmatpush.msra.mxu0 0.0
        %3732 = vmatpush.msra.mxu0 0.0
        %3733 = vmatpush.msra.mxu0 0.0
        %3734 = vmatpush.msra.mxu0 0.0
        %3735 = vmatpush.msra.mxu0 0.0
        %3736 = vmatpush.msra.mxu0 0.0
        %3737 = vmatpush.msra.mxu0 0.0
        %3738 = vmatpush.msra.mxu0 0.0
        %3739 = vmatpush.msra.mxu0 %v3670
        %3740 = vmatpush.msra.mxu0 %v3664
        %3741 = vmatmul.f32.gmra.mxu0 %v3683
        %v3742 = vpop.f32.mrf.mxu0
        %v3743 = vadd.f32 0.0, %v3742
        %3744 = vdwg.mxu0
        %v3745 = vadd.f32 %v3654, %v3703
        %v3746 = vadd.f32 %v3655, %v3723
        %v3747 = vadd.f32 %v3656, %v3743
        %s3748 = scalar_lea.vmem %s7, 32
        %v3749 = vld [vmem:[%s3748] sm:$0xf]
        %3750 = vrot.lane.b32.xlu0 %v3042, 90
        %v3751 = vpop.permute.xlu0 %3750
        %3752 = vrot.lane.b32.xlu0 %v3043, 90
        %v3753 = vpop.permute.xlu0 %3752
        %3754 = vrot.lane.b32.xlu0 %v3044, 90
        %v3755 = vpop.permute.xlu0 %3754
        %3756 = vrot.lane.b32.xlu0 %v3045, 90
        %v3757 = vpop.permute.xlu0 %3756
        %3758 = vrot.lane.b32.xlu0 %v3046, 90
        %v3759 = vpop.permute.xlu0 %3758
        %3760 = vrot.lane.b32.xlu0 %v3047, 90
        %v3761 = vpop.permute.xlu0 %3760
        %vm3762 = vcmask 736256
        %v3763 = vsel %vm3762, %v3751, %v3753
        %v3764 = vsel %vm3762, %v3753, %v3755
        %v3765 = vsel %vm3762, %v3757, %v3759
        %v3766 = vsel %vm3762, %v3759, %v3761
        %v3774 = vsel %vm1624, %v3749, 0
        %3776 = vmatpush.msra.mxu0 0.0
        %3777 = vmatpush.msra.mxu0 0.0
        %3778 = vmatpush.msra.mxu0 0.0
        %3779 = vmatpush.msra.mxu0 0.0
        %3780 = vmatpush.msra.mxu0 0.0
        %3781 = vmatpush.msra.mxu0 0.0
        %3782 = vmatpush.msra.mxu0 0.0
        %3783 = vmatpush.msra.mxu0 0.0
        %3784 = vmatpush.msra.mxu0 0.0
        %3785 = vmatpush.msra.mxu0 0.0
        %3786 = vmatpush.msra.mxu0 0.0
        %3787 = vmatpush.msra.mxu0 0.0
        %3788 = vmatpush.msra.mxu0 0.0
        %3789 = vmatpush.msra.mxu0 0.0
        %3790 = vmatpush.msra.mxu0 %v3765
        %3791 = vmatpush.msra.mxu0 %v3763
        %3792 = vmatmul.f32.gmra.mxu0 %v3774
        %v3793 = vpop.f32.mrf.mxu0
        %v3794 = vadd.f32 0.0, %v3793
        %3795 = vdwg.mxu0
        %3796 = vmatpush.msra.mxu0 0.0
        %3797 = vmatpush.msra.mxu0 0.0
        %3798 = vmatpush.msra.mxu0 0.0
        %3799 = vmatpush.msra.mxu0 0.0
        %3800 = vmatpush.msra.mxu0 0.0
        %3801 = vmatpush.msra.mxu0 0.0
        %3802 = vmatpush.msra.mxu0 0.0
        %3803 = vmatpush.msra.mxu0 0.0
        %3804 = vmatpush.msra.mxu0 0.0
        %3805 = vmatpush.msra.mxu0 0.0
        %3806 = vmatpush.msra.mxu0 0.0
        %3807 = vmatpush.msra.mxu0 0.0
        %3808 = vmatpush.msra.mxu0 0.0
        %3809 = vmatpush.msra.mxu0 0.0
        %3810 = vmatpush.msra.mxu0 %v3766
        %3811 = vmatpush.msra.mxu0 %v3764
        %3812 = vmatmul.f32.gmra.mxu0 %v3774
        %v3813 = vpop.f32.mrf.mxu0
        %v3814 = vadd.f32 0.0, %v3813
        %3815 = vdwg.mxu0
        %3816 = vmatpush.msra.mxu0 0.0
        %3817 = vmatpush.msra.mxu0 0.0
        %3818 = vmatpush.msra.mxu0 0.0
        %3819 = vmatpush.msra.mxu0 0.0
        %3820 = vmatpush.msra.mxu0 0.0
        %3821 = vmatpush.msra.mxu0 0.0
        %3822 = vmatpush.msra.mxu0 0.0
        %3823 = vmatpush.msra.mxu0 0.0
        %3824 = vmatpush.msra.mxu0 0.0
        %3825 = vmatpush.msra.mxu0 0.0
        %3826 = vmatpush.msra.mxu0 0.0
        %3827 = vmatpush.msra.mxu0 0.0
        %3828 = vmatpush.msra.mxu0 0.0
        %3829 = vmatpush.msra.mxu0 0.0
        %3830 = vmatpush.msra.mxu0 %v3761
        %3831 = vmatpush.msra.mxu0 %v3755
        %3832 = vmatmul.f32.gmra.mxu0 %v3774
        %v3833 = vpop.f32.mrf.mxu0
        %v3834 = vadd.f32 0.0, %v3833
        %3835 = vdwg.mxu0
        %v3836 = vadd.f32 %v3745, %v3794
        %v3837 = vadd.f32 %v3746, %v3814
        %v3838 = vadd.f32 %v3747, %v3834
        %v3839 = vld [vmem:[%s8] sm:$0xf]
        %3841 = vset.pattern.permute.xlu0 0
        %3842 = vperm.xlu0 %3841, %v3839
        %v3843 = vpop.permute.xlu0 %3842
        %v3845 = vadd.f32 %v3836, %v3843
        %v3846 = vadd.f32 %v3837, %v3843
        %v3847 = vadd.f32 %v3838, %v3843
        %v3848 = vld [vmem:[#allocation9] sm:$0xff]
        %v3849 = vld [vmem:[#allocation9 + $0x8] sm:$0xff]
        %v3850 = vld [vmem:[#allocation9 + $0x10] sm:$0xff]
        %v3851 = vld [vmem:[#allocation9 + $0x18] sm:$0xff]
        %v3852 = vld [vmem:[#allocation9 + $0x20] sm:$0xff]
        %v3853 = vld [vmem:[#allocation9 + $0x28] sm:$0xff]
        %v3854 = vld [vmem:[#allocation9 + $0x30] sm:$0xff]
        %v3855 = vld [vmem:[#allocation9 + $0x38] sm:$0xff]
        %v3856 = vld [vmem:[#allocation9 + $0x40] sm:$0xff]
        %v3857 = vld [vmem:[#allocation9 + $0x48] sm:$0xff]
        %v3858 = vld [vmem:[#allocation9 + $0x50] sm:$0xff]
        %v3859 = vld [vmem:[#allocation9 + $0x58] sm:$0xff]
        %v3860 = vld [vmem:[#allocation9 + $0x60] sm:$0xff]
        %v3861 = vld [vmem:[#allocation9 + $0x68] sm:$0xff]
        %v3862 = vld [vmem:[#allocation9 + $0x70] sm:$0xff]
        %v3863 = vld [vmem:[#allocation9 + $0x78] sm:$0xff]
        %v3864 = vld [vmem:[#allocation9 + $0x80] sm:$0xff]
        %v3865 = vld [vmem:[#allocation9 + $0x88] sm:$0xff]
        %v3866 = vld [vmem:[#allocation9 + $0x90] sm:$0xff]
        %v3867 = vld [vmem:[#allocation9 + $0x98] sm:$0xff]
        %v3868 = vld [vmem:[#allocation9 + $0xa0] sm:$0xff]
        %v3869 = vld [vmem:[#allocation9 + $0xa8] sm:$0xff]
        %v3870 = vld [vmem:[#allocation9 + $0xb0] sm:$0xff]
        %v3871 = vld [vmem:[#allocation9 + $0xb8] sm:$0xff]
        %v3872 = vld [vmem:[#allocation9 + $0xc0] sm:$0xff]
        %v3873 = vld [vmem:[#allocation9 + $0xc8] sm:$0xff]
        %v3874 = vld [vmem:[#allocation9 + $0xd0] sm:$0xff]
        %v3875 = vld [vmem:[#allocation9 + $0xd8] sm:$0xff]
        %v3876 = vld [vmem:[#allocation9 + $0xe0] sm:$0xff]
        %v3877 = vld [vmem:[#allocation9 + $0xe8] sm:$0xff]
        %v3878 = vld [vmem:[#allocation9 + $0xf0] sm:$0xff]
        %v3879 = vld [vmem:[#allocation9 + $0xf8] sm:$0xff]
        %v3880 = vld [vmem:[#allocation9 + $0x100] sm:$0xff]
        %v3881 = vld [vmem:[#allocation9 + $0x108] sm:$0xff]
        %v3882 = vld [vmem:[#allocation9 + $0x110] sm:$0xff]
        %v3883 = vld [vmem:[#allocation9 + $0x118] sm:$0xff]
        %v3884 = vld [vmem:[#allocation9 + $0x120] sm:$0xff]
        %v3885 = vld [vmem:[#allocation9 + $0x128] sm:$0xff]
        %v3886 = vld [vmem:[#allocation9 + $0x130] sm:$0xff]
        %v3887 = vld [vmem:[#allocation9 + $0x138] sm:$0xff]
        %v3888 = vld [vmem:[#allocation9 + $0x140] sm:$0xff]
        %v3889 = vld [vmem:[#allocation9 + $0x148] sm:$0xff]
        %v3890 = vld [vmem:[#allocation9 + $0x150] sm:$0xff]
        %v3891 = vld [vmem:[#allocation9 + $0x158] sm:$0xff]
        %v3892 = vld [vmem:[#allocation9 + $0x160] sm:$0xff]
        %v3893 = vld [vmem:[#allocation9 + $0x168] sm:$0xff]
        %v3894 = vld [vmem:[#allocation9 + $0x170] sm:$0xff]
        %v3895 = vld [vmem:[#allocation9 + $0x178] sm:$0xff]
        %v3896 = vld [vmem:[#allocation9 + $0x180] sm:$0xff]
        %v3897 = vld [vmem:[#allocation9 + $0x188] sm:$0xff]
        %v3898 = vld [vmem:[#allocation9 + $0x190] sm:$0xff]
        %v3899 = vld [vmem:[#allocation9 + $0x198] sm:$0xff]
        %v3900 = vld [vmem:[#allocation9 + $0x1a0] sm:$0xff]
        %v3901 = vld [vmem:[#allocation9 + $0x1a8] sm:$0xff]
        %v3902 = vld [vmem:[#allocation9 + $0x1b0] sm:$0xff]
        %v3903 = vld [vmem:[#allocation9 + $0x1b8] sm:$0xff]
        %v3904 = vld [vmem:[#allocation9 + $0x1c0] sm:$0xff]
        %v3905 = vld [vmem:[#allocation9 + $0x1c8] sm:$0xff]
        %v3906 = vld [vmem:[#allocation9 + $0x1d0] sm:$0xff]
        %v3907 = vld [vmem:[#allocation9 + $0x1d8] sm:$0xff]
        %v3908 = vld [vmem:[#allocation9 + $0x1e0] sm:$0xff]
        %v3909 = vld [vmem:[#allocation9 + $0x1e8] sm:$0xff]
        %v3910 = vld [vmem:[#allocation9 + $0x1f0] sm:$0xff]
        %v3911 = vld [vmem:[#allocation9 + $0x1f8] sm:$0xff]
        %v3912 = vld [vmem:[#allocation9 + $0x200] sm:$0xff]
        %v3913 = vld [vmem:[#allocation9 + $0x208] sm:$0xff]
        %v3914 = vld [vmem:[#allocation9 + $0x210] sm:$0xff]
        %v3915 = vld [vmem:[#allocation9 + $0x218] sm:$0xff]
        %v3916 = vld [vmem:[#allocation9 + $0x220] sm:$0xff]
        %v3917 = vld [vmem:[#allocation9 + $0x228] sm:$0xff]
        %v3918 = vld [vmem:[#allocation9 + $0x230] sm:$0x3f]
        %v3919 = vld [vmem:[#allocation9 + $0x238] sm:$0x3f]
        %vm3920 = vcmask 244736
        %v3922 = vsel %vm3920, %v3847, 0
        %vm3924 = vcmask 1045504
        %v3926 = vsel %vm3924, %v3918, 0
        %v3929 = vsel %vm3924, %v3919, 0
        %3931 = vmatpush.msra.mxu0 %v3878
        %3932 = vmatpush.msra.mxu0 %v3876
        %3933 = vmatpush.msra.mxu0 %v3874
        %3934 = vmatpush.msra.mxu0 %v3872
        %3935 = vmatpush.msra.mxu0 %v3870
        %3936 = vmatpush.msra.mxu0 %v3868
        %3937 = vmatpush.msra.mxu0 %v3866
        %3938 = vmatpush.msra.mxu0 %v3864
        %3939 = vmatpush.msra.mxu0 %v3862
        %3940 = vmatpush.msra.mxu0 %v3860
        %3941 = vmatpush.msra.mxu0 %v3858
        %3942 = vmatpush.msra.mxu0 %v3856
        %3943 = vmatpush.msra.mxu0 %v3854
        %3944 = vmatpush.msra.mxu0 %v3852
        %3945 = vmatpush.msra.mxu0 %v3850
        %3946 = vmatpush.msra.mxu0 %v3848
        %3947 = vmatmul.f32.gmra.mxu0 %v3845
        %v3948 = vpop.f32.mrf.mxu0
        %v3949 = vadd.f32 0.0, %v3948
        %3950 = vdwg.mxu0
        %3951 = vmatpush.msra.mxu0 %v3910
        %3952 = vmatpush.msra.mxu0 %v3908
        %3953 = vmatpush.msra.mxu0 %v3906
        %3954 = vmatpush.msra.mxu0 %v3904
        %3955 = vmatpush.msra.mxu0 %v3902
        %3956 = vmatpush.msra.mxu0 %v3900
        %3957 = vmatpush.msra.mxu0 %v3898
        %3958 = vmatpush.msra.mxu0 %v3896
        %3959 = vmatpush.msra.mxu0 %v3894
        %3960 = vmatpush.msra.mxu0 %v3892
        %3961 = vmatpush.msra.mxu0 %v3890
        %3962 = vmatpush.msra.mxu0 %v3888
        %3963 = vmatpush.msra.mxu0 %v3886
        %3964 = vmatpush.msra.mxu0 %v3884
        %3965 = vmatpush.msra.mxu0 %v3882
        %3966 = vmatpush.msra.mxu0 %v3880
        %3967 = vmatmul.f32.gmra.mxu0 %v3846
        %v3968 = vpop.f32.mrf.mxu0
        %v3969 = vadd.f32 %v3949, %v3968
        %3970 = vdwg.mxu0
        %3971 = vmatpush.msra.mxu0 0.0
        %3972 = vmatpush.msra.mxu0 0.0
        %3973 = vmatpush.msra.mxu0 0.0
        %3974 = vmatpush.msra.mxu0 0.0
        %3975 = vmatpush.msra.mxu0 0.0
        %3976 = vmatpush.msra.mxu0 0.0
        %3977 = vmatpush.msra.mxu0 0.0
        %3978 = vmatpush.msra.mxu0 0.0
        %3979 = vmatpush.msra.mxu0 0.0
        %3980 = vmatpush.msra.mxu0 0.0
        %3981 = vmatpush.msra.mxu0 0.0
        %3982 = vmatpush.msra.mxu0 0.0
        %3983 = vmatpush.msra.mxu0 %v3926
        %3984 = vmatpush.msra.mxu0 %v3916
        %3985 = vmatpush.msra.mxu0 %v3914
        %3986 = vmatpush.msra.mxu0 %v3912
        %3987 = vmatmul.f32.gmra.mxu0 %v3922
        %v3988 = vpop.f32.mrf.mxu0
        %v3989 = vadd.f32 %v3969, %v3988
        %3990 = vdwg.mxu0
        %3991 = vmatpush.msra.mxu0 %v3879
        %3992 = vmatpush.msra.mxu0 %v3877
        %3993 = vmatpush.msra.mxu0 %v3875
        %3994 = vmatpush.msra.mxu0 %v3873
        %3995 = vmatpush.msra.mxu0 %v3871
        %3996 = vmatpush.msra.mxu0 %v3869
        %3997 = vmatpush.msra.mxu0 %v3867
        %3998 = vmatpush.msra.mxu0 %v3865
        %3999 = vmatpush.msra.mxu0 %v3863
        %4000 = vmatpush.msra.mxu0 %v3861
        %4001 = vmatpush.msra.mxu0 %v3859
        %4002 = vmatpush.msra.mxu0 %v3857
        %4003 = vmatpush.msra.mxu0 %v3855
        %4004 = vmatpush.msra.mxu0 %v3853
        %4005 = vmatpush.msra.mxu0 %v3851
        %4006 = vmatpush.msra.mxu0 %v3849
        %4007 = vmatmul.f32.gmra.mxu0 %v3845
        %v4008 = vpop.f32.mrf.mxu0
        %v4009 = vadd.f32 0.0, %v4008
        %4010 = vdwg.mxu0
        %4011 = vmatpush.msra.mxu0 %v3911
        %4012 = vmatpush.msra.mxu0 %v3909
        %4013 = vmatpush.msra.mxu0 %v3907
        %4014 = vmatpush.msra.mxu0 %v3905
        %4015 = vmatpush.msra.mxu0 %v3903
        %4016 = vmatpush.msra.mxu0 %v3901
        %4017 = vmatpush.msra.mxu0 %v3899
        %4018 = vmatpush.msra.mxu0 %v3897
        %4019 = vmatpush.msra.mxu0 %v3895
        %4020 = vmatpush.msra.mxu0 %v3893
        %4021 = vmatpush.msra.mxu0 %v3891
        %4022 = vmatpush.msra.mxu0 %v3889
        %4023 = vmatpush.msra.mxu0 %v3887
        %4024 = vmatpush.msra.mxu0 %v3885
        %4025 = vmatpush.msra.mxu0 %v3883
        %4026 = vmatpush.msra.mxu0 %v3881
        %4027 = vmatmul.f32.gmra.mxu0 %v3846
        %v4028 = vpop.f32.mrf.mxu0
        %v4029 = vadd.f32 %v4009, %v4028
        %4030 = vdwg.mxu0
        %4031 = vmatpush.msra.mxu0 0.0
        %4032 = vmatpush.msra.mxu0 0.0
        %4033 = vmatpush.msra.mxu0 0.0
        %4034 = vmatpush.msra.mxu0 0.0
        %4035 = vmatpush.msra.mxu0 0.0
        %4036 = vmatpush.msra.mxu0 0.0
        %4037 = vmatpush.msra.mxu0 0.0
        %4038 = vmatpush.msra.mxu0 0.0
        %4039 = vmatpush.msra.mxu0 0.0
        %4040 = vmatpush.msra.mxu0 0.0
        %4041 = vmatpush.msra.mxu0 0.0
        %4042 = vmatpush.msra.mxu0 0.0
        %4043 = vmatpush.msra.mxu0 %v3929
        %4044 = vmatpush.msra.mxu0 %v3917
        %4045 = vmatpush.msra.mxu0 %v3915
        %4046 = vmatpush.msra.mxu0 %v3913
        %4047 = vmatmul.f32.gmra.mxu0 %v3922
        %v4048 = vpop.f32.mrf.mxu0
        %v4049 = vadd.f32 %v4029, %v4048
        %4050 = vdwg.mxu0
        %v4053 = vrot.slane %v4049, 4
        %v4054 = vsel %vm646, %v3989, %v4053
        %4056 = vst [vmem:[%s622] sm:$0xff] %v4054
        %p4057 = scmp.lt.s32.totalorder %s32, 1
        %s4058 = scalar_select %p4057, %s32, 1
        %s4059 = smul.addr %s4058, 4
        %s4060 = smul.addr %s4059, 8
        %s4061 = scalar_lea.vmem %s17, %s4060
        %p4062 = scmp.lt.s32.totalorder %s32, 1
        %s4063 = scalar_select %p4062, %s32, 1
        %s4064 = smul.addr %s4063, 2
        %s4065 = smul.addr %s4064, 4
        %s4066 = scalar_lea.vmem %s18, %s4065
        // Predicated region
        $region97: #{conv_autoencoder_forward.1} parent=87 // pred_check
          %p4067 = pneg %p412
        $region98: #{conv_autoencoder_forward.1} parent=87 // pred_check_branch
          %4069 = sbr.rel (%p4067) target = $region100
        $region99: #{conv_autoencoder_forward.1} parent=87 // pred_region
          _
        $region100: #{conv_autoencoder_forward.1} parent=87 // pred_fallthru
          _
        // Predicated region
        $region101: #{conv_autoencoder_forward.1} parent=87 // pred_check
          %p4070 = pneg %p438
        $region102: #{conv_autoencoder_forward.1} parent=87 // pred_check_branch
          %4072 = sbr.rel (%p4070) target = $region104
        $region103: #{conv_autoencoder_forward.1} parent=87 // pred_region
          _
        $region104: #{conv_autoencoder_forward.1} parent=87 // pred_fallthru
          _
      $region88: #{conv_autoencoder_forward.1} parent=5 // pred_fallthru
        _
      %p4073 = scmp.le.s32.totalorder 2, %s27
      // Predicated region
      $region105: #{conv_autoencoder_forward.1} parent=5 // pred_check
        %p4074 = pneg %p4073
      $region106: #{conv_autoencoder_forward.1} parent=5 // pred_check_branch
        %4076 = sbr.rel (%p4074) target = $region108
      $region107: #{conv_autoencoder_forward.1} parent=5 // pred_region
        %s4077 = ssub.s32 %s27, 2
        // Predicated region
        $region109: #{conv_autoencoder_forward.1} parent=107 // pred_check
          %p4078 = pneg %p418
        $region110: #{conv_autoencoder_forward.1} parent=107 // pred_check_branch
          %4080 = sbr.rel (%p4078) target = $region112
        $region111: #{conv_autoencoder_forward.1} parent=107 // pred_region
          %p4081 = scmp.lt.s32.totalorder %s33, 1
          %s4082 = scalar_select %p4081, %s33, 1
          %s4083 = smul.addr %s4082, 4
          %s4084 = smul.addr %s4083, 8
          %s4085 = scalar_lea.vmem %s17, %s4084
        $region112: #{conv_autoencoder_forward.1} parent=107 // pred_fallthru
          _
        // Predicated region
        $region113: #{conv_autoencoder_forward.1} parent=107 // pred_check
          %p4086 = pneg %p444
        $region114: #{conv_autoencoder_forward.1} parent=107 // pred_check_branch
          %4088 = sbr.rel (%p4086) target = $region116
        $region115: #{conv_autoencoder_forward.1} parent=107 // pred_region
          %p4089 = scmp.lt.s32.totalorder %s33, 1
          %s4090 = scalar_select %p4089, %s33, 1
          %s4091 = smul.addr %s4090, 2
          %s4092 = smul.addr %s4091, 4
          %s4093 = scalar_lea.vmem %s18, %s4092
        $region116: #{conv_autoencoder_forward.1} parent=107 // pred_fallthru
          _
      $region108: #{conv_autoencoder_forward.1} parent=5 // pred_fallthru
        _
    $region6: #{conv_autoencoder_forward.1} parent=1 // loop_footer
      %s31 = sadd.s32 1, %s27
    $region7: #{conv_autoencoder_forward.1} parent=1 // loop_footer_branch
      %26 = sbr.rel target = $region3
    $region8: #{conv_autoencoder_forward.1} parent=1 // loop_exit
      _
    %4094 = vsyncpa [#allocation8], 1
    %s4095 = scalar_lea.sflag [#allocation8], 1
    %4096 = vsyncpa %s4095, 1
    %4097 = vsyncpa [#allocation10], 1

</llo_original>
